<compile_context>
chip_gen: v7x
topology: tpu7x:2x2x1
jax: 0.10.0
libtpu: 0.0.40
codegen_flags: <defaults>
</compile_context>

<pallas_src>
import functools

import jax
import jax.numpy as jnp
from jax.experimental import pallas as pl
from jax.experimental.pallas import tpu as pltpu


def _round_up(x, m):
    return (x + m - 1) // m * m


def _decoder_kernel(h_splits, z_ref, w1_ref, w2_ref, w3_ref, w4_ref, b_ref, o_ref):
    """Four MXU matmuls chained in VMEM; bias/relu on VPU, sigmoid exp on EUP."""
    H1, H2, H3, OUT = h_splits
    # Zero-cost static ref views into the concatenated bias row (all lane-aligned
    # offsets: H1, H1+H2, H1+H2+H3 are multiples of 128).
    b1 = b_ref[:, 0:H1]
    b2 = b_ref[:, H1:H1 + H2]
    b3 = b_ref[:, H1 + H2:H1 + H2 + H3]
    b4 = b_ref[:, H1 + H2 + H3:H1 + H2 + H3 + OUT]

    h = jnp.dot(z_ref[...], w1_ref[...], preferred_element_type=jnp.float32)
    h = jnp.maximum(h + b1, 0.0).astype(jnp.bfloat16)
    h = jnp.dot(h, w2_ref[...], preferred_element_type=jnp.float32)
    h = jnp.maximum(h + b2, 0.0).astype(jnp.bfloat16)
    h = jnp.dot(h, w3_ref[...], preferred_element_type=jnp.float32)
    h = jnp.maximum(h + b3, 0.0).astype(jnp.bfloat16)
    h = jnp.dot(h, w4_ref[...], preferred_element_type=jnp.float32)
    o_ref[...] = jax.nn.sigmoid(h + b4)


def _fused_decoder(z_pad, w1, w2, w3, w4, b_all, tm):
    """z_pad: (Bp, K1p) bf16; w*: bf16 (Kp, Np); b_all: (1, H1+H2+H3+OUT) f32."""
    Bp, K1 = z_pad.shape
    H1, H2, H3, OUT = w1.shape[1], w2.shape[1], w3.shape[1], w4.shape[1]
    assert Bp % tm == 0

    kernel = functools.partial(_decoder_kernel, (H1, H2, H3, OUT))

    flops = 2 * Bp * (K1 * H1 + H1 * H2 + H2 * H3 + H3 * OUT)
    bytes_accessed = (
        z_pad.size * 2
        + (w1.size + w2.size + w3.size + w4.size) * 2
        + b_all.size * 4
        + Bp * OUT * 4
    )

    def resident(shape):
        # Grid-invariant block: single buffer, fetched once, held in VMEM.
        return pl.BlockSpec(shape, lambda i: (0, 0), pipeline_mode=pl.Buffered(1))

    return pl.pallas_call(
        kernel,
        out_shape=jax.ShapeDtypeStruct((Bp, OUT), jnp.float32),
        grid=(Bp // tm,),
        in_specs=[
            pl.BlockSpec((tm, K1), lambda i: (i, 0)),   # activations: double-buffered
            resident((K1, H1)),
            resident((H1, H2)),
            resident((H2, H3)),
            resident((H3, OUT)),
            resident((1, H1 + H2 + H3 + OUT)),
        ],
        out_specs=pl.BlockSpec((tm, OUT), lambda i: (i, 0)),
        compiler_params=pltpu.CompilerParams(
            dimension_semantics=("parallel",),
            vmem_limit_bytes=32 << 20,
        ),
        cost_estimate=pl.CostEstimate(
            flops=flops, transcendentals=Bp * OUT, bytes_accessed=bytes_accessed
        ),
    )(z_pad, w1, w2, w3, w4, b_all)


def init_decoder_params(key, latent_dim, output_dim):
    """Deterministic synthetic init matching nn.Linear shapes (weights transposed), f32."""
    dims = [(latent_dim, 2000), (2000, 500), (500, 500), (500, output_dim)]
    params = []
    for i, (din, dout) in enumerate(dims):
        kw, kb = jax.random.split(jax.random.fold_in(key, i))
        bound = 1.0 / jnp.sqrt(jnp.float32(din))  # PyTorch default uniform bound
        w = jax.random.uniform(kw, (din, dout), jnp.float32, -bound, bound)
        b = jax.random.uniform(kb, (1, dout), jnp.float32, -bound, bound)
        params.append((w, b))
    return params


def prepare_decoder_params(params):
    """Pad latent -> multiple of 16 (bf16 sublane pack only), hidden dims -> multiple
    of 128, output dim UNPADDED. Weights cast to bf16; biases stay f32 and are
    concatenated into a single row. Zero padding is mathematically inert."""
    (w1, b1), (w2, b2), (w3, b3), (w4, b4) = params
    latent = w1.shape[0]
    out_dim = w4.shape[1]
    k1p = _round_up(latent, 16)
    h1p = _round_up(w1.shape[1], 128)
    h2p = _round_up(w2.shape[1], 128)
    h3p = _round_up(w3.shape[1], 128)

    def pad_w(w, rp, cp):
        full = jnp.zeros((rp, cp), jnp.float32).at[: w.shape[0], : w.shape[1]].set(w)
        return full.astype(jnp.bfloat16)

    def pad_b(b, cp):
        return jnp.zeros((1, cp), jnp.float32).at[:, : b.shape[1]].set(b)

    w1p = pad_w(w1, k1p, h1p)
    w2p = pad_w(w2, h1p, h2p)
    w3p = pad_w(w3, h2p, h3p)
    w4p = pad_w(w4, h3p, out_dim)           # output dim left at its true size
    b_all = jnp.concatenate(
        [pad_b(b1, h1p), pad_b(b2, h2p), pad_b(b3, h3p), b4.reshape(1, out_dim)],
        axis=1,
    )
    return (w1p, w2p, w3p, w4p, b_all)


def decoder_forward(prepared, z):
    """z: (B, latent_dim) f32 -> (B, output_dim) f32."""
    w1p, w2p, w3p, w4p, b_all = prepared
    B, K = z.shape
    K1p = w1p.shape[0]

    if B <= 16:
        tm = 16        # bf16 packs (16,128) per vreg: clean packed layer-1 LHS
    elif B <= 128:
        tm = 128
    else:
        tm = 512       # amortize per-grid-step overhead on v6e/v7x; fits 32 MiB VMEM

    Bp = _round_up(B, tm)
    z_pad = jnp.zeros((Bp, K1p), jnp.bfloat16).at[:B, :K].set(z.astype(jnp.bfloat16))
    out = _fused_decoder(z_pad, w1p, w2p, w3p, w4p, b_all, tm)
    return out[:B]


if __name__ == "__main__":
    latent_dim = 8
    output_dim = 32
    batch = 2

    key = jax.random.PRNGKey(0)
    kp, kz = jax.random.split(key)
    params_f32 = init_decoder_params(kp, latent_dim, output_dim)
    prepared = prepare_decoder_params(params_f32)
    z = jax.random.normal(kz, (batch, latent_dim), jnp.float32)

    fwd = jax.jit(decoder_forward)
    out = jax.block_until_ready(fwd(prepared, z))

    # Pure-JAX reference with the same bf16 weight/activation quantization (no Pallas).
    ref = z
    for i, (w, b) in enumerate(params_f32):
        ref = jnp.dot(ref.astype(jnp.bfloat16), w.astype(jnp.bfloat16),
                      preferred_element_type=jnp.float32) + b
        ref = jax.nn.sigmoid(ref) if i == 3 else jnp.maximum(ref, 0.0)

    assert out.shape == (batch, output_dim)
    err = float(jnp.max(jnp.abs(out - ref)))
    assert jnp.allclose(out, ref, atol=2e-3, rtol=2e-3), err

    print("KERNEL_OK")
</pallas_src>

<mosaic_0001>
module attributes {stable_mosaic.version = 11 : i64} {
  func.func @_decoder_kernel(%arg0: i32, %arg1: memref<16x16xbf16, #tpu.memory_space<vmem>>, %arg2: memref<16x2048xbf16, #tpu.memory_space<vmem>>, %arg3: memref<2048x512xbf16, #tpu.memory_space<vmem>>, %arg4: memref<512x512xbf16, #tpu.memory_space<vmem>>, %arg5: memref<512x32xbf16, #tpu.memory_space<vmem>>, %arg6: memref<1x3104xf32, #tpu.memory_space<vmem>>, %arg7: memref<16x32xf32, #tpu.memory_space<vmem>>) attributes {dimension_semantics = [#tpu.dimension_semantics<parallel>], iteration_bounds = array<i64: 1>, scalar_prefetch = 0 : i64, scratch_operands = 0 : i64, tpu.core_type = #tpu.core_type<tc>, window_params = [{transform_indices = @transform_0, window_bounds = array<i64: 16, 16>}, {pipeline_mode = #tpu.pipeline_mode<synchronous>, transform_indices = @transform_1, window_bounds = array<i64: 16, 2048>}, {pipeline_mode = #tpu.pipeline_mode<synchronous>, transform_indices = @transform_2, window_bounds = array<i64: 2048, 512>}, {pipeline_mode = #tpu.pipeline_mode<synchronous>, transform_indices = @transform_3, window_bounds = array<i64: 512, 512>}, {pipeline_mode = #tpu.pipeline_mode<synchronous>, transform_indices = @transform_4, window_bounds = array<i64: 512, 32>}, {pipeline_mode = #tpu.pipeline_mode<synchronous>, transform_indices = @transform_5, window_bounds = array<i64: 1, 3104>}, {transform_indices = @transform_6, window_bounds = array<i64: 16, 32>}]} {
    %c0 = arith.constant 0 : index
    %c0_0 = arith.constant 0 : index
    %0 = vector.load %arg6[%c0, %c0_0] : memref<1x3104xf32, #tpu.memory_space<vmem>>, vector<1x2048xf32>
    %c0_1 = arith.constant 0 : index
    %c2048 = arith.constant 2048 : index
    %1 = vector.load %arg6[%c0_1, %c2048] : memref<1x3104xf32, #tpu.memory_space<vmem>>, vector<1x512xf32>
    %c0_2 = arith.constant 0 : index
    %c2560 = arith.constant 2560 : index
    %2 = vector.load %arg6[%c0_2, %c2560] : memref<1x3104xf32, #tpu.memory_space<vmem>>, vector<1x512xf32>
    %c0_3 = arith.constant 0 : index
    %c3072 = arith.constant 3072 : index
    %3 = vector.load %arg6[%c0_3, %c3072] : memref<1x3104xf32, #tpu.memory_space<vmem>>, vector<1x32xf32>
    %c0_4 = arith.constant 0 : index
    %c0_5 = arith.constant 0 : index
    %4 = vector.load %arg1[%c0_4, %c0_5] : memref<16x16xbf16, #tpu.memory_space<vmem>>, vector<16x16xbf16>
    %c0_6 = arith.constant 0 : index
    %c0_7 = arith.constant 0 : index
    %5 = vector.load %arg2[%c0_6, %c0_7] : memref<16x2048xbf16, #tpu.memory_space<vmem>>, vector<16x2048xbf16>
    %cst = arith.constant dense<0.000000e+00> : vector<16x2048xf32>
    %6 = tpu.matmul %4, %5, %cst {dimension_numbers = #tpu.dot_dimension_numbers<[1], [0], [0], [1], [0, 0, 1, 1], [], []>} : vector<16x16xbf16>, vector<16x2048xbf16>, vector<16x2048xf32> -> vector<16x2048xf32>
    %7 = vector.broadcast %0 : vector<1x2048xf32> to vector<16x2048xf32>
    %8 = arith.addf %6, %7 : vector<16x2048xf32>
    %cst_8 = arith.constant 0.000000e+00 : f32
    %9 = vector.broadcast %cst_8 : f32 to vector<16x2048xf32>
    %10 = arith.maximumf %8, %9 : vector<16x2048xf32>
    %11 = arith.truncf %10 : vector<16x2048xf32> to vector<16x2048xbf16>
    %c0_9 = arith.constant 0 : index
    %c0_10 = arith.constant 0 : index
    %12 = vector.load %arg3[%c0_9, %c0_10] : memref<2048x512xbf16, #tpu.memory_space<vmem>>, vector<2048x512xbf16>
    %cst_11 = arith.constant dense<0.000000e+00> : vector<16x512xf32>
    %13 = tpu.matmul %11, %12, %cst_11 {dimension_numbers = #tpu.dot_dimension_numbers<[1], [0], [0], [1], [0, 0, 1, 1], [], []>} : vector<16x2048xbf16>, vector<2048x512xbf16>, vector<16x512xf32> -> vector<16x512xf32>
    %14 = vector.broadcast %1 : vector<1x512xf32> to vector<16x512xf32>
    %15 = arith.addf %13, %14 : vector<16x512xf32>
    %cst_12 = arith.constant 0.000000e+00 : f32
    %16 = vector.broadcast %cst_12 : f32 to vector<16x512xf32>
    %17 = arith.maximumf %15, %16 : vector<16x512xf32>
    %18 = arith.truncf %17 : vector<16x512xf32> to vector<16x512xbf16>
    %c0_13 = arith.constant 0 : index
    %c0_14 = arith.constant 0 : index
    %19 = vector.load %arg4[%c0_13, %c0_14] : memref<512x512xbf16, #tpu.memory_space<vmem>>, vector<512x512xbf16>
    %cst_15 = arith.constant dense<0.000000e+00> : vector<16x512xf32>
    %20 = tpu.matmul %18, %19, %cst_15 {dimension_numbers = #tpu.dot_dimension_numbers<[1], [0], [0], [1], [0, 0, 1, 1], [], []>} : vector<16x512xbf16>, vector<512x512xbf16>, vector<16x512xf32> -> vector<16x512xf32>
    %21 = vector.broadcast %2 : vector<1x512xf32> to vector<16x512xf32>
    %22 = arith.addf %20, %21 : vector<16x512xf32>
    %cst_16 = arith.constant 0.000000e+00 : f32
    %23 = vector.broadcast %cst_16 : f32 to vector<16x512xf32>
    %24 = arith.maximumf %22, %23 : vector<16x512xf32>
    %25 = arith.truncf %24 : vector<16x512xf32> to vector<16x512xbf16>
    %c0_17 = arith.constant 0 : index
    %c0_18 = arith.constant 0 : index
    %26 = vector.load %arg5[%c0_17, %c0_18] : memref<512x32xbf16, #tpu.memory_space<vmem>>, vector<512x32xbf16>
    %cst_19 = arith.constant dense<0.000000e+00> : vector<16x32xf32>
    %27 = tpu.matmul %25, %26, %cst_19 {dimension_numbers = #tpu.dot_dimension_numbers<[1], [0], [0], [1], [0, 0, 1, 1], [], []>} : vector<16x512xbf16>, vector<512x32xbf16>, vector<16x32xf32> -> vector<16x32xf32>
    %28 = vector.broadcast %3 : vector<1x32xf32> to vector<16x32xf32>
    %29 = arith.addf %27, %28 : vector<16x32xf32>
    %30 = arith.negf %29 : vector<16x32xf32>
    %31 = math.exp %30 : vector<16x32xf32>
    %cst_20 = arith.constant 1.000000e+00 : f32
    %32 = vector.broadcast %cst_20 : f32 to vector<16x32xf32>
    %33 = arith.addf %32, %31 : vector<16x32xf32>
    %34 = arith.divf %32, %33 : vector<16x32xf32>
    %c0_21 = arith.constant 0 : index
    %c0_22 = arith.constant 0 : index
    %35 = vector.load %arg7[%c0_21, %c0_22] : memref<16x32xf32, #tpu.memory_space<vmem>>, vector<16x32xf32>
    tpu.vector_store %arg7[%c0_21, %c0_22], %34 {strides = array<i32>} : memref<16x32xf32, #tpu.memory_space<vmem>>, vector<16x32xf32>,
    return
  }
  func.func @transform_0(%arg0: i32) -> (i32, i32) {
    %c0_i32 = arith.constant 0 : i32
    %c0_i32_0 = arith.constant 0 : i32
    return %arg0, %c0_i32 : i32, i32
  }
  func.func @transform_1(%arg0: i32) -> (i32, i32) {
    %c0_i32 = arith.constant 0 : i32
    %c0_i32_0 = arith.constant 0 : i32
    %c0_i32_1 = arith.constant 0 : i32
    return %c0_i32, %c0_i32_0 : i32, i32
  }
  func.func @transform_2(%arg0: i32) -> (i32, i32) {
    %c0_i32 = arith.constant 0 : i32
    %c0_i32_0 = arith.constant 0 : i32
    %c0_i32_1 = arith.constant 0 : i32
    return %c0_i32, %c0_i32_0 : i32, i32
  }
  func.func @transform_3(%arg0: i32) -> (i32, i32) {
    %c0_i32 = arith.constant 0 : i32
    %c0_i32_0 = arith.constant 0 : i32
    %c0_i32_1 = arith.constant 0 : i32
    return %c0_i32, %c0_i32_0 : i32, i32
  }
  func.func @transform_4(%arg0: i32) -> (i32, i32) {
    %c0_i32 = arith.constant 0 : i32
    %c0_i32_0 = arith.constant 0 : i32
    %c0_i32_1 = arith.constant 0 : i32
    return %c0_i32, %c0_i32_0 : i32, i32
  }
  func.func @transform_5(%arg0: i32) -> (i32, i32) {
    %c0_i32 = arith.constant 0 : i32
    %c0_i32_0 = arith.constant 0 : i32
    %c0_i32_1 = arith.constant 0 : i32
    return %c0_i32, %c0_i32_0 : i32, i32
  }
  func.func @transform_6(%arg0: i32) -> (i32, i32) {
    %c0_i32 = arith.constant 0 : i32
    %c0_i32_0 = arith.constant 0 : i32
    return %arg0, %c0_i32 : i32, i32
  }
}

</mosaic_0001>

<llo_original>
// kernel: decoder_forward.1
$region0: #{decoder_forward.1}
  #allocation0 [shape = 'u32[]', space=smem, size = 0x4, offset = 0x4, fixed_abs, tag = 'smem constant byte address 0x4 - core index']
  #allocation1 [shape = 'u32[144,128]{1,0:T(1,128)}', space=vmem, size = 0x12000, scoped, tag = 'internal scratch']
  %s0 = inlined_call_operand.vmem [shape: bf16[16,16], index: 0, kind: input, shape index: {}]
  %s1 = inlined_call_operand.hbm [shape: bf16[16,2048], index: 1, kind: input, shape index: {}]
  %s2 = inlined_call_operand.hbm [shape: bf16[2048,512], index: 2, kind: input, shape index: {}]
  %s3 = inlined_call_operand.hbm [shape: bf16[512,512], index: 3, kind: input, shape index: {}]
  %s4 = inlined_call_operand.vmem [shape: bf16[512,32], index: 4, kind: input, shape index: {}]
  %s5 = inlined_call_operand.hbm [shape: f32[1,3104], index: 5, kind: input, shape index: {}]
  %s6 = inlined_call_operand.vmem [shape: f32[16,32], index: 6, kind: output, shape index: {}]
  %s7 = sld [smem:[#allocation0]]
  $region50: #{decoder_forward.1} parent=0
    _
  %s9 = ssub.s32 1, %s7
  %s10 = scalar_select 0, %s9, %s7
  $region1: #{decoder_forward.1} parent=0
    #allocation2 [shape = 'u8[65536]{0}', space=vmem, size = 0x10000, scoped, tag = 'input window, operand 1, single buffered']
    #allocation3 [shape = 's32[1]{0}', space=sflag, size = 0x4, scoped, tag = 'scoped memory for decoder_forward.1']
    #allocation4 [shape = 'u8[2097152]{0}', space=vmem, size = 0x200000, scoped, tag = 'input window, operand 2, single buffered']
    #allocation5 [shape = 's32[1]{0}', space=sflag, size = 0x4, scoped, tag = 'scoped memory for decoder_forward.1']
    #allocation6 [shape = 'u8[524288]{0}', space=vmem, size = 0x80000, scoped, tag = 'input window, operand 3, single buffered']
    #allocation7 [shape = 'u8[12800]{0}', space=vmem, size = 0x3400, scoped, tag = 'input window, operand 5, single buffered']
    #allocation8 [shape = 's32[1]{0}', space=sflag, size = 0x4, scoped, tag = 'scoped memory for decoder_forward.1']
    %11 = vsyncpa [#allocation3], 0
    %12 = vsyncpa [#allocation5], 0
    %13 = vsyncpa [#allocation8], 0
    // Predicated region
    $region2: #{decoder_forward.1} parent=1 // pred_check
      _
    $region3: #{decoder_forward.1} parent=1 // pred_check_branch
      %15 = sbr.rel (0) target = $region5
    $region4: #{decoder_forward.1} parent=1 // pred_region
      _
    $region5: #{decoder_forward.1} parent=1 // pred_fallthru
      _
    // Predicated region
    $region6: #{decoder_forward.1} parent=1 // pred_check
      _
    $region7: #{decoder_forward.1} parent=1 // pred_check_branch
      %17 = sbr.rel (0) target = $region9
    $region8: #{decoder_forward.1} parent=1 // pred_region
      %s19 = ssub.s32 2048, 2048
      %20 = vsyncadd [#allocation3], %s19
      %s21 = sshll.u32 [#allocation2], 4
      %s22 = int_to_ptr.vmem [resolvable:$true] %s21
      %27 = dma.hbm_to_vmem [thread:$0]  %s1, 2048, %s22, [#allocation3], 1024, 1024, 64
    $region9: #{decoder_forward.1} parent=1 // pred_fallthru
      _
    // Predicated region
    $region10: #{decoder_forward.1} parent=1 // pred_check
      _
    $region11: #{decoder_forward.1} parent=1 // pred_check_branch
      %29 = sbr.rel (0) target = $region13
    $region12: #{decoder_forward.1} parent=1 // pred_region
      %s31 = ssub.s32 65536, 65536
      %32 = vsyncadd [#allocation5], %s31
      %s33 = sshll.u32 [#allocation4], 4
      %s34 = int_to_ptr.vmem [resolvable:$true] %s33
      %39 = dma.hbm_to_vmem [thread:$0]  %s2, 65536, %s34, [#allocation5], 256, 256, 16
    $region13: #{decoder_forward.1} parent=1 // pred_fallthru
      _
    // Predicated region
    $region14: #{decoder_forward.1} parent=1 // pred_check
      _
    $region15: #{decoder_forward.1} parent=1 // pred_check_branch
      %41 = sbr.rel (0) target = $region17
    $region16: #{decoder_forward.1} parent=1 // pred_region
      %s43 = ssub.s32 16384, 16384
      %44 = vsyncadd [#allocation5], %s43
      %s45 = sshll.u32 [#allocation6], 4
      %s46 = int_to_ptr.vmem [resolvable:$true] %s45
      %51 = dma.hbm_to_vmem [thread:$0]  %s3, 16384, %s46, [#allocation5], 256, 256, 16
    $region17: #{decoder_forward.1} parent=1 // pred_fallthru
      _
    // Predicated region
    $region18: #{decoder_forward.1} parent=1 // pred_check
      _
    $region19: #{decoder_forward.1} parent=1 // pred_check_branch
      %53 = sbr.rel (0) target = $region21
    $region20: #{decoder_forward.1} parent=1 // pred_region
      _
    $region21: #{decoder_forward.1} parent=1 // pred_fallthru
      _
    // Predicated region
    $region22: #{decoder_forward.1} parent=1 // pred_check
      _
    $region23: #{decoder_forward.1} parent=1 // pred_check_branch
      %55 = sbr.rel (0) target = $region25
    $region24: #{decoder_forward.1} parent=1 // pred_region
      %s57 = ssub.s32 400, 400
      %58 = vsyncadd [#allocation8], %s57
      %s60 = sshll.u32 [#allocation7], 4
      %s61 = int_to_ptr.vmem [resolvable:$true] %s60
      %63 = dma.hbm_to_vmem [thread:$0]  %s5, 400, %s61, [#allocation8]
    $region25: #{decoder_forward.1} parent=1 // pred_fallthru
      _
    // Predicated region
    $region26: #{decoder_forward.1} parent=1 // pred_check
      _
    $region27: #{decoder_forward.1} parent=1 // pred_check_branch
      %65 = sbr.rel (0) target = $region29
    $region28: #{decoder_forward.1} parent=1 // pred_region
      %66 = dma.done [#allocation3], 2048
    $region29: #{decoder_forward.1} parent=1 // pred_fallthru
      _
    // Predicated region
    $region30: #{decoder_forward.1} parent=1 // pred_check
      _
    $region31: #{decoder_forward.1} parent=1 // pred_check_branch
      %68 = sbr.rel (0) target = $region33
    $region32: #{decoder_forward.1} parent=1 // pred_region
      %69 = dma.done [#allocation5], 65536
    $region33: #{decoder_forward.1} parent=1 // pred_fallthru
      _
    // Predicated region
    $region34: #{decoder_forward.1} parent=1 // pred_check
      _
    $region35: #{decoder_forward.1} parent=1 // pred_check_branch
      %71 = sbr.rel (0) target = $region37
    $region36: #{decoder_forward.1} parent=1 // pred_region
      %72 = dma.done [#allocation5], 16384
    $region37: #{decoder_forward.1} parent=1 // pred_fallthru
      _
    // Predicated region
    $region38: #{decoder_forward.1} parent=1 // pred_check
      _
    $region39: #{decoder_forward.1} parent=1 // pred_check_branch
      %74 = sbr.rel (0) target = $region41
    $region40: #{decoder_forward.1} parent=1 // pred_region
      %75 = dma.done [#allocation8], 400
    $region41: #{decoder_forward.1} parent=1 // pred_fallthru
      _
    %v77 = vld [vmem:[#allocation7] sm:$0xff]
    %v78 = vld [vmem:[#allocation7 + $0x8] sm:$0xff]
    %v79 = vld [vmem:[#allocation7 + $0x10] sm:$0xf]
    %v80 = vld [vmem:[#allocation7 + $0x14] sm:$0xf]
    %v81 = vld [vmem:[#allocation7 + $0x18] sm:$0x1]
    %v82 = vld [vmem:[%s0] sm:$0xf]
    %v83 = vld [vmem:[%s0 + $0x4] sm:$0xf]
    %v84 = vld [vmem:[#allocation2] sm:$0xff]
    %v85 = vld [vmem:[#allocation2 + $0x8] sm:$0xff]
    %v86 = vld [vmem:[#allocation2 + $0x10] sm:$0xff]
    %v87 = vld [vmem:[#allocation2 + $0x18] sm:$0xff]
    %v88 = vld [vmem:[#allocation2 + $0x20] sm:$0xff]
    %v89 = vld [vmem:[#allocation2 + $0x28] sm:$0xff]
    %v90 = vld [vmem:[#allocation2 + $0x30] sm:$0xff]
    %v91 = vld [vmem:[#allocation2 + $0x38] sm:$0xff]
    %v92 = vld [vmem:[#allocation2 + $0x40] sm:$0xff]
    %v93 = vld [vmem:[#allocation2 + $0x48] sm:$0xff]
    %v94 = vld [vmem:[#allocation2 + $0x50] sm:$0xff]
    %v95 = vld [vmem:[#allocation2 + $0x58] sm:$0xff]
    %v96 = vld [vmem:[#allocation2 + $0x60] sm:$0xff]
    %v97 = vld [vmem:[#allocation2 + $0x68] sm:$0xff]
    %v98 = vld [vmem:[#allocation2 + $0x70] sm:$0xff]
    %v99 = vld [vmem:[#allocation2 + $0x78] sm:$0xff]
    %v102 = vlaneseq
    %v103 = vshrl.u32 %v102, 7
    %v104 = vsub.s32 0, %v103
    %v105 = vrot.slane %v77, %v104
    %v106 = vlaneseq
    %v107 = vshrl.u32 %v106, 7
    %v108 = vsub.s32 1, %v107
    %v109 = vrot.slane %v77, %v108
    %v110 = vlaneseq
    %v111 = vshrl.u32 %v110, 7
    %v112 = vsub.s32 2, %v111
    %v113 = vrot.slane %v77, %v112
    %v114 = vlaneseq
    %v115 = vshrl.u32 %v114, 7
    %v116 = vsub.s32 3, %v115
    %v117 = vrot.slane %v77, %v116
    %v118 = vlaneseq
    %v119 = vshrl.u32 %v118, 7
    %v120 = vsub.s32 4, %v119
    %v121 = vrot.slane %v77, %v120
    %v122 = vlaneseq
    %v123 = vshrl.u32 %v122, 7
    %v124 = vsub.s32 5, %v123
    %v125 = vrot.slane %v77, %v124
    %v126 = vlaneseq
    %v127 = vshrl.u32 %v126, 7
    %v128 = vsub.s32 6, %v127
    %v129 = vrot.slane %v77, %v128
    %v130 = vlaneseq
    %v131 = vshrl.u32 %v130, 7
    %v132 = vsub.s32 7, %v131
    %v133 = vrot.slane %v77, %v132
    %v134 = vlaneseq
    %v135 = vshrl.u32 %v134, 7
    %v136 = vsub.s32 0, %v135
    %v137 = vrot.slane %v78, %v136
    %v138 = vlaneseq
    %v139 = vshrl.u32 %v138, 7
    %v140 = vsub.s32 1, %v139
    %v141 = vrot.slane %v78, %v140
    %v142 = vlaneseq
    %v143 = vshrl.u32 %v142, 7
    %v144 = vsub.s32 2, %v143
    %v145 = vrot.slane %v78, %v144
    %v146 = vlaneseq
    %v147 = vshrl.u32 %v146, 7
    %v148 = vsub.s32 3, %v147
    %v149 = vrot.slane %v78, %v148
    %v150 = vlaneseq
    %v151 = vshrl.u32 %v150, 7
    %v152 = vsub.s32 4, %v151
    %v153 = vrot.slane %v78, %v152
    %v154 = vlaneseq
    %v155 = vshrl.u32 %v154, 7
    %v156 = vsub.s32 5, %v155
    %v157 = vrot.slane %v78, %v156
    %v158 = vlaneseq
    %v159 = vshrl.u32 %v158, 7
    %v160 = vsub.s32 6, %v159
    %v161 = vrot.slane %v78, %v160
    %v162 = vlaneseq
    %v163 = vshrl.u32 %v162, 7
    %v164 = vsub.s32 7, %v163
    %v165 = vrot.slane %v78, %v164
    %v184 = vunpack.c.l.b16 %v82
    %v185 = vunpack.c.l.b16 %v83
    %v186 = vpack.c.b16 %v185, %v184
    %v203 = vunpack.c.l.b16 %v84
    %v204 = vunpack.c.h.b16 %v84
    %v205 = vunpack.c.l.b16 %v85
    %v206 = vunpack.c.h.b16 %v85
    %v207 = vunpack.c.l.b16 %v86
    %v208 = vunpack.c.h.b16 %v86
    %v209 = vunpack.c.l.b16 %v87
    %v210 = vunpack.c.h.b16 %v87
    %v211 = vunpack.c.l.b16 %v88
    %v212 = vunpack.c.h.b16 %v88
    %v213 = vunpack.c.l.b16 %v89
    %v214 = vunpack.c.h.b16 %v89
    %v215 = vunpack.c.l.b16 %v90
    %v216 = vunpack.c.h.b16 %v90
    %v217 = vunpack.c.l.b16 %v91
    %v218 = vunpack.c.h.b16 %v91
    %v219 = vunpack.c.l.b16 %v92
    %v220 = vunpack.c.h.b16 %v92
    %v221 = vunpack.c.l.b16 %v93
    %v222 = vunpack.c.h.b16 %v93
    %v223 = vunpack.c.l.b16 %v94
    %v224 = vunpack.c.h.b16 %v94
    %v225 = vunpack.c.l.b16 %v95
    %v226 = vunpack.c.h.b16 %v95
    %v227 = vunpack.c.l.b16 %v96
    %v228 = vunpack.c.h.b16 %v96
    %v229 = vunpack.c.l.b16 %v97
    %v230 = vunpack.c.h.b16 %v97
    %v231 = vunpack.c.l.b16 %v98
    %v232 = vunpack.c.h.b16 %v98
    %v233 = vunpack.c.l.b16 %v99
    %v234 = vunpack.c.h.b16 %v99
    %v235 = vpack.c.b16 %v219, %v203
    %v236 = vpack.c.b16 %v220, %v204
    %v237 = vpack.c.b16 %v221, %v205
    %v238 = vpack.c.b16 %v222, %v206
    %v239 = vpack.c.b16 %v223, %v207
    %v240 = vpack.c.b16 %v224, %v208
    %v241 = vpack.c.b16 %v225, %v209
    %v242 = vpack.c.b16 %v226, %v210
    %v243 = vpack.c.b16 %v227, %v211
    %v244 = vpack.c.b16 %v228, %v212
    %v245 = vpack.c.b16 %v229, %v213
    %v246 = vpack.c.b16 %v230, %v214
    %v247 = vpack.c.b16 %v231, %v215
    %v248 = vpack.c.b16 %v232, %v216
    %v249 = vpack.c.b16 %v233, %v217
    %v250 = vpack.c.b16 %v234, %v218
    %vm267 = vcmask 130048
    %v269 = vsel %vm267, %v186, 0
    %271 = vmatprep.subr.bf16.mxu0 %v236
    %272 = vmatpush1.bf16.msra.mxu0 %v235
    %273 = vmatprep.subr.bf16.mxu0 0
    %274 = vmatpush1.bf16.msra.mxu0 0
    %275 = vmatprep.subr.bf16.mxu0 0
    %276 = vmatpush1.bf16.msra.mxu0 0
    %277 = vmatprep.subr.bf16.mxu0 0
    %278 = vmatpush1.bf16.msra.mxu0 0
    %279 = vmatprep.subr.bf16.mxu0 0
    %280 = vmatpush1.bf16.msra.mxu0 0
    %281 = vmatprep.subr.bf16.mxu0 0
    %282 = vmatpush1.bf16.msra.mxu0 0
    %283 = vmatprep.subr.bf16.mxu0 0
    %284 = vmatpush1.bf16.msra.mxu0 0
    %285 = vmatprep.subr.bf16.mxu0 0
    %286 = vmatpush1.bf16.msra.mxu0 0
    %287 = vmatprep.subr.bf16.mxu0 0
    %288 = vmatpush1.bf16.msra.mxu0 0
    %289 = vmatprep.subr.bf16.mxu0 0
    %290 = vmatpush1.bf16.msra.mxu0 0
    %291 = vmatprep.subr.bf16.mxu0 0
    %292 = vmatpush1.bf16.msra.mxu0 0
    %293 = vmatprep.subr.bf16.mxu0 0
    %294 = vmatpush1.bf16.msra.mxu0 0
    %295 = vmatprep.subr.bf16.mxu0 0
    %296 = vmatpush1.bf16.msra.mxu0 0
    %297 = vmatprep.subr.bf16.mxu0 0
    %298 = vmatpush1.bf16.msra.mxu0 0
    %299 = vmatprep.subr.bf16.mxu0 0
    %300 = vmatpush1.bf16.msra.mxu0 0
    %301 = vmatprep.subr.bf16.mxu0 0
    %302 = vmatpush1.bf16.msra.mxu0 0
    %303 = vmatprep.mubr.bf16.mxu0 0
    %304 = vmatmul.mubr.bf16.gmra.mrb[0].mxu0 %v269
    %v305 = vpop.f32.mrb[0].mxu0
    %v306 = vadd.f32 %v105, %v305
    %v307 = vpop.f32.mrb[0].mxu0
    %v308 = vadd.f32 %v109, %v307
    %v309 = vpop.f32.mrb[0].mxu0
    %v310 = vadd.f32 %v105, %v309
    %v311 = vpop.f32.mrb[0].mxu0
    %v312 = vadd.f32 %v109, %v311
    %313 = vdwg.mxu0
    %314 = vmatprep.subr.bf16.mxu0 %v238
    %315 = vmatpush1.bf16.msra.mxu0 %v237
    %316 = vmatprep.subr.bf16.mxu0 0
    %317 = vmatpush1.bf16.msra.mxu0 0
    %318 = vmatprep.subr.bf16.mxu0 0
    %319 = vmatpush1.bf16.msra.mxu0 0
    %320 = vmatprep.subr.bf16.mxu0 0
    %321 = vmatpush1.bf16.msra.mxu0 0
    %322 = vmatprep.subr.bf16.mxu0 0
    %323 = vmatpush1.bf16.msra.mxu0 0
    %324 = vmatprep.subr.bf16.mxu0 0
    %325 = vmatpush1.bf16.msra.mxu0 0
    %326 = vmatprep.subr.bf16.mxu0 0
    %327 = vmatpush1.bf16.msra.mxu0 0
    %328 = vmatprep.subr.bf16.mxu0 0
    %329 = vmatpush1.bf16.msra.mxu0 0
    %330 = vmatprep.subr.bf16.mxu0 0
    %331 = vmatpush1.bf16.msra.mxu0 0
    %332 = vmatprep.subr.bf16.mxu0 0
    %333 = vmatpush1.bf16.msra.mxu0 0
    %334 = vmatprep.subr.bf16.mxu0 0
    %335 = vmatpush1.bf16.msra.mxu0 0
    %336 = vmatprep.subr.bf16.mxu0 0
    %337 = vmatpush1.bf16.msra.mxu0 0
    %338 = vmatprep.subr.bf16.mxu0 0
    %339 = vmatpush1.bf16.msra.mxu0 0
    %340 = vmatprep.subr.bf16.mxu0 0
    %341 = vmatpush1.bf16.msra.mxu0 0
    %342 = vmatprep.subr.bf16.mxu0 0
    %343 = vmatpush1.bf16.msra.mxu0 0
    %344 = vmatprep.subr.bf16.mxu0 0
    %345 = vmatpush1.bf16.msra.mxu0 0
    %346 = vmatprep.mubr.bf16.mxu0 0
    %347 = vmatmul.mubr.bf16.gmra.mrb[0].mxu0 %v269
    %v348 = vpop.f32.mrb[0].mxu0
    %v349 = vadd.f32 %v113, %v348
    %v350 = vpop.f32.mrb[0].mxu0
    %v351 = vadd.f32 %v117, %v350
    %v352 = vpop.f32.mrb[0].mxu0
    %v353 = vadd.f32 %v113, %v352
    %v354 = vpop.f32.mrb[0].mxu0
    %v355 = vadd.f32 %v117, %v354
    %356 = vdwg.mxu0
    %357 = vmatprep.subr.bf16.mxu0 %v240
    %358 = vmatpush1.bf16.msra.mxu0 %v239
    %359 = vmatprep.subr.bf16.mxu0 0
    %360 = vmatpush1.bf16.msra.mxu0 0
    %361 = vmatprep.subr.bf16.mxu0 0
    %362 = vmatpush1.bf16.msra.mxu0 0
    %363 = vmatprep.subr.bf16.mxu0 0
    %364 = vmatpush1.bf16.msra.mxu0 0
    %365 = vmatprep.subr.bf16.mxu0 0
    %366 = vmatpush1.bf16.msra.mxu0 0
    %367 = vmatprep.subr.bf16.mxu0 0
    %368 = vmatpush1.bf16.msra.mxu0 0
    %369 = vmatprep.subr.bf16.mxu0 0
    %370 = vmatpush1.bf16.msra.mxu0 0
    %371 = vmatprep.subr.bf16.mxu0 0
    %372 = vmatpush1.bf16.msra.mxu0 0
    %373 = vmatprep.subr.bf16.mxu0 0
    %374 = vmatpush1.bf16.msra.mxu0 0
    %375 = vmatprep.subr.bf16.mxu0 0
    %376 = vmatpush1.bf16.msra.mxu0 0
    %377 = vmatprep.subr.bf16.mxu0 0
    %378 = vmatpush1.bf16.msra.mxu0 0
    %379 = vmatprep.subr.bf16.mxu0 0
    %380 = vmatpush1.bf16.msra.mxu0 0
    %381 = vmatprep.subr.bf16.mxu0 0
    %382 = vmatpush1.bf16.msra.mxu0 0
    %383 = vmatprep.subr.bf16.mxu0 0
    %384 = vmatpush1.bf16.msra.mxu0 0
    %385 = vmatprep.subr.bf16.mxu0 0
    %386 = vmatpush1.bf16.msra.mxu0 0
    %387 = vmatprep.subr.bf16.mxu0 0
    %388 = vmatpush1.bf16.msra.mxu0 0
    %389 = vmatprep.mubr.bf16.mxu0 0
    %390 = vmatmul.mubr.bf16.gmra.mrb[0].mxu0 %v269
    %v391 = vpop.f32.mrb[0].mxu0
    %v392 = vadd.f32 %v121, %v391
    %v393 = vpop.f32.mrb[0].mxu0
    %v394 = vadd.f32 %v125, %v393
    %v395 = vpop.f32.mrb[0].mxu0
    %v396 = vadd.f32 %v121, %v395
    %v397 = vpop.f32.mrb[0].mxu0
    %v398 = vadd.f32 %v125, %v397
    %399 = vdwg.mxu0
    %400 = vmatprep.subr.bf16.mxu0 %v242
    %401 = vmatpush1.bf16.msra.mxu0 %v241
    %402 = vmatprep.subr.bf16.mxu0 0
    %403 = vmatpush1.bf16.msra.mxu0 0
    %404 = vmatprep.subr.bf16.mxu0 0
    %405 = vmatpush1.bf16.msra.mxu0 0
    %406 = vmatprep.subr.bf16.mxu0 0
    %407 = vmatpush1.bf16.msra.mxu0 0
    %408 = vmatprep.subr.bf16.mxu0 0
    %409 = vmatpush1.bf16.msra.mxu0 0
    %410 = vmatprep.subr.bf16.mxu0 0
    %411 = vmatpush1.bf16.msra.mxu0 0
    %412 = vmatprep.subr.bf16.mxu0 0
    %413 = vmatpush1.bf16.msra.mxu0 0
    %414 = vmatprep.subr.bf16.mxu0 0
    %415 = vmatpush1.bf16.msra.mxu0 0
    %416 = vmatprep.subr.bf16.mxu0 0
    %417 = vmatpush1.bf16.msra.mxu0 0
    %418 = vmatprep.subr.bf16.mxu0 0
    %419 = vmatpush1.bf16.msra.mxu0 0
    %420 = vmatprep.subr.bf16.mxu0 0
    %421 = vmatpush1.bf16.msra.mxu0 0
    %422 = vmatprep.subr.bf16.mxu0 0
    %423 = vmatpush1.bf16.msra.mxu0 0
    %424 = vmatprep.subr.bf16.mxu0 0
    %425 = vmatpush1.bf16.msra.mxu0 0
    %426 = vmatprep.subr.bf16.mxu0 0
    %427 = vmatpush1.bf16.msra.mxu0 0
    %428 = vmatprep.subr.bf16.mxu0 0
    %429 = vmatpush1.bf16.msra.mxu0 0
    %430 = vmatprep.subr.bf16.mxu0 0
    %431 = vmatpush1.bf16.msra.mxu0 0
    %432 = vmatprep.mubr.bf16.mxu0 0
    %433 = vmatmul.mubr.bf16.gmra.mrb[0].mxu0 %v269
    %v434 = vpop.f32.mrb[0].mxu0
    %v435 = vadd.f32 %v129, %v434
    %v436 = vpop.f32.mrb[0].mxu0
    %v437 = vadd.f32 %v133, %v436
    %v438 = vpop.f32.mrb[0].mxu0
    %v439 = vadd.f32 %v129, %v438
    %v440 = vpop.f32.mrb[0].mxu0
    %v441 = vadd.f32 %v133, %v440
    %442 = vdwg.mxu0
    %443 = vmatprep.subr.bf16.mxu0 %v244
    %444 = vmatpush1.bf16.msra.mxu0 %v243
    %445 = vmatprep.subr.bf16.mxu0 0
    %446 = vmatpush1.bf16.msra.mxu0 0
    %447 = vmatprep.subr.bf16.mxu0 0
    %448 = vmatpush1.bf16.msra.mxu0 0
    %449 = vmatprep.subr.bf16.mxu0 0
    %450 = vmatpush1.bf16.msra.mxu0 0
    %451 = vmatprep.subr.bf16.mxu0 0
    %452 = vmatpush1.bf16.msra.mxu0 0
    %453 = vmatprep.subr.bf16.mxu0 0
    %454 = vmatpush1.bf16.msra.mxu0 0
    %455 = vmatprep.subr.bf16.mxu0 0
    %456 = vmatpush1.bf16.msra.mxu0 0
    %457 = vmatprep.subr.bf16.mxu0 0
    %458 = vmatpush1.bf16.msra.mxu0 0
    %459 = vmatprep.subr.bf16.mxu0 0
    %460 = vmatpush1.bf16.msra.mxu0 0
    %461 = vmatprep.subr.bf16.mxu0 0
    %462 = vmatpush1.bf16.msra.mxu0 0
    %463 = vmatprep.subr.bf16.mxu0 0
    %464 = vmatpush1.bf16.msra.mxu0 0
    %465 = vmatprep.subr.bf16.mxu0 0
    %466 = vmatpush1.bf16.msra.mxu0 0
    %467 = vmatprep.subr.bf16.mxu0 0
    %468 = vmatpush1.bf16.msra.mxu0 0
    %469 = vmatprep.subr.bf16.mxu0 0
    %470 = vmatpush1.bf16.msra.mxu0 0
    %471 = vmatprep.subr.bf16.mxu0 0
    %472 = vmatpush1.bf16.msra.mxu0 0
    %473 = vmatprep.subr.bf16.mxu0 0
    %474 = vmatpush1.bf16.msra.mxu0 0
    %475 = vmatprep.mubr.bf16.mxu0 0
    %476 = vmatmul.mubr.bf16.gmra.mrb[0].mxu0 %v269
    %v477 = vpop.f32.mrb[0].mxu0
    %v478 = vadd.f32 %v137, %v477
    %v479 = vpop.f32.mrb[0].mxu0
    %v480 = vadd.f32 %v141, %v479
    %v481 = vpop.f32.mrb[0].mxu0
    %v482 = vadd.f32 %v137, %v481
    %v483 = vpop.f32.mrb[0].mxu0
    %v484 = vadd.f32 %v141, %v483
    %485 = vdwg.mxu0
    %486 = vmatprep.subr.bf16.mxu0 %v246
    %487 = vmatpush1.bf16.msra.mxu0 %v245
    %488 = vmatprep.subr.bf16.mxu0 0
    %489 = vmatpush1.bf16.msra.mxu0 0
    %490 = vmatprep.subr.bf16.mxu0 0
    %491 = vmatpush1.bf16.msra.mxu0 0
    %492 = vmatprep.subr.bf16.mxu0 0
    %493 = vmatpush1.bf16.msra.mxu0 0
    %494 = vmatprep.subr.bf16.mxu0 0
    %495 = vmatpush1.bf16.msra.mxu0 0
    %496 = vmatprep.subr.bf16.mxu0 0
    %497 = vmatpush1.bf16.msra.mxu0 0
    %498 = vmatprep.subr.bf16.mxu0 0
    %499 = vmatpush1.bf16.msra.mxu0 0
    %500 = vmatprep.subr.bf16.mxu0 0
    %501 = vmatpush1.bf16.msra.mxu0 0
    %502 = vmatprep.subr.bf16.mxu0 0
    %503 = vmatpush1.bf16.msra.mxu0 0
    %504 = vmatprep.subr.bf16.mxu0 0
    %505 = vmatpush1.bf16.msra.mxu0 0
    %506 = vmatprep.subr.bf16.mxu0 0
    %507 = vmatpush1.bf16.msra.mxu0 0
    %508 = vmatprep.subr.bf16.mxu0 0
    %509 = vmatpush1.bf16.msra.mxu0 0
    %510 = vmatprep.subr.bf16.mxu0 0
    %511 = vmatpush1.bf16.msra.mxu0 0
    %512 = vmatprep.subr.bf16.mxu0 0
    %513 = vmatpush1.bf16.msra.mxu0 0
    %514 = vmatprep.subr.bf16.mxu0 0
    %515 = vmatpush1.bf16.msra.mxu0 0
    %516 = vmatprep.subr.bf16.mxu0 0
    %517 = vmatpush1.bf16.msra.mxu0 0
    %518 = vmatprep.mubr.bf16.mxu0 0
    %519 = vmatmul.mubr.bf16.gmra.mrb[0].mxu0 %v269
    %v520 = vpop.f32.mrb[0].mxu0
    %v521 = vadd.f32 %v145, %v520
    %v522 = vpop.f32.mrb[0].mxu0
    %v523 = vadd.f32 %v149, %v522
    %v524 = vpop.f32.mrb[0].mxu0
    %v525 = vadd.f32 %v145, %v524
    %v526 = vpop.f32.mrb[0].mxu0
    %v527 = vadd.f32 %v149, %v526
    %528 = vdwg.mxu0
    %529 = vmatprep.subr.bf16.mxu0 %v248
    %530 = vmatpush1.bf16.msra.mxu0 %v247
    %531 = vmatprep.subr.bf16.mxu0 0
    %532 = vmatpush1.bf16.msra.mxu0 0
    %533 = vmatprep.subr.bf16.mxu0 0
    %534 = vmatpush1.bf16.msra.mxu0 0
    %535 = vmatprep.subr.bf16.mxu0 0
    %536 = vmatpush1.bf16.msra.mxu0 0
    %537 = vmatprep.subr.bf16.mxu0 0
    %538 = vmatpush1.bf16.msra.mxu0 0
    %539 = vmatprep.subr.bf16.mxu0 0
    %540 = vmatpush1.bf16.msra.mxu0 0
    %541 = vmatprep.subr.bf16.mxu0 0
    %542 = vmatpush1.bf16.msra.mxu0 0
    %543 = vmatprep.subr.bf16.mxu0 0
    %544 = vmatpush1.bf16.msra.mxu0 0
    %545 = vmatprep.subr.bf16.mxu0 0
    %546 = vmatpush1.bf16.msra.mxu0 0
    %547 = vmatprep.subr.bf16.mxu0 0
    %548 = vmatpush1.bf16.msra.mxu0 0
    %549 = vmatprep.subr.bf16.mxu0 0
    %550 = vmatpush1.bf16.msra.mxu0 0
    %551 = vmatprep.subr.bf16.mxu0 0
    %552 = vmatpush1.bf16.msra.mxu0 0
    %553 = vmatprep.subr.bf16.mxu0 0
    %554 = vmatpush1.bf16.msra.mxu0 0
    %555 = vmatprep.subr.bf16.mxu0 0
    %556 = vmatpush1.bf16.msra.mxu0 0
    %557 = vmatprep.subr.bf16.mxu0 0
    %558 = vmatpush1.bf16.msra.mxu0 0
    %559 = vmatprep.subr.bf16.mxu0 0
    %560 = vmatpush1.bf16.msra.mxu0 0
    %561 = vmatprep.mubr.bf16.mxu0 0
    %562 = vmatmul.mubr.bf16.gmra.mrb[0].mxu0 %v269
    %v563 = vpop.f32.mrb[0].mxu0
    %v564 = vadd.f32 %v153, %v563
    %v565 = vpop.f32.mrb[0].mxu0
    %v566 = vadd.f32 %v157, %v565
    %v567 = vpop.f32.mrb[0].mxu0
    %v568 = vadd.f32 %v153, %v567
    %v569 = vpop.f32.mrb[0].mxu0
    %v570 = vadd.f32 %v157, %v569
    %571 = vdwg.mxu0
    %572 = vmatprep.subr.bf16.mxu0 %v250
    %573 = vmatpush1.bf16.msra.mxu0 %v249
    %574 = vmatprep.subr.bf16.mxu0 0
    %575 = vmatpush1.bf16.msra.mxu0 0
    %576 = vmatprep.subr.bf16.mxu0 0
    %577 = vmatpush1.bf16.msra.mxu0 0
    %578 = vmatprep.subr.bf16.mxu0 0
    %579 = vmatpush1.bf16.msra.mxu0 0
    %580 = vmatprep.subr.bf16.mxu0 0
    %581 = vmatpush1.bf16.msra.mxu0 0
    %582 = vmatprep.subr.bf16.mxu0 0
    %583 = vmatpush1.bf16.msra.mxu0 0
    %584 = vmatprep.subr.bf16.mxu0 0
    %585 = vmatpush1.bf16.msra.mxu0 0
    %586 = vmatprep.subr.bf16.mxu0 0
    %587 = vmatpush1.bf16.msra.mxu0 0
    %588 = vmatprep.subr.bf16.mxu0 0
    %589 = vmatpush1.bf16.msra.mxu0 0
    %590 = vmatprep.subr.bf16.mxu0 0
    %591 = vmatpush1.bf16.msra.mxu0 0
    %592 = vmatprep.subr.bf16.mxu0 0
    %593 = vmatpush1.bf16.msra.mxu0 0
    %594 = vmatprep.subr.bf16.mxu0 0
    %595 = vmatpush1.bf16.msra.mxu0 0
    %596 = vmatprep.subr.bf16.mxu0 0
    %597 = vmatpush1.bf16.msra.mxu0 0
    %598 = vmatprep.subr.bf16.mxu0 0
    %599 = vmatpush1.bf16.msra.mxu0 0
    %600 = vmatprep.subr.bf16.mxu0 0
    %601 = vmatpush1.bf16.msra.mxu0 0
    %602 = vmatprep.subr.bf16.mxu0 0
    %603 = vmatpush1.bf16.msra.mxu0 0
    %604 = vmatprep.mubr.bf16.mxu0 0
    %605 = vmatmul.mubr.bf16.gmra.mrb[0].mxu0 %v269
    %v606 = vpop.f32.mrb[0].mxu0
    %v607 = vadd.f32 %v161, %v606
    %v608 = vpop.f32.mrb[0].mxu0
    %v609 = vadd.f32 %v165, %v608
    %v610 = vpop.f32.mrb[0].mxu0
    %v611 = vadd.f32 %v161, %v610
    %v612 = vpop.f32.mrb[0].mxu0
    %v613 = vadd.f32 %v165, %v612
    %614 = vdwg.mxu0
    %v615 = vmax.f32 %v306, 0.0
    %v616 = vmax.f32 %v308, 0.0
    %v617 = vmax.f32 %v349, 0.0
    %v618 = vmax.f32 %v351, 0.0
    %v619 = vmax.f32 %v392, 0.0
    %v620 = vmax.f32 %v394, 0.0
    %v621 = vmax.f32 %v435, 0.0
    %v622 = vmax.f32 %v437, 0.0
    %v623 = vmax.f32 %v478, 0.0
    %v624 = vmax.f32 %v480, 0.0
    %v625 = vmax.f32 %v521, 0.0
    %v626 = vmax.f32 %v523, 0.0
    %v627 = vmax.f32 %v564, 0.0
    %v628 = vmax.f32 %v566, 0.0
    %v629 = vmax.f32 %v607, 0.0
    %v630 = vmax.f32 %v609, 0.0
    %v631 = vmax.f32 %v310, 0.0
    %v632 = vmax.f32 %v312, 0.0
    %v633 = vmax.f32 %v353, 0.0
    %v634 = vmax.f32 %v355, 0.0
    %v635 = vmax.f32 %v396, 0.0
    %v636 = vmax.f32 %v398, 0.0
    %v637 = vmax.f32 %v439, 0.0
    %v638 = vmax.f32 %v441, 0.0
    %v639 = vmax.f32 %v482, 0.0
    %v640 = vmax.f32 %v484, 0.0
    %v641 = vmax.f32 %v525, 0.0
    %v642 = vmax.f32 %v527, 0.0
    %v643 = vmax.f32 %v568, 0.0
    %v644 = vmax.f32 %v570, 0.0
    %v645 = vmax.f32 %v611, 0.0
    %v646 = vmax.f32 %v613, 0.0
    %v647 = vpack.c.bf16 %v631, %v615
    %v648 = vpack.c.bf16 %v632, %v616
    %v649 = vpack.c.bf16 %v633, %v617
    %v650 = vpack.c.bf16 %v634, %v618
    %v651 = vpack.c.bf16 %v635, %v619
    %v652 = vpack.c.bf16 %v636, %v620
    %v653 = vpack.c.bf16 %v637, %v621
    %v654 = vpack.c.bf16 %v638, %v622
    %v655 = vpack.c.bf16 %v639, %v623
    %v656 = vpack.c.bf16 %v640, %v624
    %v657 = vpack.c.bf16 %v641, %v625
    %v658 = vpack.c.bf16 %v642, %v626
    %v659 = vpack.c.bf16 %v643, %v627
    %v660 = vpack.c.bf16 %v644, %v628
    %v661 = vpack.c.bf16 %v645, %v629
    %v662 = vpack.c.bf16 %v646, %v630
    %v663 = vld [vmem:[#allocation4] sm:$0xff]
    %v664 = vld [vmem:[#allocation4 + $0x8] sm:$0xff]
    %v665 = vld [vmem:[#allocation4 + $0x10] sm:$0xff]
    %v666 = vld [vmem:[#allocation4 + $0x18] sm:$0xff]
    %v667 = vld [vmem:[#allocation4 + $0x20] sm:$0xff]
    %v668 = vld [vmem:[#allocation4 + $0x28] sm:$0xff]
    %v669 = vld [vmem:[#allocation4 + $0x30] sm:$0xff]
    %v670 = vld [vmem:[#allocation4 + $0x38] sm:$0xff]
    %v671 = vld [vmem:[#allocation4 + $0x40] sm:$0xff]
    %v672 = vld [vmem:[#allocation4 + $0x48] sm:$0xff]
    %v673 = vld [vmem:[#allocation4 + $0x50] sm:$0xff]
    %v674 = vld [vmem:[#allocation4 + $0x58] sm:$0xff]
    %v675 = vld [vmem:[#allocation4 + $0x60] sm:$0xff]
    %v676 = vld [vmem:[#allocation4 + $0x68] sm:$0xff]
    %v677 = vld [vmem:[#allocation4 + $0x70] sm:$0xff]
    %v678 = vld [vmem:[#allocation4 + $0x78] sm:$0xff]
    %v679 = vld [vmem:[#allocation4 + $0x80] sm:$0xff]
    %v680 = vld [vmem:[#allocation4 + $0x88] sm:$0xff]
    %v681 = vld [vmem:[#allocation4 + $0x90] sm:$0xff]
    %v682 = vld [vmem:[#allocation4 + $0x98] sm:$0xff]
    %v683 = vld [vmem:[#allocation4 + $0xa0] sm:$0xff]
    %v684 = vld [vmem:[#allocation4 + $0xa8] sm:$0xff]
    %v685 = vld [vmem:[#allocation4 + $0xb0] sm:$0xff]
    %v686 = vld [vmem:[#allocation4 + $0xb8] sm:$0xff]
    %v687 = vld [vmem:[#allocation4 + $0xc0] sm:$0xff]
    %v688 = vld [vmem:[#allocation4 + $0xc8] sm:$0xff]
    %v689 = vld [vmem:[#allocation4 + $0xd0] sm:$0xff]
    %v690 = vld [vmem:[#allocation4 + $0xd8] sm:$0xff]
    %v691 = vld [vmem:[#allocation4 + $0xe0] sm:$0xff]
    %v692 = vld [vmem:[#allocation4 + $0xe8] sm:$0xff]
    %v693 = vld [vmem:[#allocation4 + $0xf0] sm:$0xff]
    %v694 = vld [vmem:[#allocation4 + $0xf8] sm:$0xff]
    %v695 = vld [vmem:[#allocation4 + $0x100] sm:$0xff]
    %v696 = vld [vmem:[#allocation4 + $0x108] sm:$0xff]
    %v697 = vld [vmem:[#allocation4 + $0x110] sm:$0xff]
    %v698 = vld [vmem:[#allocation4 + $0x118] sm:$0xff]
    %v699 = vld [vmem:[#allocation4 + $0x120] sm:$0xff]
    %v700 = vld [vmem:[#allocation4 + $0x128] sm:$0xff]
    %v701 = vld [vmem:[#allocation4 + $0x130] sm:$0xff]
    %v702 = vld [vmem:[#allocation4 + $0x138] sm:$0xff]
    %v703 = vld [vmem:[#allocation4 + $0x140] sm:$0xff]
    %v704 = vld [vmem:[#allocation4 + $0x148] sm:$0xff]
    %v705 = vld [vmem:[#allocation4 + $0x150] sm:$0xff]
    %v706 = vld [vmem:[#allocation4 + $0x158] sm:$0xff]
    %v707 = vld [vmem:[#allocation4 + $0x160] sm:$0xff]
    %v708 = vld [vmem:[#allocation4 + $0x168] sm:$0xff]
    %v709 = vld [vmem:[#allocation4 + $0x170] sm:$0xff]
    %v710 = vld [vmem:[#allocation4 + $0x178] sm:$0xff]
    %v711 = vld [vmem:[#allocation4 + $0x180] sm:$0xff]
    %v712 = vld [vmem:[#allocation4 + $0x188] sm:$0xff]
    %v713 = vld [vmem:[#allocation4 + $0x190] sm:$0xff]
    %v714 = vld [vmem:[#allocation4 + $0x198] sm:$0xff]
    %v715 = vld [vmem:[#allocation4 + $0x1a0] sm:$0xff]
    %v716 = vld [vmem:[#allocation4 + $0x1a8] sm:$0xff]
    %v717 = vld [vmem:[#allocation4 + $0x1b0] sm:$0xff]
    %v718 = vld [vmem:[#allocation4 + $0x1b8] sm:$0xff]
    %v719 = vld [vmem:[#allocation4 + $0x1c0] sm:$0xff]
    %v720 = vld [vmem:[#allocation4 + $0x1c8] sm:$0xff]
    %v721 = vld [vmem:[#allocation4 + $0x1d0] sm:$0xff]
    %v722 = vld [vmem:[#allocation4 + $0x1d8] sm:$0xff]
    %v723 = vld [vmem:[#allocation4 + $0x1e0] sm:$0xff]
    %v724 = vld [vmem:[#allocation4 + $0x1e8] sm:$0xff]
    %v725 = vld [vmem:[#allocation4 + $0x1f0] sm:$0xff]
    %v726 = vld [vmem:[#allocation4 + $0x1f8] sm:$0xff]
    %v727 = vld [vmem:[#allocation4 + $0x200] sm:$0xff]
    %v728 = vld [vmem:[#allocation4 + $0x208] sm:$0xff]
    %v729 = vld [vmem:[#allocation4 + $0x210] sm:$0xff]
    %v730 = vld [vmem:[#allocation4 + $0x218] sm:$0xff]
    %v731 = vld [vmem:[#allocation4 + $0x220] sm:$0xff]
    %v732 = vld [vmem:[#allocation4 + $0x228] sm:$0xff]
    %v733 = vld [vmem:[#allocation4 + $0x230] sm:$0xff]
    %v734 = vld [vmem:[#allocation4 + $0x238] sm:$0xff]
    %v735 = vld [vmem:[#allocation4 + $0x240] sm:$0xff]
    %v736 = vld [vmem:[#allocation4 + $0x248] sm:$0xff]
    %v737 = vld [vmem:[#allocation4 + $0x250] sm:$0xff]
    %v738 = vld [vmem:[#allocation4 + $0x258] sm:$0xff]
    %v739 = vld [vmem:[#allocation4 + $0x260] sm:$0xff]
    %v740 = vld [vmem:[#allocation4 + $0x268] sm:$0xff]
    %v741 = vld [vmem:[#allocation4 + $0x270] sm:$0xff]
    %v742 = vld [vmem:[#allocation4 + $0x278] sm:$0xff]
    %v743 = vld [vmem:[#allocation4 + $0x280] sm:$0xff]
    %v744 = vld [vmem:[#allocation4 + $0x288] sm:$0xff]
    %v745 = vld [vmem:[#allocation4 + $0x290] sm:$0xff]
    %v746 = vld [vmem:[#allocation4 + $0x298] sm:$0xff]
    %v747 = vld [vmem:[#allocation4 + $0x2a0] sm:$0xff]
    %v748 = vld [vmem:[#allocation4 + $0x2a8] sm:$0xff]
    %v749 = vld [vmem:[#allocation4 + $0x2b0] sm:$0xff]
    %v750 = vld [vmem:[#allocation4 + $0x2b8] sm:$0xff]
    %v751 = vld [vmem:[#allocation4 + $0x2c0] sm:$0xff]
    %v752 = vld [vmem:[#allocation4 + $0x2c8] sm:$0xff]
    %v753 = vld [vmem:[#allocation4 + $0x2d0] sm:$0xff]
    %v754 = vld [vmem:[#allocation4 + $0x2d8] sm:$0xff]
    %v755 = vld [vmem:[#allocation4 + $0x2e0] sm:$0xff]
    %v756 = vld [vmem:[#allocation4 + $0x2e8] sm:$0xff]
    %v757 = vld [vmem:[#allocation4 + $0x2f0] sm:$0xff]
    %v758 = vld [vmem:[#allocation4 + $0x2f8] sm:$0xff]
    %v759 = vld [vmem:[#allocation4 + $0x300] sm:$0xff]
    %v760 = vld [vmem:[#allocation4 + $0x308] sm:$0xff]
    %v761 = vld [vmem:[#allocation4 + $0x310] sm:$0xff]
    %v762 = vld [vmem:[#allocation4 + $0x318] sm:$0xff]
    %v763 = vld [vmem:[#allocation4 + $0x320] sm:$0xff]
    %v764 = vld [vmem:[#allocation4 + $0x328] sm:$0xff]
    %v765 = vld [vmem:[#allocation4 + $0x330] sm:$0xff]
    %v766 = vld [vmem:[#allocation4 + $0x338] sm:$0xff]
    %v767 = vld [vmem:[#allocation4 + $0x340] sm:$0xff]
    %v768 = vld [vmem:[#allocation4 + $0x348] sm:$0xff]
    %v769 = vld [vmem:[#allocation4 + $0x350] sm:$0xff]
    %v770 = vld [vmem:[#allocation4 + $0x358] sm:$0xff]
    %v771 = vld [vmem:[#allocation4 + $0x360] sm:$0xff]
    %v772 = vld [vmem:[#allocation4 + $0x368] sm:$0xff]
    %v773 = vld [vmem:[#allocation4 + $0x370] sm:$0xff]
    %v774 = vld [vmem:[#allocation4 + $0x378] sm:$0xff]
    %v775 = vld [vmem:[#allocation4 + $0x380] sm:$0xff]
    %v776 = vld [vmem:[#allocation4 + $0x388] sm:$0xff]
    %v777 = vld [vmem:[#allocation4 + $0x390] sm:$0xff]
    %v778 = vld [vmem:[#allocation4 + $0x398] sm:$0xff]
    %v779 = vld [vmem:[#allocation4 + $0x3a0] sm:$0xff]
    %v780 = vld [vmem:[#allocation4 + $0x3a8] sm:$0xff]
    %v781 = vld [vmem:[#allocation4 + $0x3b0] sm:$0xff]
    %v782 = vld [vmem:[#allocation4 + $0x3b8] sm:$0xff]
    %v783 = vld [vmem:[#allocation4 + $0x3c0] sm:$0xff]
    %v784 = vld [vmem:[#allocation4 + $0x3c8] sm:$0xff]
    %v785 = vld [vmem:[#allocation4 + $0x3d0] sm:$0xff]
    %v786 = vld [vmem:[#allocation4 + $0x3d8] sm:$0xff]
    %v787 = vld [vmem:[#allocation4 + $0x3e0] sm:$0xff]
    %v788 = vld [vmem:[#allocation4 + $0x3e8] sm:$0xff]
    %v789 = vld [vmem:[#allocation4 + $0x3f0] sm:$0xff]
    %v790 = vld [vmem:[#allocation4 + $0x3f8] sm:$0xff]
    %v791 = vld [vmem:[#allocation4 + $0x400] sm:$0xff]
    %v792 = vld [vmem:[#allocation4 + $0x408] sm:$0xff]
    %v793 = vld [vmem:[#allocation4 + $0x410] sm:$0xff]
    %v794 = vld [vmem:[#allocation4 + $0x418] sm:$0xff]
    %v795 = vld [vmem:[#allocation4 + $0x420] sm:$0xff]
    %v796 = vld [vmem:[#allocation4 + $0x428] sm:$0xff]
    %v797 = vld [vmem:[#allocation4 + $0x430] sm:$0xff]
    %v798 = vld [vmem:[#allocation4 + $0x438] sm:$0xff]
    %v799 = vld [vmem:[#allocation4 + $0x440] sm:$0xff]
    %v800 = vld [vmem:[#allocation4 + $0x448] sm:$0xff]
    %v801 = vld [vmem:[#allocation4 + $0x450] sm:$0xff]
    %v802 = vld [vmem:[#allocation4 + $0x458] sm:$0xff]
    %v803 = vld [vmem:[#allocation4 + $0x460] sm:$0xff]
    %v804 = vld [vmem:[#allocation4 + $0x468] sm:$0xff]
    %v805 = vld [vmem:[#allocation4 + $0x470] sm:$0xff]
    %v806 = vld [vmem:[#allocation4 + $0x478] sm:$0xff]
    %v807 = vld [vmem:[#allocation4 + $0x480] sm:$0xff]
    %v808 = vld [vmem:[#allocation4 + $0x488] sm:$0xff]
    %v809 = vld [vmem:[#allocation4 + $0x490] sm:$0xff]
    %v810 = vld [vmem:[#allocation4 + $0x498] sm:$0xff]
    %v811 = vld [vmem:[#allocation4 + $0x4a0] sm:$0xff]
    %v812 = vld [vmem:[#allocation4 + $0x4a8] sm:$0xff]
    %v813 = vld [vmem:[#allocation4 + $0x4b0] sm:$0xff]
    %v814 = vld [vmem:[#allocation4 + $0x4b8] sm:$0xff]
    %v815 = vld [vmem:[#allocation4 + $0x4c0] sm:$0xff]
    %v816 = vld [vmem:[#allocation4 + $0x4c8] sm:$0xff]
    %v817 = vld [vmem:[#allocation4 + $0x4d0] sm:$0xff]
    %v818 = vld [vmem:[#allocation4 + $0x4d8] sm:$0xff]
    %v819 = vld [vmem:[#allocation4 + $0x4e0] sm:$0xff]
    %v820 = vld [vmem:[#allocation4 + $0x4e8] sm:$0xff]
    %v821 = vld [vmem:[#allocation4 + $0x4f0] sm:$0xff]
    %v822 = vld [vmem:[#allocation4 + $0x4f8] sm:$0xff]
    %v823 = vld [vmem:[#allocation4 + $0x500] sm:$0xff]
    %v824 = vld [vmem:[#allocation4 + $0x508] sm:$0xff]
    %v825 = vld [vmem:[#allocation4 + $0x510] sm:$0xff]
    %v826 = vld [vmem:[#allocation4 + $0x518] sm:$0xff]
    %v827 = vld [vmem:[#allocation4 + $0x520] sm:$0xff]
    %v828 = vld [vmem:[#allocation4 + $0x528] sm:$0xff]
    %v829 = vld [vmem:[#allocation4 + $0x530] sm:$0xff]
    %v830 = vld [vmem:[#allocation4 + $0x538] sm:$0xff]
    %v831 = vld [vmem:[#allocation4 + $0x540] sm:$0xff]
    %v832 = vld [vmem:[#allocation4 + $0x548] sm:$0xff]
    %v833 = vld [vmem:[#allocation4 + $0x550] sm:$0xff]
    %v834 = vld [vmem:[#allocation4 + $0x558] sm:$0xff]
    %v835 = vld [vmem:[#allocation4 + $0x560] sm:$0xff]
    %v836 = vld [vmem:[#allocation4 + $0x568] sm:$0xff]
    %v837 = vld [vmem:[#allocation4 + $0x570] sm:$0xff]
    %v838 = vld [vmem:[#allocation4 + $0x578] sm:$0xff]
    %v839 = vld [vmem:[#allocation4 + $0x580] sm:$0xff]
    %v840 = vld [vmem:[#allocation4 + $0x588] sm:$0xff]
    %v841 = vld [vmem:[#allocation4 + $0x590] sm:$0xff]
    %v842 = vld [vmem:[#allocation4 + $0x598] sm:$0xff]
    %v843 = vld [vmem:[#allocation4 + $0x5a0] sm:$0xff]
    %v844 = vld [vmem:[#allocation4 + $0x5a8] sm:$0xff]
    %v845 = vld [vmem:[#allocation4 + $0x5b0] sm:$0xff]
    %v846 = vld [vmem:[#allocation4 + $0x5b8] sm:$0xff]
    %v847 = vld [vmem:[#allocation4 + $0x5c0] sm:$0xff]
    %v848 = vld [vmem:[#allocation4 + $0x5c8] sm:$0xff]
    %v849 = vld [vmem:[#allocation4 + $0x5d0] sm:$0xff]
    %v850 = vld [vmem:[#allocation4 + $0x5d8] sm:$0xff]
    %v851 = vld [vmem:[#allocation4 + $0x5e0] sm:$0xff]
    %v852 = vld [vmem:[#allocation4 + $0x5e8] sm:$0xff]
    %v853 = vld [vmem:[#allocation4 + $0x5f0] sm:$0xff]
    %v854 = vld [vmem:[#allocation4 + $0x5f8] sm:$0xff]
    %v855 = vld [vmem:[#allocation4 + $0x600] sm:$0xff]
    %v856 = vld [vmem:[#allocation4 + $0x608] sm:$0xff]
    %v857 = vld [vmem:[#allocation4 + $0x610] sm:$0xff]
    %v858 = vld [vmem:[#allocation4 + $0x618] sm:$0xff]
    %v859 = vld [vmem:[#allocation4 + $0x620] sm:$0xff]
    %v860 = vld [vmem:[#allocation4 + $0x628] sm:$0xff]
    %v861 = vld [vmem:[#allocation4 + $0x630] sm:$0xff]
    %v862 = vld [vmem:[#allocation4 + $0x638] sm:$0xff]
    %v863 = vld [vmem:[#allocation4 + $0x640] sm:$0xff]
    %v864 = vld [vmem:[#allocation4 + $0x648] sm:$0xff]
    %v865 = vld [vmem:[#allocation4 + $0x650] sm:$0xff]
    %v866 = vld [vmem:[#allocation4 + $0x658] sm:$0xff]
    %v867 = vld [vmem:[#allocation4 + $0x660] sm:$0xff]
    %v868 = vld [vmem:[#allocation4 + $0x668] sm:$0xff]
    %v869 = vld [vmem:[#allocation4 + $0x670] sm:$0xff]
    %v870 = vld [vmem:[#allocation4 + $0x678] sm:$0xff]
    %v871 = vld [vmem:[#allocation4 + $0x680] sm:$0xff]
    %v872 = vld [vmem:[#allocation4 + $0x688] sm:$0xff]
    %v873 = vld [vmem:[#allocation4 + $0x690] sm:$0xff]
    %v874 = vld [vmem:[#allocation4 + $0x698] sm:$0xff]
    %v875 = vld [vmem:[#allocation4 + $0x6a0] sm:$0xff]
    %v876 = vld [vmem:[#allocation4 + $0x6a8] sm:$0xff]
    %v877 = vld [vmem:[#allocation4 + $0x6b0] sm:$0xff]
    %v878 = vld [vmem:[#allocation4 + $0x6b8] sm:$0xff]
    %v879 = vld [vmem:[#allocation4 + $0x6c0] sm:$0xff]
    %v880 = vld [vmem:[#allocation4 + $0x6c8] sm:$0xff]
    %v881 = vld [vmem:[#allocation4 + $0x6d0] sm:$0xff]
    %v882 = vld [vmem:[#allocation4 + $0x6d8] sm:$0xff]
    %v883 = vld [vmem:[#allocation4 + $0x6e0] sm:$0xff]
    %v884 = vld [vmem:[#allocation4 + $0x6e8] sm:$0xff]
    %v885 = vld [vmem:[#allocation4 + $0x6f0] sm:$0xff]
    %v886 = vld [vmem:[#allocation4 + $0x6f8] sm:$0xff]
    %v887 = vld [vmem:[#allocation4 + $0x700] sm:$0xff]
    %v888 = vld [vmem:[#allocation4 + $0x708] sm:$0xff]
    %v889 = vld [vmem:[#allocation4 + $0x710] sm:$0xff]
    %v890 = vld [vmem:[#allocation4 + $0x718] sm:$0xff]
    %v891 = vld [vmem:[#allocation4 + $0x720] sm:$0xff]
    %v892 = vld [vmem:[#allocation4 + $0x728] sm:$0xff]
    %v893 = vld [vmem:[#allocation4 + $0x730] sm:$0xff]
    %v894 = vld [vmem:[#allocation4 + $0x738] sm:$0xff]
    %v895 = vld [vmem:[#allocation4 + $0x740] sm:$0xff]
    %v896 = vld [vmem:[#allocation4 + $0x748] sm:$0xff]
    %v897 = vld [vmem:[#allocation4 + $0x750] sm:$0xff]
    %v898 = vld [vmem:[#allocation4 + $0x758] sm:$0xff]
    %v899 = vld [vmem:[#allocation4 + $0x760] sm:$0xff]
    %v900 = vld [vmem:[#allocation4 + $0x768] sm:$0xff]
    %v901 = vld [vmem:[#allocation4 + $0x770] sm:$0xff]
    %v902 = vld [vmem:[#allocation4 + $0x778] sm:$0xff]
    %v903 = vld [vmem:[#allocation4 + $0x780] sm:$0xff]
    %v904 = vld [vmem:[#allocation4 + $0x788] sm:$0xff]
    %v905 = vld [vmem:[#allocation4 + $0x790] sm:$0xff]
    %v906 = vld [vmem:[#allocation4 + $0x798] sm:$0xff]
    %v907 = vld [vmem:[#allocation4 + $0x7a0] sm:$0xff]
    %v908 = vld [vmem:[#allocation4 + $0x7a8] sm:$0xff]
    %v909 = vld [vmem:[#allocation4 + $0x7b0] sm:$0xff]
    %v910 = vld [vmem:[#allocation4 + $0x7b8] sm:$0xff]
    %v911 = vld [vmem:[#allocation4 + $0x7c0] sm:$0xff]
    %v912 = vld [vmem:[#allocation4 + $0x7c8] sm:$0xff]
    %v913 = vld [vmem:[#allocation4 + $0x7d0] sm:$0xff]
    %v914 = vld [vmem:[#allocation4 + $0x7d8] sm:$0xff]
    %v915 = vld [vmem:[#allocation4 + $0x7e0] sm:$0xff]
    %v916 = vld [vmem:[#allocation4 + $0x7e8] sm:$0xff]
    %v917 = vld [vmem:[#allocation4 + $0x7f0] sm:$0xff]
    %v918 = vld [vmem:[#allocation4 + $0x7f8] sm:$0xff]
    %v919 = vld [vmem:[#allocation4 + $0x800] sm:$0xff]
    %v920 = vld [vmem:[#allocation4 + $0x808] sm:$0xff]
    %v921 = vld [vmem:[#allocation4 + $0x810] sm:$0xff]
    %v922 = vld [vmem:[#allocation4 + $0x818] sm:$0xff]
    %v923 = vld [vmem:[#allocation4 + $0x820] sm:$0xff]
    %v924 = vld [vmem:[#allocation4 + $0x828] sm:$0xff]
    %v925 = vld [vmem:[#allocation4 + $0x830] sm:$0xff]
    %v926 = vld [vmem:[#allocation4 + $0x838] sm:$0xff]
    %v927 = vld [vmem:[#allocation4 + $0x840] sm:$0xff]
    %v928 = vld [vmem:[#allocation4 + $0x848] sm:$0xff]
    %v929 = vld [vmem:[#allocation4 + $0x850] sm:$0xff]
    %v930 = vld [vmem:[#allocation4 + $0x858] sm:$0xff]
    %v931 = vld [vmem:[#allocation4 + $0x860] sm:$0xff]
    %v932 = vld [vmem:[#allocation4 + $0x868] sm:$0xff]
    %v933 = vld [vmem:[#allocation4 + $0x870] sm:$0xff]
    %v934 = vld [vmem:[#allocation4 + $0x878] sm:$0xff]
    %v935 = vld [vmem:[#allocation4 + $0x880] sm:$0xff]
    %v936 = vld [vmem:[#allocation4 + $0x888] sm:$0xff]
    %v937 = vld [vmem:[#allocation4 + $0x890] sm:$0xff]
    %v938 = vld [vmem:[#allocation4 + $0x898] sm:$0xff]
    %v939 = vld [vmem:[#allocation4 + $0x8a0] sm:$0xff]
    %v940 = vld [vmem:[#allocation4 + $0x8a8] sm:$0xff]
    %v941 = vld [vmem:[#allocation4 + $0x8b0] sm:$0xff]
    %v942 = vld [vmem:[#allocation4 + $0x8b8] sm:$0xff]
    %v943 = vld [vmem:[#allocation4 + $0x8c0] sm:$0xff]
    %v944 = vld [vmem:[#allocation4 + $0x8c8] sm:$0xff]
    %v945 = vld [vmem:[#allocation4 + $0x8d0] sm:$0xff]
    %v946 = vld [vmem:[#allocation4 + $0x8d8] sm:$0xff]
    %v947 = vld [vmem:[#allocation4 + $0x8e0] sm:$0xff]
    %v948 = vld [vmem:[#allocation4 + $0x8e8] sm:$0xff]
    %v949 = vld [vmem:[#allocation4 + $0x8f0] sm:$0xff]
    %v950 = vld [vmem:[#allocation4 + $0x8f8] sm:$0xff]
    %v951 = vld [vmem:[#allocation4 + $0x900] sm:$0xff]
    %v952 = vld [vmem:[#allocation4 + $0x908] sm:$0xff]
    %v953 = vld [vmem:[#allocation4 + $0x910] sm:$0xff]
    %v954 = vld [vmem:[#allocation4 + $0x918] sm:$0xff]
    %v955 = vld [vmem:[#allocation4 + $0x920] sm:$0xff]
    %v956 = vld [vmem:[#allocation4 + $0x928] sm:$0xff]
    %v957 = vld [vmem:[#allocation4 + $0x930] sm:$0xff]
    %v958 = vld [vmem:[#allocation4 + $0x938] sm:$0xff]
    %v959 = vld [vmem:[#allocation4 + $0x940] sm:$0xff]
    %v960 = vld [vmem:[#allocation4 + $0x948] sm:$0xff]
    %v961 = vld [vmem:[#allocation4 + $0x950] sm:$0xff]
    %v962 = vld [vmem:[#allocation4 + $0x958] sm:$0xff]
    %v963 = vld [vmem:[#allocation4 + $0x960] sm:$0xff]
    %v964 = vld [vmem:[#allocation4 + $0x968] sm:$0xff]
    %v965 = vld [vmem:[#allocation4 + $0x970] sm:$0xff]
    %v966 = vld [vmem:[#allocation4 + $0x978] sm:$0xff]
    %v967 = vld [vmem:[#allocation4 + $0x980] sm:$0xff]
    %v968 = vld [vmem:[#allocation4 + $0x988] sm:$0xff]
    %v969 = vld [vmem:[#allocation4 + $0x990] sm:$0xff]
    %v970 = vld [vmem:[#allocation4 + $0x998] sm:$0xff]
    %v971 = vld [vmem:[#allocation4 + $0x9a0] sm:$0xff]
    %v972 = vld [vmem:[#allocation4 + $0x9a8] sm:$0xff]
    %v973 = vld [vmem:[#allocation4 + $0x9b0] sm:$0xff]
    %v974 = vld [vmem:[#allocation4 + $0x9b8] sm:$0xff]
    %v975 = vld [vmem:[#allocation4 + $0x9c0] sm:$0xff]
    %v976 = vld [vmem:[#allocation4 + $0x9c8] sm:$0xff]
    %v977 = vld [vmem:[#allocation4 + $0x9d0] sm:$0xff]
    %v978 = vld [vmem:[#allocation4 + $0x9d8] sm:$0xff]
    %v979 = vld [vmem:[#allocation4 + $0x9e0] sm:$0xff]
    %v980 = vld [vmem:[#allocation4 + $0x9e8] sm:$0xff]
    %v981 = vld [vmem:[#allocation4 + $0x9f0] sm:$0xff]
    %v982 = vld [vmem:[#allocation4 + $0x9f8] sm:$0xff]
    %v983 = vld [vmem:[#allocation4 + $0xa00] sm:$0xff]
    %v984 = vld [vmem:[#allocation4 + $0xa08] sm:$0xff]
    %v985 = vld [vmem:[#allocation4 + $0xa10] sm:$0xff]
    %v986 = vld [vmem:[#allocation4 + $0xa18] sm:$0xff]
    %v987 = vld [vmem:[#allocation4 + $0xa20] sm:$0xff]
    %v988 = vld [vmem:[#allocation4 + $0xa28] sm:$0xff]
    %v989 = vld [vmem:[#allocation4 + $0xa30] sm:$0xff]
    %v990 = vld [vmem:[#allocation4 + $0xa38] sm:$0xff]
    %v991 = vld [vmem:[#allocation4 + $0xa40] sm:$0xff]
    %v992 = vld [vmem:[#allocation4 + $0xa48] sm:$0xff]
    %v993 = vld [vmem:[#allocation4 + $0xa50] sm:$0xff]
    %v994 = vld [vmem:[#allocation4 + $0xa58] sm:$0xff]
    %v995 = vld [vmem:[#allocation4 + $0xa60] sm:$0xff]
    %v996 = vld [vmem:[#allocation4 + $0xa68] sm:$0xff]
    %v997 = vld [vmem:[#allocation4 + $0xa70] sm:$0xff]
    %v998 = vld [vmem:[#allocation4 + $0xa78] sm:$0xff]
    %v999 = vld [vmem:[#allocation4 + $0xa80] sm:$0xff]
    %v1000 = vld [vmem:[#allocation4 + $0xa88] sm:$0xff]
    %v1001 = vld [vmem:[#allocation4 + $0xa90] sm:$0xff]
    %v1002 = vld [vmem:[#allocation4 + $0xa98] sm:$0xff]
    %v1003 = vld [vmem:[#allocation4 + $0xaa0] sm:$0xff]
    %v1004 = vld [vmem:[#allocation4 + $0xaa8] sm:$0xff]
    %v1005 = vld [vmem:[#allocation4 + $0xab0] sm:$0xff]
    %v1006 = vld [vmem:[#allocation4 + $0xab8] sm:$0xff]
    %v1007 = vld [vmem:[#allocation4 + $0xac0] sm:$0xff]
    %v1008 = vld [vmem:[#allocation4 + $0xac8] sm:$0xff]
    %v1009 = vld [vmem:[#allocation4 + $0xad0] sm:$0xff]
    %v1010 = vld [vmem:[#allocation4 + $0xad8] sm:$0xff]
    %v1011 = vld [vmem:[#allocation4 + $0xae0] sm:$0xff]
    %v1012 = vld [vmem:[#allocation4 + $0xae8] sm:$0xff]
    %v1013 = vld [vmem:[#allocation4 + $0xaf0] sm:$0xff]
    %v1014 = vld [vmem:[#allocation4 + $0xaf8] sm:$0xff]
    %v1015 = vld [vmem:[#allocation4 + $0xb00] sm:$0xff]
    %v1016 = vld [vmem:[#allocation4 + $0xb08] sm:$0xff]
    %v1017 = vld [vmem:[#allocation4 + $0xb10] sm:$0xff]
    %v1018 = vld [vmem:[#allocation4 + $0xb18] sm:$0xff]
    %v1019 = vld [vmem:[#allocation4 + $0xb20] sm:$0xff]
    %v1020 = vld [vmem:[#allocation4 + $0xb28] sm:$0xff]
    %v1021 = vld [vmem:[#allocation4 + $0xb30] sm:$0xff]
    %v1022 = vld [vmem:[#allocation4 + $0xb38] sm:$0xff]
    %v1023 = vld [vmem:[#allocation4 + $0xb40] sm:$0xff]
    %v1024 = vld [vmem:[#allocation4 + $0xb48] sm:$0xff]
    %v1025 = vld [vmem:[#allocation4 + $0xb50] sm:$0xff]
    %v1026 = vld [vmem:[#allocation4 + $0xb58] sm:$0xff]
    %v1027 = vld [vmem:[#allocation4 + $0xb60] sm:$0xff]
    %v1028 = vld [vmem:[#allocation4 + $0xb68] sm:$0xff]
    %v1029 = vld [vmem:[#allocation4 + $0xb70] sm:$0xff]
    %v1030 = vld [vmem:[#allocation4 + $0xb78] sm:$0xff]
    %v1031 = vld [vmem:[#allocation4 + $0xb80] sm:$0xff]
    %v1032 = vld [vmem:[#allocation4 + $0xb88] sm:$0xff]
    %v1033 = vld [vmem:[#allocation4 + $0xb90] sm:$0xff]
    %v1034 = vld [vmem:[#allocation4 + $0xb98] sm:$0xff]
    %v1035 = vld [vmem:[#allocation4 + $0xba0] sm:$0xff]
    %v1036 = vld [vmem:[#allocation4 + $0xba8] sm:$0xff]
    %v1037 = vld [vmem:[#allocation4 + $0xbb0] sm:$0xff]
    %v1038 = vld [vmem:[#allocation4 + $0xbb8] sm:$0xff]
    %v1039 = vld [vmem:[#allocation4 + $0xbc0] sm:$0xff]
    %v1040 = vld [vmem:[#allocation4 + $0xbc8] sm:$0xff]
    %v1041 = vld [vmem:[#allocation4 + $0xbd0] sm:$0xff]
    %v1042 = vld [vmem:[#allocation4 + $0xbd8] sm:$0xff]
    %v1043 = vld [vmem:[#allocation4 + $0xbe0] sm:$0xff]
    %v1044 = vld [vmem:[#allocation4 + $0xbe8] sm:$0xff]
    %v1045 = vld [vmem:[#allocation4 + $0xbf0] sm:$0xff]
    %v1046 = vld [vmem:[#allocation4 + $0xbf8] sm:$0xff]
    %v1047 = vld [vmem:[#allocation4 + $0xc00] sm:$0xff]
    %v1048 = vld [vmem:[#allocation4 + $0xc08] sm:$0xff]
    %v1049 = vld [vmem:[#allocation4 + $0xc10] sm:$0xff]
    %v1050 = vld [vmem:[#allocation4 + $0xc18] sm:$0xff]
    %v1051 = vld [vmem:[#allocation4 + $0xc20] sm:$0xff]
    %v1052 = vld [vmem:[#allocation4 + $0xc28] sm:$0xff]
    %v1053 = vld [vmem:[#allocation4 + $0xc30] sm:$0xff]
    %v1054 = vld [vmem:[#allocation4 + $0xc38] sm:$0xff]
    %v1055 = vld [vmem:[#allocation4 + $0xc40] sm:$0xff]
    %v1056 = vld [vmem:[#allocation4 + $0xc48] sm:$0xff]
    %v1057 = vld [vmem:[#allocation4 + $0xc50] sm:$0xff]
    %v1058 = vld [vmem:[#allocation4 + $0xc58] sm:$0xff]
    %v1059 = vld [vmem:[#allocation4 + $0xc60] sm:$0xff]
    %v1060 = vld [vmem:[#allocation4 + $0xc68] sm:$0xff]
    %v1061 = vld [vmem:[#allocation4 + $0xc70] sm:$0xff]
    %v1062 = vld [vmem:[#allocation4 + $0xc78] sm:$0xff]
    %v1063 = vld [vmem:[#allocation4 + $0xc80] sm:$0xff]
    %v1064 = vld [vmem:[#allocation4 + $0xc88] sm:$0xff]
    %v1065 = vld [vmem:[#allocation4 + $0xc90] sm:$0xff]
    %v1066 = vld [vmem:[#allocation4 + $0xc98] sm:$0xff]
    %v1067 = vld [vmem:[#allocation4 + $0xca0] sm:$0xff]
    %v1068 = vld [vmem:[#allocation4 + $0xca8] sm:$0xff]
    %v1069 = vld [vmem:[#allocation4 + $0xcb0] sm:$0xff]
    %v1070 = vld [vmem:[#allocation4 + $0xcb8] sm:$0xff]
    %v1071 = vld [vmem:[#allocation4 + $0xcc0] sm:$0xff]
    %v1072 = vld [vmem:[#allocation4 + $0xcc8] sm:$0xff]
    %v1073 = vld [vmem:[#allocation4 + $0xcd0] sm:$0xff]
    %v1074 = vld [vmem:[#allocation4 + $0xcd8] sm:$0xff]
    %v1075 = vld [vmem:[#allocation4 + $0xce0] sm:$0xff]
    %v1076 = vld [vmem:[#allocation4 + $0xce8] sm:$0xff]
    %v1077 = vld [vmem:[#allocation4 + $0xcf0] sm:$0xff]
    %v1078 = vld [vmem:[#allocation4 + $0xcf8] sm:$0xff]
    %v1079 = vld [vmem:[#allocation4 + $0xd00] sm:$0xff]
    %v1080 = vld [vmem:[#allocation4 + $0xd08] sm:$0xff]
    %v1081 = vld [vmem:[#allocation4 + $0xd10] sm:$0xff]
    %v1082 = vld [vmem:[#allocation4 + $0xd18] sm:$0xff]
    %v1083 = vld [vmem:[#allocation4 + $0xd20] sm:$0xff]
    %v1084 = vld [vmem:[#allocation4 + $0xd28] sm:$0xff]
    %v1085 = vld [vmem:[#allocation4 + $0xd30] sm:$0xff]
    %v1086 = vld [vmem:[#allocation4 + $0xd38] sm:$0xff]
    %v1087 = vld [vmem:[#allocation4 + $0xd40] sm:$0xff]
    %v1088 = vld [vmem:[#allocation4 + $0xd48] sm:$0xff]
    %v1089 = vld [vmem:[#allocation4 + $0xd50] sm:$0xff]
    %v1090 = vld [vmem:[#allocation4 + $0xd58] sm:$0xff]
    %v1091 = vld [vmem:[#allocation4 + $0xd60] sm:$0xff]
    %v1092 = vld [vmem:[#allocation4 + $0xd68] sm:$0xff]
    %v1093 = vld [vmem:[#allocation4 + $0xd70] sm:$0xff]
    %v1094 = vld [vmem:[#allocation4 + $0xd78] sm:$0xff]
    %v1095 = vld [vmem:[#allocation4 + $0xd80] sm:$0xff]
    %v1096 = vld [vmem:[#allocation4 + $0xd88] sm:$0xff]
    %v1097 = vld [vmem:[#allocation4 + $0xd90] sm:$0xff]
    %v1098 = vld [vmem:[#allocation4 + $0xd98] sm:$0xff]
    %v1099 = vld [vmem:[#allocation4 + $0xda0] sm:$0xff]
    %v1100 = vld [vmem:[#allocation4 + $0xda8] sm:$0xff]
    %v1101 = vld [vmem:[#allocation4 + $0xdb0] sm:$0xff]
    %v1102 = vld [vmem:[#allocation4 + $0xdb8] sm:$0xff]
    %v1103 = vld [vmem:[#allocation4 + $0xdc0] sm:$0xff]
    %v1104 = vld [vmem:[#allocation4 + $0xdc8] sm:$0xff]
    %v1105 = vld [vmem:[#allocation4 + $0xdd0] sm:$0xff]
    %v1106 = vld [vmem:[#allocation4 + $0xdd8] sm:$0xff]
    %v1107 = vld [vmem:[#allocation4 + $0xde0] sm:$0xff]
    %v1108 = vld [vmem:[#allocation4 + $0xde8] sm:$0xff]
    %v1109 = vld [vmem:[#allocation4 + $0xdf0] sm:$0xff]
    %v1110 = vld [vmem:[#allocation4 + $0xdf8] sm:$0xff]
    %v1111 = vld [vmem:[#allocation4 + $0xe00] sm:$0xff]
    %v1112 = vld [vmem:[#allocation4 + $0xe08] sm:$0xff]
    %v1113 = vld [vmem:[#allocation4 + $0xe10] sm:$0xff]
    %v1114 = vld [vmem:[#allocation4 + $0xe18] sm:$0xff]
    %v1115 = vld [vmem:[#allocation4 + $0xe20] sm:$0xff]
    %v1116 = vld [vmem:[#allocation4 + $0xe28] sm:$0xff]
    %v1117 = vld [vmem:[#allocation4 + $0xe30] sm:$0xff]
    %v1118 = vld [vmem:[#allocation4 + $0xe38] sm:$0xff]
    %v1119 = vld [vmem:[#allocation4 + $0xe40] sm:$0xff]
    %v1120 = vld [vmem:[#allocation4 + $0xe48] sm:$0xff]
    %v1121 = vld [vmem:[#allocation4 + $0xe50] sm:$0xff]
    %v1122 = vld [vmem:[#allocation4 + $0xe58] sm:$0xff]
    %v1123 = vld [vmem:[#allocation4 + $0xe60] sm:$0xff]
    %v1124 = vld [vmem:[#allocation4 + $0xe68] sm:$0xff]
    %v1125 = vld [vmem:[#allocation4 + $0xe70] sm:$0xff]
    %v1126 = vld [vmem:[#allocation4 + $0xe78] sm:$0xff]
    %v1127 = vld [vmem:[#allocation4 + $0xe80] sm:$0xff]
    %v1128 = vld [vmem:[#allocation4 + $0xe88] sm:$0xff]
    %v1129 = vld [vmem:[#allocation4 + $0xe90] sm:$0xff]
    %v1130 = vld [vmem:[#allocation4 + $0xe98] sm:$0xff]
    %v1131 = vld [vmem:[#allocation4 + $0xea0] sm:$0xff]
    %v1132 = vld [vmem:[#allocation4 + $0xea8] sm:$0xff]
    %v1133 = vld [vmem:[#allocation4 + $0xeb0] sm:$0xff]
    %v1134 = vld [vmem:[#allocation4 + $0xeb8] sm:$0xff]
    %v1135 = vld [vmem:[#allocation4 + $0xec0] sm:$0xff]
    %v1136 = vld [vmem:[#allocation4 + $0xec8] sm:$0xff]
    %v1137 = vld [vmem:[#allocation4 + $0xed0] sm:$0xff]
    %v1138 = vld [vmem:[#allocation4 + $0xed8] sm:$0xff]
    %v1139 = vld [vmem:[#allocation4 + $0xee0] sm:$0xff]
    %v1140 = vld [vmem:[#allocation4 + $0xee8] sm:$0xff]
    %v1141 = vld [vmem:[#allocation4 + $0xef0] sm:$0xff]
    %v1142 = vld [vmem:[#allocation4 + $0xef8] sm:$0xff]
    %v1143 = vld [vmem:[#allocation4 + $0xf00] sm:$0xff]
    %v1144 = vld [vmem:[#allocation4 + $0xf08] sm:$0xff]
    %v1145 = vld [vmem:[#allocation4 + $0xf10] sm:$0xff]
    %v1146 = vld [vmem:[#allocation4 + $0xf18] sm:$0xff]
    %v1147 = vld [vmem:[#allocation4 + $0xf20] sm:$0xff]
    %v1148 = vld [vmem:[#allocation4 + $0xf28] sm:$0xff]
    %v1149 = vld [vmem:[#allocation4 + $0xf30] sm:$0xff]
    %v1150 = vld [vmem:[#allocation4 + $0xf38] sm:$0xff]
    %v1151 = vld [vmem:[#allocation4 + $0xf40] sm:$0xff]
    %v1152 = vld [vmem:[#allocation4 + $0xf48] sm:$0xff]
    %v1153 = vld [vmem:[#allocation4 + $0xf50] sm:$0xff]
    %v1154 = vld [vmem:[#allocation4 + $0xf58] sm:$0xff]
    %v1155 = vld [vmem:[#allocation4 + $0xf60] sm:$0xff]
    %v1156 = vld [vmem:[#allocation4 + $0xf68] sm:$0xff]
    %v1157 = vld [vmem:[#allocation4 + $0xf70] sm:$0xff]
    %v1158 = vld [vmem:[#allocation4 + $0xf78] sm:$0xff]
    %v1159 = vld [vmem:[#allocation4 + $0xf80] sm:$0xff]
    %v1160 = vld [vmem:[#allocation4 + $0xf88] sm:$0xff]
    %v1161 = vld [vmem:[#allocation4 + $0xf90] sm:$0xff]
    %v1162 = vld [vmem:[#allocation4 + $0xf98] sm:$0xff]
    %v1163 = vld [vmem:[#allocation4 + $0xfa0] sm:$0xff]
    %v1164 = vld [vmem:[#allocation4 + $0xfa8] sm:$0xff]
    %v1165 = vld [vmem:[#allocation4 + $0xfb0] sm:$0xff]
    %v1166 = vld [vmem:[#allocation4 + $0xfb8] sm:$0xff]
    %v1167 = vld [vmem:[#allocation4 + $0xfc0] sm:$0xff]
    %v1168 = vld [vmem:[#allocation4 + $0xfc8] sm:$0xff]
    %v1169 = vld [vmem:[#allocation4 + $0xfd0] sm:$0xff]
    %v1170 = vld [vmem:[#allocation4 + $0xfd8] sm:$0xff]
    %v1171 = vld [vmem:[#allocation4 + $0xfe0] sm:$0xff]
    %v1172 = vld [vmem:[#allocation4 + $0xfe8] sm:$0xff]
    %v1173 = vld [vmem:[#allocation4 + $0xff0] sm:$0xff]
    %v1174 = vld [vmem:[#allocation4 + $0xff8] sm:$0xff]
    %v1176 = vlaneseq
    %v1177 = vshrl.u32 %v1176, 7
    %v1178 = vsub.s32 0, %v1177
    %v1179 = vrot.slane %v79, %v1178
    %v1180 = vlaneseq
    %v1181 = vshrl.u32 %v1180, 7
    %v1182 = vsub.s32 1, %v1181
    %v1183 = vrot.slane %v79, %v1182
    %v1184 = vlaneseq
    %v1185 = vshrl.u32 %v1184, 7
    %v1186 = vsub.s32 2, %v1185
    %v1187 = vrot.slane %v79, %v1186
    %v1188 = vlaneseq
    %v1189 = vshrl.u32 %v1188, 7
    %v1190 = vsub.s32 3, %v1189
    %v1191 = vrot.slane %v79, %v1190
    %v1708 = vunpack.c.l.b16 %v663
    %v1709 = vunpack.c.h.b16 %v663
    %v1710 = vunpack.c.l.b16 %v664
    %v1711 = vunpack.c.h.b16 %v664
    %v1712 = vunpack.c.l.b16 %v665
    %v1713 = vunpack.c.h.b16 %v665
    %v1714 = vunpack.c.l.b16 %v666
    %v1715 = vunpack.c.h.b16 %v666
    %v1716 = vunpack.c.l.b16 %v667
    %v1717 = vunpack.c.h.b16 %v667
    %v1718 = vunpack.c.l.b16 %v668
    %v1719 = vunpack.c.h.b16 %v668
    %v1720 = vunpack.c.l.b16 %v669
    %v1721 = vunpack.c.h.b16 %v669
    %v1722 = vunpack.c.l.b16 %v670
    %v1723 = vunpack.c.h.b16 %v670
    %v1724 = vunpack.c.l.b16 %v671
    %v1725 = vunpack.c.h.b16 %v671
    %v1726 = vunpack.c.l.b16 %v672
    %v1727 = vunpack.c.h.b16 %v672
    %v1728 = vunpack.c.l.b16 %v673
    %v1729 = vunpack.c.h.b16 %v673
    %v1730 = vunpack.c.l.b16 %v674
    %v1731 = vunpack.c.h.b16 %v674
    %v1732 = vunpack.c.l.b16 %v675
    %v1733 = vunpack.c.h.b16 %v675
    %v1734 = vunpack.c.l.b16 %v676
    %v1735 = vunpack.c.h.b16 %v676
    %v1736 = vunpack.c.l.b16 %v677
    %v1737 = vunpack.c.h.b16 %v677
    %v1738 = vunpack.c.l.b16 %v678
    %v1739 = vunpack.c.h.b16 %v678
    %v1740 = vunpack.c.l.b16 %v679
    %v1741 = vunpack.c.h.b16 %v679
    %v1742 = vunpack.c.l.b16 %v680
    %v1743 = vunpack.c.h.b16 %v680
    %v1744 = vunpack.c.l.b16 %v681
    %v1745 = vunpack.c.h.b16 %v681
    %v1746 = vunpack.c.l.b16 %v682
    %v1747 = vunpack.c.h.b16 %v682
    %v1748 = vunpack.c.l.b16 %v683
    %v1749 = vunpack.c.h.b16 %v683
    %v1750 = vunpack.c.l.b16 %v684
    %v1751 = vunpack.c.h.b16 %v684
    %v1752 = vunpack.c.l.b16 %v685
    %v1753 = vunpack.c.h.b16 %v685
    %v1754 = vunpack.c.l.b16 %v686
    %v1755 = vunpack.c.h.b16 %v686
    %v1756 = vunpack.c.l.b16 %v687
    %v1757 = vunpack.c.h.b16 %v687
    %v1758 = vunpack.c.l.b16 %v688
    %v1759 = vunpack.c.h.b16 %v688
    %v1760 = vunpack.c.l.b16 %v689
    %v1761 = vunpack.c.h.b16 %v689
    %v1762 = vunpack.c.l.b16 %v690
    %v1763 = vunpack.c.h.b16 %v690
    %v1764 = vunpack.c.l.b16 %v691
    %v1765 = vunpack.c.h.b16 %v691
    %v1766 = vunpack.c.l.b16 %v692
    %v1767 = vunpack.c.h.b16 %v692
    %v1768 = vunpack.c.l.b16 %v693
    %v1769 = vunpack.c.h.b16 %v693
    %v1770 = vunpack.c.l.b16 %v694
    %v1771 = vunpack.c.h.b16 %v694
    %v1772 = vunpack.c.l.b16 %v695
    %v1773 = vunpack.c.h.b16 %v695
    %v1774 = vunpack.c.l.b16 %v696
    %v1775 = vunpack.c.h.b16 %v696
    %v1776 = vunpack.c.l.b16 %v697
    %v1777 = vunpack.c.h.b16 %v697
    %v1778 = vunpack.c.l.b16 %v698
    %v1779 = vunpack.c.h.b16 %v698
    %v1780 = vunpack.c.l.b16 %v699
    %v1781 = vunpack.c.h.b16 %v699
    %v1782 = vunpack.c.l.b16 %v700
    %v1783 = vunpack.c.h.b16 %v700
    %v1784 = vunpack.c.l.b16 %v701
    %v1785 = vunpack.c.h.b16 %v701
    %v1786 = vunpack.c.l.b16 %v702
    %v1787 = vunpack.c.h.b16 %v702
    %v1788 = vunpack.c.l.b16 %v703
    %v1789 = vunpack.c.h.b16 %v703
    %v1790 = vunpack.c.l.b16 %v704
    %v1791 = vunpack.c.h.b16 %v704
    %v1792 = vunpack.c.l.b16 %v705
    %v1793 = vunpack.c.h.b16 %v705
    %v1794 = vunpack.c.l.b16 %v706
    %v1795 = vunpack.c.h.b16 %v706
    %v1796 = vunpack.c.l.b16 %v707
    %v1797 = vunpack.c.h.b16 %v707
    %v1798 = vunpack.c.l.b16 %v708
    %v1799 = vunpack.c.h.b16 %v708
    %v1800 = vunpack.c.l.b16 %v709
    %v1801 = vunpack.c.h.b16 %v709
    %v1802 = vunpack.c.l.b16 %v710
    %v1803 = vunpack.c.h.b16 %v710
    %v1804 = vunpack.c.l.b16 %v711
    %v1805 = vunpack.c.h.b16 %v711
    %v1806 = vunpack.c.l.b16 %v712
    %v1807 = vunpack.c.h.b16 %v712
    %v1808 = vunpack.c.l.b16 %v713
    %v1809 = vunpack.c.h.b16 %v713
    %v1810 = vunpack.c.l.b16 %v714
    %v1811 = vunpack.c.h.b16 %v714
    %v1812 = vunpack.c.l.b16 %v715
    %v1813 = vunpack.c.h.b16 %v715
    %v1814 = vunpack.c.l.b16 %v716
    %v1815 = vunpack.c.h.b16 %v716
    %v1816 = vunpack.c.l.b16 %v717
    %v1817 = vunpack.c.h.b16 %v717
    %v1818 = vunpack.c.l.b16 %v718
    %v1819 = vunpack.c.h.b16 %v718
    %v1820 = vunpack.c.l.b16 %v719
    %v1821 = vunpack.c.h.b16 %v719
    %v1822 = vunpack.c.l.b16 %v720
    %v1823 = vunpack.c.h.b16 %v720
    %v1824 = vunpack.c.l.b16 %v721
    %v1825 = vunpack.c.h.b16 %v721
    %v1826 = vunpack.c.l.b16 %v722
    %v1827 = vunpack.c.h.b16 %v722
    %v1828 = vunpack.c.l.b16 %v723
    %v1829 = vunpack.c.h.b16 %v723
    %v1830 = vunpack.c.l.b16 %v724
    %v1831 = vunpack.c.h.b16 %v724
    %v1832 = vunpack.c.l.b16 %v725
    %v1833 = vunpack.c.h.b16 %v725
    %v1834 = vunpack.c.l.b16 %v726
    %v1835 = vunpack.c.h.b16 %v726
    %v1836 = vunpack.c.l.b16 %v727
    %v1837 = vunpack.c.h.b16 %v727
    %v1838 = vunpack.c.l.b16 %v728
    %v1839 = vunpack.c.h.b16 %v728
    %v1840 = vunpack.c.l.b16 %v729
    %v1841 = vunpack.c.h.b16 %v729
    %v1842 = vunpack.c.l.b16 %v730
    %v1843 = vunpack.c.h.b16 %v730
    %v1844 = vunpack.c.l.b16 %v731
    %v1845 = vunpack.c.h.b16 %v731
    %v1846 = vunpack.c.l.b16 %v732
    %v1847 = vunpack.c.h.b16 %v732
    %v1848 = vunpack.c.l.b16 %v733
    %v1849 = vunpack.c.h.b16 %v733
    %v1850 = vunpack.c.l.b16 %v734
    %v1851 = vunpack.c.h.b16 %v734
    %v1852 = vunpack.c.l.b16 %v735
    %v1853 = vunpack.c.h.b16 %v735
    %v1854 = vunpack.c.l.b16 %v736
    %v1855 = vunpack.c.h.b16 %v736
    %v1856 = vunpack.c.l.b16 %v737
    %v1857 = vunpack.c.h.b16 %v737
    %v1858 = vunpack.c.l.b16 %v738
    %v1859 = vunpack.c.h.b16 %v738
    %v1860 = vunpack.c.l.b16 %v739
    %v1861 = vunpack.c.h.b16 %v739
    %v1862 = vunpack.c.l.b16 %v740
    %v1863 = vunpack.c.h.b16 %v740
    %v1864 = vunpack.c.l.b16 %v741
    %v1865 = vunpack.c.h.b16 %v741
    %v1866 = vunpack.c.l.b16 %v742
    %v1867 = vunpack.c.h.b16 %v742
    %v1868 = vunpack.c.l.b16 %v743
    %v1869 = vunpack.c.h.b16 %v743
    %v1870 = vunpack.c.l.b16 %v744
    %v1871 = vunpack.c.h.b16 %v744
    %v1872 = vunpack.c.l.b16 %v745
    %v1873 = vunpack.c.h.b16 %v745
    %v1874 = vunpack.c.l.b16 %v746
    %v1875 = vunpack.c.h.b16 %v746
    %v1876 = vunpack.c.l.b16 %v747
    %v1877 = vunpack.c.h.b16 %v747
    %v1878 = vunpack.c.l.b16 %v748
    %v1879 = vunpack.c.h.b16 %v748
    %v1880 = vunpack.c.l.b16 %v749
    %v1881 = vunpack.c.h.b16 %v749
    %v1882 = vunpack.c.l.b16 %v750
    %v1883 = vunpack.c.h.b16 %v750
    %v1884 = vunpack.c.l.b16 %v751
    %v1885 = vunpack.c.h.b16 %v751
    %v1886 = vunpack.c.l.b16 %v752
    %v1887 = vunpack.c.h.b16 %v752
    %v1888 = vunpack.c.l.b16 %v753
    %v1889 = vunpack.c.h.b16 %v753
    %v1890 = vunpack.c.l.b16 %v754
    %v1891 = vunpack.c.h.b16 %v754
    %v1892 = vunpack.c.l.b16 %v755
    %v1893 = vunpack.c.h.b16 %v755
    %v1894 = vunpack.c.l.b16 %v756
    %v1895 = vunpack.c.h.b16 %v756
    %v1896 = vunpack.c.l.b16 %v757
    %v1897 = vunpack.c.h.b16 %v757
    %v1898 = vunpack.c.l.b16 %v758
    %v1899 = vunpack.c.h.b16 %v758
    %v1900 = vunpack.c.l.b16 %v759
    %v1901 = vunpack.c.h.b16 %v759
    %v1902 = vunpack.c.l.b16 %v760
    %v1903 = vunpack.c.h.b16 %v760
    %v1904 = vunpack.c.l.b16 %v761
    %v1905 = vunpack.c.h.b16 %v761
    %v1906 = vunpack.c.l.b16 %v762
    %v1907 = vunpack.c.h.b16 %v762
    %v1908 = vunpack.c.l.b16 %v763
    %v1909 = vunpack.c.h.b16 %v763
    %v1910 = vunpack.c.l.b16 %v764
    %v1911 = vunpack.c.h.b16 %v764
    %v1912 = vunpack.c.l.b16 %v765
    %v1913 = vunpack.c.h.b16 %v765
    %v1914 = vunpack.c.l.b16 %v766
    %v1915 = vunpack.c.h.b16 %v766
    %v1916 = vunpack.c.l.b16 %v767
    %v1917 = vunpack.c.h.b16 %v767
    %v1918 = vunpack.c.l.b16 %v768
    %v1919 = vunpack.c.h.b16 %v768
    %v1920 = vunpack.c.l.b16 %v769
    %v1921 = vunpack.c.h.b16 %v769
    %v1922 = vunpack.c.l.b16 %v770
    %v1923 = vunpack.c.h.b16 %v770
    %v1924 = vunpack.c.l.b16 %v771
    %v1925 = vunpack.c.h.b16 %v771
    %v1926 = vunpack.c.l.b16 %v772
    %v1927 = vunpack.c.h.b16 %v772
    %v1928 = vunpack.c.l.b16 %v773
    %v1929 = vunpack.c.h.b16 %v773
    %v1930 = vunpack.c.l.b16 %v774
    %v1931 = vunpack.c.h.b16 %v774
    %v1932 = vunpack.c.l.b16 %v775
    %v1933 = vunpack.c.h.b16 %v775
    %v1934 = vunpack.c.l.b16 %v776
    %v1935 = vunpack.c.h.b16 %v776
    %v1936 = vunpack.c.l.b16 %v777
    %v1937 = vunpack.c.h.b16 %v777
    %v1938 = vunpack.c.l.b16 %v778
    %v1939 = vunpack.c.h.b16 %v778
    %v1940 = vunpack.c.l.b16 %v779
    %v1941 = vunpack.c.h.b16 %v779
    %v1942 = vunpack.c.l.b16 %v780
    %v1943 = vunpack.c.h.b16 %v780
    %v1944 = vunpack.c.l.b16 %v781
    %v1945 = vunpack.c.h.b16 %v781
    %v1946 = vunpack.c.l.b16 %v782
    %v1947 = vunpack.c.h.b16 %v782
    %v1948 = vunpack.c.l.b16 %v783
    %v1949 = vunpack.c.h.b16 %v783
    %v1950 = vunpack.c.l.b16 %v784
    %v1951 = vunpack.c.h.b16 %v784
    %v1952 = vunpack.c.l.b16 %v785
    %v1953 = vunpack.c.h.b16 %v785
    %v1954 = vunpack.c.l.b16 %v786
    %v1955 = vunpack.c.h.b16 %v786
    %v1956 = vunpack.c.l.b16 %v787
    %v1957 = vunpack.c.h.b16 %v787
    %v1958 = vunpack.c.l.b16 %v788
    %v1959 = vunpack.c.h.b16 %v788
    %v1960 = vunpack.c.l.b16 %v789
    %v1961 = vunpack.c.h.b16 %v789
    %v1962 = vunpack.c.l.b16 %v790
    %v1963 = vunpack.c.h.b16 %v790
    %v1964 = vunpack.c.l.b16 %v791
    %v1965 = vunpack.c.h.b16 %v791
    %v1966 = vunpack.c.l.b16 %v792
    %v1967 = vunpack.c.h.b16 %v792
    %v1968 = vunpack.c.l.b16 %v793
    %v1969 = vunpack.c.h.b16 %v793
    %v1970 = vunpack.c.l.b16 %v794
    %v1971 = vunpack.c.h.b16 %v794
    %v1972 = vunpack.c.l.b16 %v795
    %v1973 = vunpack.c.h.b16 %v795
    %v1974 = vunpack.c.l.b16 %v796
    %v1975 = vunpack.c.h.b16 %v796
    %v1976 = vunpack.c.l.b16 %v797
    %v1977 = vunpack.c.h.b16 %v797
    %v1978 = vunpack.c.l.b16 %v798
    %v1979 = vunpack.c.h.b16 %v798
    %v1980 = vunpack.c.l.b16 %v799
    %v1981 = vunpack.c.h.b16 %v799
    %v1982 = vunpack.c.l.b16 %v800
    %v1983 = vunpack.c.h.b16 %v800
    %v1984 = vunpack.c.l.b16 %v801
    %v1985 = vunpack.c.h.b16 %v801
    %v1986 = vunpack.c.l.b16 %v802
    %v1987 = vunpack.c.h.b16 %v802
    %v1988 = vunpack.c.l.b16 %v803
    %v1989 = vunpack.c.h.b16 %v803
    %v1990 = vunpack.c.l.b16 %v804
    %v1991 = vunpack.c.h.b16 %v804
    %v1992 = vunpack.c.l.b16 %v805
    %v1993 = vunpack.c.h.b16 %v805
    %v1994 = vunpack.c.l.b16 %v806
    %v1995 = vunpack.c.h.b16 %v806
    %v1996 = vunpack.c.l.b16 %v807
    %v1997 = vunpack.c.h.b16 %v807
    %v1998 = vunpack.c.l.b16 %v808
    %v1999 = vunpack.c.h.b16 %v808
    %v2000 = vunpack.c.l.b16 %v809
    %v2001 = vunpack.c.h.b16 %v809
    %v2002 = vunpack.c.l.b16 %v810
    %v2003 = vunpack.c.h.b16 %v810
    %v2004 = vunpack.c.l.b16 %v811
    %v2005 = vunpack.c.h.b16 %v811
    %v2006 = vunpack.c.l.b16 %v812
    %v2007 = vunpack.c.h.b16 %v812
    %v2008 = vunpack.c.l.b16 %v813
    %v2009 = vunpack.c.h.b16 %v813
    %v2010 = vunpack.c.l.b16 %v814
    %v2011 = vunpack.c.h.b16 %v814
    %v2012 = vunpack.c.l.b16 %v815
    %v2013 = vunpack.c.h.b16 %v815
    %v2014 = vunpack.c.l.b16 %v816
    %v2015 = vunpack.c.h.b16 %v816
    %v2016 = vunpack.c.l.b16 %v817
    %v2017 = vunpack.c.h.b16 %v817
    %v2018 = vunpack.c.l.b16 %v818
    %v2019 = vunpack.c.h.b16 %v818
    %v2020 = vunpack.c.l.b16 %v819
    %v2021 = vunpack.c.h.b16 %v819
    %v2022 = vunpack.c.l.b16 %v820
    %v2023 = vunpack.c.h.b16 %v820
    %v2024 = vunpack.c.l.b16 %v821
    %v2025 = vunpack.c.h.b16 %v821
    %v2026 = vunpack.c.l.b16 %v822
    %v2027 = vunpack.c.h.b16 %v822
    %v2028 = vunpack.c.l.b16 %v823
    %v2029 = vunpack.c.h.b16 %v823
    %v2030 = vunpack.c.l.b16 %v824
    %v2031 = vunpack.c.h.b16 %v824
    %v2032 = vunpack.c.l.b16 %v825
    %v2033 = vunpack.c.h.b16 %v825
    %v2034 = vunpack.c.l.b16 %v826
    %v2035 = vunpack.c.h.b16 %v826
    %v2036 = vunpack.c.l.b16 %v827
    %v2037 = vunpack.c.h.b16 %v827
    %v2038 = vunpack.c.l.b16 %v828
    %v2039 = vunpack.c.h.b16 %v828
    %v2040 = vunpack.c.l.b16 %v829
    %v2041 = vunpack.c.h.b16 %v829
    %v2042 = vunpack.c.l.b16 %v830
    %v2043 = vunpack.c.h.b16 %v830
    %v2044 = vunpack.c.l.b16 %v831
    %v2045 = vunpack.c.h.b16 %v831
    %v2046 = vunpack.c.l.b16 %v832
    %v2047 = vunpack.c.h.b16 %v832
    %v2048 = vunpack.c.l.b16 %v833
    %v2049 = vunpack.c.h.b16 %v833
    %v2050 = vunpack.c.l.b16 %v834
    %v2051 = vunpack.c.h.b16 %v834
    %v2052 = vunpack.c.l.b16 %v835
    %v2053 = vunpack.c.h.b16 %v835
    %v2054 = vunpack.c.l.b16 %v836
    %v2055 = vunpack.c.h.b16 %v836
    %v2056 = vunpack.c.l.b16 %v837
    %v2057 = vunpack.c.h.b16 %v837
    %v2058 = vunpack.c.l.b16 %v838
    %v2059 = vunpack.c.h.b16 %v838
    %v2060 = vunpack.c.l.b16 %v839
    %v2061 = vunpack.c.h.b16 %v839
    %v2062 = vunpack.c.l.b16 %v840
    %v2063 = vunpack.c.h.b16 %v840
    %v2064 = vunpack.c.l.b16 %v841
    %v2065 = vunpack.c.h.b16 %v841
    %v2066 = vunpack.c.l.b16 %v842
    %v2067 = vunpack.c.h.b16 %v842
    %v2068 = vunpack.c.l.b16 %v843
    %v2069 = vunpack.c.h.b16 %v843
    %v2070 = vunpack.c.l.b16 %v844
    %v2071 = vunpack.c.h.b16 %v844
    %v2072 = vunpack.c.l.b16 %v845
    %v2073 = vunpack.c.h.b16 %v845
    %v2074 = vunpack.c.l.b16 %v846
    %v2075 = vunpack.c.h.b16 %v846
    %v2076 = vunpack.c.l.b16 %v847
    %v2077 = vunpack.c.h.b16 %v847
    %v2078 = vunpack.c.l.b16 %v848
    %v2079 = vunpack.c.h.b16 %v848
    %v2080 = vunpack.c.l.b16 %v849
    %v2081 = vunpack.c.h.b16 %v849
    %v2082 = vunpack.c.l.b16 %v850
    %v2083 = vunpack.c.h.b16 %v850
    %v2084 = vunpack.c.l.b16 %v851
    %v2085 = vunpack.c.h.b16 %v851
    %v2086 = vunpack.c.l.b16 %v852
    %v2087 = vunpack.c.h.b16 %v852
    %v2088 = vunpack.c.l.b16 %v853
    %v2089 = vunpack.c.h.b16 %v853
    %v2090 = vunpack.c.l.b16 %v854
    %v2091 = vunpack.c.h.b16 %v854
    %v2092 = vunpack.c.l.b16 %v855
    %v2093 = vunpack.c.h.b16 %v855
    %v2094 = vunpack.c.l.b16 %v856
    %v2095 = vunpack.c.h.b16 %v856
    %v2096 = vunpack.c.l.b16 %v857
    %v2097 = vunpack.c.h.b16 %v857
    %v2098 = vunpack.c.l.b16 %v858
    %v2099 = vunpack.c.h.b16 %v858
    %v2100 = vunpack.c.l.b16 %v859
    %v2101 = vunpack.c.h.b16 %v859
    %v2102 = vunpack.c.l.b16 %v860
    %v2103 = vunpack.c.h.b16 %v860
    %v2104 = vunpack.c.l.b16 %v861
    %v2105 = vunpack.c.h.b16 %v861
    %v2106 = vunpack.c.l.b16 %v862
    %v2107 = vunpack.c.h.b16 %v862
    %v2108 = vunpack.c.l.b16 %v863
    %v2109 = vunpack.c.h.b16 %v863
    %v2110 = vunpack.c.l.b16 %v864
    %v2111 = vunpack.c.h.b16 %v864
    %v2112 = vunpack.c.l.b16 %v865
    %v2113 = vunpack.c.h.b16 %v865
    %v2114 = vunpack.c.l.b16 %v866
    %v2115 = vunpack.c.h.b16 %v866
    %v2116 = vunpack.c.l.b16 %v867
    %v2117 = vunpack.c.h.b16 %v867
    %v2118 = vunpack.c.l.b16 %v868
    %v2119 = vunpack.c.h.b16 %v868
    %v2120 = vunpack.c.l.b16 %v869
    %v2121 = vunpack.c.h.b16 %v869
    %v2122 = vunpack.c.l.b16 %v870
    %v2123 = vunpack.c.h.b16 %v870
    %v2124 = vunpack.c.l.b16 %v871
    %v2125 = vunpack.c.h.b16 %v871
    %v2126 = vunpack.c.l.b16 %v872
    %v2127 = vunpack.c.h.b16 %v872
    %v2128 = vunpack.c.l.b16 %v873
    %v2129 = vunpack.c.h.b16 %v873
    %v2130 = vunpack.c.l.b16 %v874
    %v2131 = vunpack.c.h.b16 %v874
    %v2132 = vunpack.c.l.b16 %v875
    %v2133 = vunpack.c.h.b16 %v875
    %v2134 = vunpack.c.l.b16 %v876
    %v2135 = vunpack.c.h.b16 %v876
    %v2136 = vunpack.c.l.b16 %v877
    %v2137 = vunpack.c.h.b16 %v877
    %v2138 = vunpack.c.l.b16 %v878
    %v2139 = vunpack.c.h.b16 %v878
    %v2140 = vunpack.c.l.b16 %v879
    %v2141 = vunpack.c.h.b16 %v879
    %v2142 = vunpack.c.l.b16 %v880
    %v2143 = vunpack.c.h.b16 %v880
    %v2144 = vunpack.c.l.b16 %v881
    %v2145 = vunpack.c.h.b16 %v881
    %v2146 = vunpack.c.l.b16 %v882
    %v2147 = vunpack.c.h.b16 %v882
    %v2148 = vunpack.c.l.b16 %v883
    %v2149 = vunpack.c.h.b16 %v883
    %v2150 = vunpack.c.l.b16 %v884
    %v2151 = vunpack.c.h.b16 %v884
    %v2152 = vunpack.c.l.b16 %v885
    %v2153 = vunpack.c.h.b16 %v885
    %v2154 = vunpack.c.l.b16 %v886
    %v2155 = vunpack.c.h.b16 %v886
    %v2156 = vunpack.c.l.b16 %v887
    %v2157 = vunpack.c.h.b16 %v887
    %v2158 = vunpack.c.l.b16 %v888
    %v2159 = vunpack.c.h.b16 %v888
    %v2160 = vunpack.c.l.b16 %v889
    %v2161 = vunpack.c.h.b16 %v889
    %v2162 = vunpack.c.l.b16 %v890
    %v2163 = vunpack.c.h.b16 %v890
    %v2164 = vunpack.c.l.b16 %v891
    %v2165 = vunpack.c.h.b16 %v891
    %v2166 = vunpack.c.l.b16 %v892
    %v2167 = vunpack.c.h.b16 %v892
    %v2168 = vunpack.c.l.b16 %v893
    %v2169 = vunpack.c.h.b16 %v893
    %v2170 = vunpack.c.l.b16 %v894
    %v2171 = vunpack.c.h.b16 %v894
    %v2172 = vunpack.c.l.b16 %v895
    %v2173 = vunpack.c.h.b16 %v895
    %v2174 = vunpack.c.l.b16 %v896
    %v2175 = vunpack.c.h.b16 %v896
    %v2176 = vunpack.c.l.b16 %v897
    %v2177 = vunpack.c.h.b16 %v897
    %v2178 = vunpack.c.l.b16 %v898
    %v2179 = vunpack.c.h.b16 %v898
    %v2180 = vunpack.c.l.b16 %v899
    %v2181 = vunpack.c.h.b16 %v899
    %v2182 = vunpack.c.l.b16 %v900
    %v2183 = vunpack.c.h.b16 %v900
    %v2184 = vunpack.c.l.b16 %v901
    %v2185 = vunpack.c.h.b16 %v901
    %v2186 = vunpack.c.l.b16 %v902
    %v2187 = vunpack.c.h.b16 %v902
    %v2188 = vunpack.c.l.b16 %v903
    %v2189 = vunpack.c.h.b16 %v903
    %v2190 = vunpack.c.l.b16 %v904
    %v2191 = vunpack.c.h.b16 %v904
    %v2192 = vunpack.c.l.b16 %v905
    %v2193 = vunpack.c.h.b16 %v905
    %v2194 = vunpack.c.l.b16 %v906
    %v2195 = vunpack.c.h.b16 %v906
    %v2196 = vunpack.c.l.b16 %v907
    %v2197 = vunpack.c.h.b16 %v907
    %v2198 = vunpack.c.l.b16 %v908
    %v2199 = vunpack.c.h.b16 %v908
    %v2200 = vunpack.c.l.b16 %v909
    %v2201 = vunpack.c.h.b16 %v909
    %v2202 = vunpack.c.l.b16 %v910
    %v2203 = vunpack.c.h.b16 %v910
    %v2204 = vunpack.c.l.b16 %v911
    %v2205 = vunpack.c.h.b16 %v911
    %v2206 = vunpack.c.l.b16 %v912
    %v2207 = vunpack.c.h.b16 %v912
    %v2208 = vunpack.c.l.b16 %v913
    %v2209 = vunpack.c.h.b16 %v913
    %v2210 = vunpack.c.l.b16 %v914
    %v2211 = vunpack.c.h.b16 %v914
    %v2212 = vunpack.c.l.b16 %v915
    %v2213 = vunpack.c.h.b16 %v915
    %v2214 = vunpack.c.l.b16 %v916
    %v2215 = vunpack.c.h.b16 %v916
    %v2216 = vunpack.c.l.b16 %v917
    %v2217 = vunpack.c.h.b16 %v917
    %v2218 = vunpack.c.l.b16 %v918
    %v2219 = vunpack.c.h.b16 %v918
    %v2220 = vunpack.c.l.b16 %v919
    %v2221 = vunpack.c.h.b16 %v919
    %v2222 = vunpack.c.l.b16 %v920
    %v2223 = vunpack.c.h.b16 %v920
    %v2224 = vunpack.c.l.b16 %v921
    %v2225 = vunpack.c.h.b16 %v921
    %v2226 = vunpack.c.l.b16 %v922
    %v2227 = vunpack.c.h.b16 %v922
    %v2228 = vunpack.c.l.b16 %v923
    %v2229 = vunpack.c.h.b16 %v923
    %v2230 = vunpack.c.l.b16 %v924
    %v2231 = vunpack.c.h.b16 %v924
    %v2232 = vunpack.c.l.b16 %v925
    %v2233 = vunpack.c.h.b16 %v925
    %v2234 = vunpack.c.l.b16 %v926
    %v2235 = vunpack.c.h.b16 %v926
    %v2236 = vunpack.c.l.b16 %v927
    %v2237 = vunpack.c.h.b16 %v927
    %v2238 = vunpack.c.l.b16 %v928
    %v2239 = vunpack.c.h.b16 %v928
    %v2240 = vunpack.c.l.b16 %v929
    %v2241 = vunpack.c.h.b16 %v929
    %v2242 = vunpack.c.l.b16 %v930
    %v2243 = vunpack.c.h.b16 %v930
    %v2244 = vunpack.c.l.b16 %v931
    %v2245 = vunpack.c.h.b16 %v931
    %v2246 = vunpack.c.l.b16 %v932
    %v2247 = vunpack.c.h.b16 %v932
    %v2248 = vunpack.c.l.b16 %v933
    %v2249 = vunpack.c.h.b16 %v933
    %v2250 = vunpack.c.l.b16 %v934
    %v2251 = vunpack.c.h.b16 %v934
    %v2252 = vunpack.c.l.b16 %v935
    %v2253 = vunpack.c.h.b16 %v935
    %v2254 = vunpack.c.l.b16 %v936
    %v2255 = vunpack.c.h.b16 %v936
    %v2256 = vunpack.c.l.b16 %v937
    %v2257 = vunpack.c.h.b16 %v937
    %v2258 = vunpack.c.l.b16 %v938
    %v2259 = vunpack.c.h.b16 %v938
    %v2260 = vunpack.c.l.b16 %v939
    %v2261 = vunpack.c.h.b16 %v939
    %v2262 = vunpack.c.l.b16 %v940
    %v2263 = vunpack.c.h.b16 %v940
    %v2264 = vunpack.c.l.b16 %v941
    %v2265 = vunpack.c.h.b16 %v941
    %v2266 = vunpack.c.l.b16 %v942
    %v2267 = vunpack.c.h.b16 %v942
    %v2268 = vunpack.c.l.b16 %v943
    %v2269 = vunpack.c.h.b16 %v943
    %v2270 = vunpack.c.l.b16 %v944
    %v2271 = vunpack.c.h.b16 %v944
    %v2272 = vunpack.c.l.b16 %v945
    %v2273 = vunpack.c.h.b16 %v945
    %v2274 = vunpack.c.l.b16 %v946
    %v2275 = vunpack.c.h.b16 %v946
    %v2276 = vunpack.c.l.b16 %v947
    %v2277 = vunpack.c.h.b16 %v947
    %v2278 = vunpack.c.l.b16 %v948
    %v2279 = vunpack.c.h.b16 %v948
    %v2280 = vunpack.c.l.b16 %v949
    %v2281 = vunpack.c.h.b16 %v949
    %v2282 = vunpack.c.l.b16 %v950
    %v2283 = vunpack.c.h.b16 %v950
    %v2284 = vunpack.c.l.b16 %v951
    %v2285 = vunpack.c.h.b16 %v951
    %v2286 = vunpack.c.l.b16 %v952
    %v2287 = vunpack.c.h.b16 %v952
    %v2288 = vunpack.c.l.b16 %v953
    %v2289 = vunpack.c.h.b16 %v953
    %v2290 = vunpack.c.l.b16 %v954
    %v2291 = vunpack.c.h.b16 %v954
    %v2292 = vunpack.c.l.b16 %v955
    %v2293 = vunpack.c.h.b16 %v955
    %v2294 = vunpack.c.l.b16 %v956
    %v2295 = vunpack.c.h.b16 %v956
    %v2296 = vunpack.c.l.b16 %v957
    %v2297 = vunpack.c.h.b16 %v957
    %v2298 = vunpack.c.l.b16 %v958
    %v2299 = vunpack.c.h.b16 %v958
    %v2300 = vunpack.c.l.b16 %v959
    %v2301 = vunpack.c.h.b16 %v959
    %v2302 = vunpack.c.l.b16 %v960
    %v2303 = vunpack.c.h.b16 %v960
    %v2304 = vunpack.c.l.b16 %v961
    %v2305 = vunpack.c.h.b16 %v961
    %v2306 = vunpack.c.l.b16 %v962
    %v2307 = vunpack.c.h.b16 %v962
    %v2308 = vunpack.c.l.b16 %v963
    %v2309 = vunpack.c.h.b16 %v963
    %v2310 = vunpack.c.l.b16 %v964
    %v2311 = vunpack.c.h.b16 %v964
    %v2312 = vunpack.c.l.b16 %v965
    %v2313 = vunpack.c.h.b16 %v965
    %v2314 = vunpack.c.l.b16 %v966
    %v2315 = vunpack.c.h.b16 %v966
    %v2316 = vunpack.c.l.b16 %v967
    %v2317 = vunpack.c.h.b16 %v967
    %v2318 = vunpack.c.l.b16 %v968
    %v2319 = vunpack.c.h.b16 %v968
    %v2320 = vunpack.c.l.b16 %v969
    %v2321 = vunpack.c.h.b16 %v969
    %v2322 = vunpack.c.l.b16 %v970
    %v2323 = vunpack.c.h.b16 %v970
    %v2324 = vunpack.c.l.b16 %v971
    %v2325 = vunpack.c.h.b16 %v971
    %v2326 = vunpack.c.l.b16 %v972
    %v2327 = vunpack.c.h.b16 %v972
    %v2328 = vunpack.c.l.b16 %v973
    %v2329 = vunpack.c.h.b16 %v973
    %v2330 = vunpack.c.l.b16 %v974
    %v2331 = vunpack.c.h.b16 %v974
    %v2332 = vunpack.c.l.b16 %v975
    %v2333 = vunpack.c.h.b16 %v975
    %v2334 = vunpack.c.l.b16 %v976
    %v2335 = vunpack.c.h.b16 %v976
    %v2336 = vunpack.c.l.b16 %v977
    %v2337 = vunpack.c.h.b16 %v977
    %v2338 = vunpack.c.l.b16 %v978
    %v2339 = vunpack.c.h.b16 %v978
    %v2340 = vunpack.c.l.b16 %v979
    %v2341 = vunpack.c.h.b16 %v979
    %v2342 = vunpack.c.l.b16 %v980
    %v2343 = vunpack.c.h.b16 %v980
    %v2344 = vunpack.c.l.b16 %v981
    %v2345 = vunpack.c.h.b16 %v981
    %v2346 = vunpack.c.l.b16 %v982
    %v2347 = vunpack.c.h.b16 %v982
    %v2348 = vunpack.c.l.b16 %v983
    %v2349 = vunpack.c.h.b16 %v983
    %v2350 = vunpack.c.l.b16 %v984
    %v2351 = vunpack.c.h.b16 %v984
    %v2352 = vunpack.c.l.b16 %v985
    %v2353 = vunpack.c.h.b16 %v985
    %v2354 = vunpack.c.l.b16 %v986
    %v2355 = vunpack.c.h.b16 %v986
    %v2356 = vunpack.c.l.b16 %v987
    %v2357 = vunpack.c.h.b16 %v987
    %v2358 = vunpack.c.l.b16 %v988
    %v2359 = vunpack.c.h.b16 %v988
    %v2360 = vunpack.c.l.b16 %v989
    %v2361 = vunpack.c.h.b16 %v989
    %v2362 = vunpack.c.l.b16 %v990
    %v2363 = vunpack.c.h.b16 %v990
    %v2364 = vunpack.c.l.b16 %v991
    %v2365 = vunpack.c.h.b16 %v991
    %v2366 = vunpack.c.l.b16 %v992
    %v2367 = vunpack.c.h.b16 %v992
    %v2368 = vunpack.c.l.b16 %v993
    %v2369 = vunpack.c.h.b16 %v993
    %v2370 = vunpack.c.l.b16 %v994
    %v2371 = vunpack.c.h.b16 %v994
    %v2372 = vunpack.c.l.b16 %v995
    %v2373 = vunpack.c.h.b16 %v995
    %v2374 = vunpack.c.l.b16 %v996
    %v2375 = vunpack.c.h.b16 %v996
    %v2376 = vunpack.c.l.b16 %v997
    %v2377 = vunpack.c.h.b16 %v997
    %v2378 = vunpack.c.l.b16 %v998
    %v2379 = vunpack.c.h.b16 %v998
    %v2380 = vunpack.c.l.b16 %v999
    %v2381 = vunpack.c.h.b16 %v999
    %v2382 = vunpack.c.l.b16 %v1000
    %v2383 = vunpack.c.h.b16 %v1000
    %v2384 = vunpack.c.l.b16 %v1001
    %v2385 = vunpack.c.h.b16 %v1001
    %v2386 = vunpack.c.l.b16 %v1002
    %v2387 = vunpack.c.h.b16 %v1002
    %v2388 = vunpack.c.l.b16 %v1003
    %v2389 = vunpack.c.h.b16 %v1003
    %v2390 = vunpack.c.l.b16 %v1004
    %v2391 = vunpack.c.h.b16 %v1004
    %v2392 = vunpack.c.l.b16 %v1005
    %v2393 = vunpack.c.h.b16 %v1005
    %v2394 = vunpack.c.l.b16 %v1006
    %v2395 = vunpack.c.h.b16 %v1006
    %v2396 = vunpack.c.l.b16 %v1007
    %v2397 = vunpack.c.h.b16 %v1007
    %v2398 = vunpack.c.l.b16 %v1008
    %v2399 = vunpack.c.h.b16 %v1008
    %v2400 = vunpack.c.l.b16 %v1009
    %v2401 = vunpack.c.h.b16 %v1009
    %v2402 = vunpack.c.l.b16 %v1010
    %v2403 = vunpack.c.h.b16 %v1010
    %v2404 = vunpack.c.l.b16 %v1011
    %v2405 = vunpack.c.h.b16 %v1011
    %v2406 = vunpack.c.l.b16 %v1012
    %v2407 = vunpack.c.h.b16 %v1012
    %v2408 = vunpack.c.l.b16 %v1013
    %v2409 = vunpack.c.h.b16 %v1013
    %v2410 = vunpack.c.l.b16 %v1014
    %v2411 = vunpack.c.h.b16 %v1014
    %v2412 = vunpack.c.l.b16 %v1015
    %v2413 = vunpack.c.h.b16 %v1015
    %v2414 = vunpack.c.l.b16 %v1016
    %v2415 = vunpack.c.h.b16 %v1016
    %v2416 = vunpack.c.l.b16 %v1017
    %v2417 = vunpack.c.h.b16 %v1017
    %v2418 = vunpack.c.l.b16 %v1018
    %v2419 = vunpack.c.h.b16 %v1018
    %v2420 = vunpack.c.l.b16 %v1019
    %v2421 = vunpack.c.h.b16 %v1019
    %v2422 = vunpack.c.l.b16 %v1020
    %v2423 = vunpack.c.h.b16 %v1020
    %v2424 = vunpack.c.l.b16 %v1021
    %v2425 = vunpack.c.h.b16 %v1021
    %v2426 = vunpack.c.l.b16 %v1022
    %v2427 = vunpack.c.h.b16 %v1022
    %v2428 = vunpack.c.l.b16 %v1023
    %v2429 = vunpack.c.h.b16 %v1023
    %v2430 = vunpack.c.l.b16 %v1024
    %v2431 = vunpack.c.h.b16 %v1024
    %v2432 = vunpack.c.l.b16 %v1025
    %v2433 = vunpack.c.h.b16 %v1025
    %v2434 = vunpack.c.l.b16 %v1026
    %v2435 = vunpack.c.h.b16 %v1026
    %v2436 = vunpack.c.l.b16 %v1027
    %v2437 = vunpack.c.h.b16 %v1027
    %v2438 = vunpack.c.l.b16 %v1028
    %v2439 = vunpack.c.h.b16 %v1028
    %v2440 = vunpack.c.l.b16 %v1029
    %v2441 = vunpack.c.h.b16 %v1029
    %v2442 = vunpack.c.l.b16 %v1030
    %v2443 = vunpack.c.h.b16 %v1030
    %v2444 = vunpack.c.l.b16 %v1031
    %v2445 = vunpack.c.h.b16 %v1031
    %v2446 = vunpack.c.l.b16 %v1032
    %v2447 = vunpack.c.h.b16 %v1032
    %v2448 = vunpack.c.l.b16 %v1033
    %v2449 = vunpack.c.h.b16 %v1033
    %v2450 = vunpack.c.l.b16 %v1034
    %v2451 = vunpack.c.h.b16 %v1034
    %v2452 = vunpack.c.l.b16 %v1035
    %v2453 = vunpack.c.h.b16 %v1035
    %v2454 = vunpack.c.l.b16 %v1036
    %v2455 = vunpack.c.h.b16 %v1036
    %v2456 = vunpack.c.l.b16 %v1037
    %v2457 = vunpack.c.h.b16 %v1037
    %v2458 = vunpack.c.l.b16 %v1038
    %v2459 = vunpack.c.h.b16 %v1038
    %v2460 = vunpack.c.l.b16 %v1039
    %v2461 = vunpack.c.h.b16 %v1039
    %v2462 = vunpack.c.l.b16 %v1040
    %v2463 = vunpack.c.h.b16 %v1040
    %v2464 = vunpack.c.l.b16 %v1041
    %v2465 = vunpack.c.h.b16 %v1041
    %v2466 = vunpack.c.l.b16 %v1042
    %v2467 = vunpack.c.h.b16 %v1042
    %v2468 = vunpack.c.l.b16 %v1043
    %v2469 = vunpack.c.h.b16 %v1043
    %v2470 = vunpack.c.l.b16 %v1044
    %v2471 = vunpack.c.h.b16 %v1044
    %v2472 = vunpack.c.l.b16 %v1045
    %v2473 = vunpack.c.h.b16 %v1045
    %v2474 = vunpack.c.l.b16 %v1046
    %v2475 = vunpack.c.h.b16 %v1046
    %v2476 = vunpack.c.l.b16 %v1047
    %v2477 = vunpack.c.h.b16 %v1047
    %v2478 = vunpack.c.l.b16 %v1048
    %v2479 = vunpack.c.h.b16 %v1048
    %v2480 = vunpack.c.l.b16 %v1049
    %v2481 = vunpack.c.h.b16 %v1049
    %v2482 = vunpack.c.l.b16 %v1050
    %v2483 = vunpack.c.h.b16 %v1050
    %v2484 = vunpack.c.l.b16 %v1051
    %v2485 = vunpack.c.h.b16 %v1051
    %v2486 = vunpack.c.l.b16 %v1052
    %v2487 = vunpack.c.h.b16 %v1052
    %v2488 = vunpack.c.l.b16 %v1053
    %v2489 = vunpack.c.h.b16 %v1053
    %v2490 = vunpack.c.l.b16 %v1054
    %v2491 = vunpack.c.h.b16 %v1054
    %v2492 = vunpack.c.l.b16 %v1055
    %v2493 = vunpack.c.h.b16 %v1055
    %v2494 = vunpack.c.l.b16 %v1056
    %v2495 = vunpack.c.h.b16 %v1056
    %v2496 = vunpack.c.l.b16 %v1057
    %v2497 = vunpack.c.h.b16 %v1057
    %v2498 = vunpack.c.l.b16 %v1058
    %v2499 = vunpack.c.h.b16 %v1058
    %v2500 = vunpack.c.l.b16 %v1059
    %v2501 = vunpack.c.h.b16 %v1059
    %v2502 = vunpack.c.l.b16 %v1060
    %v2503 = vunpack.c.h.b16 %v1060
    %v2504 = vunpack.c.l.b16 %v1061
    %v2505 = vunpack.c.h.b16 %v1061
    %v2506 = vunpack.c.l.b16 %v1062
    %v2507 = vunpack.c.h.b16 %v1062
    %v2508 = vunpack.c.l.b16 %v1063
    %v2509 = vunpack.c.h.b16 %v1063
    %v2510 = vunpack.c.l.b16 %v1064
    %v2511 = vunpack.c.h.b16 %v1064
    %v2512 = vunpack.c.l.b16 %v1065
    %v2513 = vunpack.c.h.b16 %v1065
    %v2514 = vunpack.c.l.b16 %v1066
    %v2515 = vunpack.c.h.b16 %v1066
    %v2516 = vunpack.c.l.b16 %v1067
    %v2517 = vunpack.c.h.b16 %v1067
    %v2518 = vunpack.c.l.b16 %v1068
    %v2519 = vunpack.c.h.b16 %v1068
    %v2520 = vunpack.c.l.b16 %v1069
    %v2521 = vunpack.c.h.b16 %v1069
    %v2522 = vunpack.c.l.b16 %v1070
    %v2523 = vunpack.c.h.b16 %v1070
    %v2524 = vunpack.c.l.b16 %v1071
    %v2525 = vunpack.c.h.b16 %v1071
    %v2526 = vunpack.c.l.b16 %v1072
    %v2527 = vunpack.c.h.b16 %v1072
    %v2528 = vunpack.c.l.b16 %v1073
    %v2529 = vunpack.c.h.b16 %v1073
    %v2530 = vunpack.c.l.b16 %v1074
    %v2531 = vunpack.c.h.b16 %v1074
    %v2532 = vunpack.c.l.b16 %v1075
    %v2533 = vunpack.c.h.b16 %v1075
    %v2534 = vunpack.c.l.b16 %v1076
    %v2535 = vunpack.c.h.b16 %v1076
    %v2536 = vunpack.c.l.b16 %v1077
    %v2537 = vunpack.c.h.b16 %v1077
    %v2538 = vunpack.c.l.b16 %v1078
    %v2539 = vunpack.c.h.b16 %v1078
    %v2540 = vunpack.c.l.b16 %v1079
    %v2541 = vunpack.c.h.b16 %v1079
    %v2542 = vunpack.c.l.b16 %v1080
    %v2543 = vunpack.c.h.b16 %v1080
    %v2544 = vunpack.c.l.b16 %v1081
    %v2545 = vunpack.c.h.b16 %v1081
    %v2546 = vunpack.c.l.b16 %v1082
    %v2547 = vunpack.c.h.b16 %v1082
    %v2548 = vunpack.c.l.b16 %v1083
    %v2549 = vunpack.c.h.b16 %v1083
    %v2550 = vunpack.c.l.b16 %v1084
    %v2551 = vunpack.c.h.b16 %v1084
    %v2552 = vunpack.c.l.b16 %v1085
    %v2553 = vunpack.c.h.b16 %v1085
    %v2554 = vunpack.c.l.b16 %v1086
    %v2555 = vunpack.c.h.b16 %v1086
    %v2556 = vunpack.c.l.b16 %v1087
    %v2557 = vunpack.c.h.b16 %v1087
    %v2558 = vunpack.c.l.b16 %v1088
    %v2559 = vunpack.c.h.b16 %v1088
    %v2560 = vunpack.c.l.b16 %v1089
    %v2561 = vunpack.c.h.b16 %v1089
    %v2562 = vunpack.c.l.b16 %v1090
    %v2563 = vunpack.c.h.b16 %v1090
    %v2564 = vunpack.c.l.b16 %v1091
    %v2565 = vunpack.c.h.b16 %v1091
    %v2566 = vunpack.c.l.b16 %v1092
    %v2567 = vunpack.c.h.b16 %v1092
    %v2568 = vunpack.c.l.b16 %v1093
    %v2569 = vunpack.c.h.b16 %v1093
    %v2570 = vunpack.c.l.b16 %v1094
    %v2571 = vunpack.c.h.b16 %v1094
    %v2572 = vunpack.c.l.b16 %v1095
    %v2573 = vunpack.c.h.b16 %v1095
    %v2574 = vunpack.c.l.b16 %v1096
    %v2575 = vunpack.c.h.b16 %v1096
    %v2576 = vunpack.c.l.b16 %v1097
    %v2577 = vunpack.c.h.b16 %v1097
    %v2578 = vunpack.c.l.b16 %v1098
    %v2579 = vunpack.c.h.b16 %v1098
    %v2580 = vunpack.c.l.b16 %v1099
    %v2581 = vunpack.c.h.b16 %v1099
    %v2582 = vunpack.c.l.b16 %v1100
    %v2583 = vunpack.c.h.b16 %v1100
    %v2584 = vunpack.c.l.b16 %v1101
    %v2585 = vunpack.c.h.b16 %v1101
    %v2586 = vunpack.c.l.b16 %v1102
    %v2587 = vunpack.c.h.b16 %v1102
    %v2588 = vunpack.c.l.b16 %v1103
    %v2589 = vunpack.c.h.b16 %v1103
    %v2590 = vunpack.c.l.b16 %v1104
    %v2591 = vunpack.c.h.b16 %v1104
    %v2592 = vunpack.c.l.b16 %v1105
    %v2593 = vunpack.c.h.b16 %v1105
    %v2594 = vunpack.c.l.b16 %v1106
    %v2595 = vunpack.c.h.b16 %v1106
    %v2596 = vunpack.c.l.b16 %v1107
    %v2597 = vunpack.c.h.b16 %v1107
    %v2598 = vunpack.c.l.b16 %v1108
    %v2599 = vunpack.c.h.b16 %v1108
    %v2600 = vunpack.c.l.b16 %v1109
    %v2601 = vunpack.c.h.b16 %v1109
    %v2602 = vunpack.c.l.b16 %v1110
    %v2603 = vunpack.c.h.b16 %v1110
    %v2604 = vunpack.c.l.b16 %v1111
    %v2605 = vunpack.c.h.b16 %v1111
    %v2606 = vunpack.c.l.b16 %v1112
    %v2607 = vunpack.c.h.b16 %v1112
    %v2608 = vunpack.c.l.b16 %v1113
    %v2609 = vunpack.c.h.b16 %v1113
    %v2610 = vunpack.c.l.b16 %v1114
    %v2611 = vunpack.c.h.b16 %v1114
    %v2612 = vunpack.c.l.b16 %v1115
    %v2613 = vunpack.c.h.b16 %v1115
    %v2614 = vunpack.c.l.b16 %v1116
    %v2615 = vunpack.c.h.b16 %v1116
    %v2616 = vunpack.c.l.b16 %v1117
    %v2617 = vunpack.c.h.b16 %v1117
    %v2618 = vunpack.c.l.b16 %v1118
    %v2619 = vunpack.c.h.b16 %v1118
    %v2620 = vunpack.c.l.b16 %v1119
    %v2621 = vunpack.c.h.b16 %v1119
    %v2622 = vunpack.c.l.b16 %v1120
    %v2623 = vunpack.c.h.b16 %v1120
    %v2624 = vunpack.c.l.b16 %v1121
    %v2625 = vunpack.c.h.b16 %v1121
    %v2626 = vunpack.c.l.b16 %v1122
    %v2627 = vunpack.c.h.b16 %v1122
    %v2628 = vunpack.c.l.b16 %v1123
    %v2629 = vunpack.c.h.b16 %v1123
    %v2630 = vunpack.c.l.b16 %v1124
    %v2631 = vunpack.c.h.b16 %v1124
    %v2632 = vunpack.c.l.b16 %v1125
    %v2633 = vunpack.c.h.b16 %v1125
    %v2634 = vunpack.c.l.b16 %v1126
    %v2635 = vunpack.c.h.b16 %v1126
    %v2636 = vunpack.c.l.b16 %v1127
    %v2637 = vunpack.c.h.b16 %v1127
    %v2638 = vunpack.c.l.b16 %v1128
    %v2639 = vunpack.c.h.b16 %v1128
    %v2640 = vunpack.c.l.b16 %v1129
    %v2641 = vunpack.c.h.b16 %v1129
    %v2642 = vunpack.c.l.b16 %v1130
    %v2643 = vunpack.c.h.b16 %v1130
    %v2644 = vunpack.c.l.b16 %v1131
    %v2645 = vunpack.c.h.b16 %v1131
    %v2646 = vunpack.c.l.b16 %v1132
    %v2647 = vunpack.c.h.b16 %v1132
    %v2648 = vunpack.c.l.b16 %v1133
    %v2649 = vunpack.c.h.b16 %v1133
    %v2650 = vunpack.c.l.b16 %v1134
    %v2651 = vunpack.c.h.b16 %v1134
    %v2652 = vunpack.c.l.b16 %v1135
    %v2653 = vunpack.c.h.b16 %v1135
    %v2654 = vunpack.c.l.b16 %v1136
    %v2655 = vunpack.c.h.b16 %v1136
    %v2656 = vunpack.c.l.b16 %v1137
    %v2657 = vunpack.c.h.b16 %v1137
    %v2658 = vunpack.c.l.b16 %v1138
    %v2659 = vunpack.c.h.b16 %v1138
    %v2660 = vunpack.c.l.b16 %v1139
    %v2661 = vunpack.c.h.b16 %v1139
    %v2662 = vunpack.c.l.b16 %v1140
    %v2663 = vunpack.c.h.b16 %v1140
    %v2664 = vunpack.c.l.b16 %v1141
    %v2665 = vunpack.c.h.b16 %v1141
    %v2666 = vunpack.c.l.b16 %v1142
    %v2667 = vunpack.c.h.b16 %v1142
    %v2668 = vunpack.c.l.b16 %v1143
    %v2669 = vunpack.c.h.b16 %v1143
    %v2670 = vunpack.c.l.b16 %v1144
    %v2671 = vunpack.c.h.b16 %v1144
    %v2672 = vunpack.c.l.b16 %v1145
    %v2673 = vunpack.c.h.b16 %v1145
    %v2674 = vunpack.c.l.b16 %v1146
    %v2675 = vunpack.c.h.b16 %v1146
    %v2676 = vunpack.c.l.b16 %v1147
    %v2677 = vunpack.c.h.b16 %v1147
    %v2678 = vunpack.c.l.b16 %v1148
    %v2679 = vunpack.c.h.b16 %v1148
    %v2680 = vunpack.c.l.b16 %v1149
    %v2681 = vunpack.c.h.b16 %v1149
    %v2682 = vunpack.c.l.b16 %v1150
    %v2683 = vunpack.c.h.b16 %v1150
    %v2684 = vunpack.c.l.b16 %v1151
    %v2685 = vunpack.c.h.b16 %v1151
    %v2686 = vunpack.c.l.b16 %v1152
    %v2687 = vunpack.c.h.b16 %v1152
    %v2688 = vunpack.c.l.b16 %v1153
    %v2689 = vunpack.c.h.b16 %v1153
    %v2690 = vunpack.c.l.b16 %v1154
    %v2691 = vunpack.c.h.b16 %v1154
    %v2692 = vunpack.c.l.b16 %v1155
    %v2693 = vunpack.c.h.b16 %v1155
    %v2694 = vunpack.c.l.b16 %v1156
    %v2695 = vunpack.c.h.b16 %v1156
    %v2696 = vunpack.c.l.b16 %v1157
    %v2697 = vunpack.c.h.b16 %v1157
    %v2698 = vunpack.c.l.b16 %v1158
    %v2699 = vunpack.c.h.b16 %v1158
    %v2700 = vunpack.c.l.b16 %v1159
    %v2701 = vunpack.c.h.b16 %v1159
    %v2702 = vunpack.c.l.b16 %v1160
    %v2703 = vunpack.c.h.b16 %v1160
    %v2704 = vunpack.c.l.b16 %v1161
    %v2705 = vunpack.c.h.b16 %v1161
    %v2706 = vunpack.c.l.b16 %v1162
    %v2707 = vunpack.c.h.b16 %v1162
    %v2708 = vunpack.c.l.b16 %v1163
    %v2709 = vunpack.c.h.b16 %v1163
    %v2710 = vunpack.c.l.b16 %v1164
    %v2711 = vunpack.c.h.b16 %v1164
    %v2712 = vunpack.c.l.b16 %v1165
    %v2713 = vunpack.c.h.b16 %v1165
    %v2714 = vunpack.c.l.b16 %v1166
    %v2715 = vunpack.c.h.b16 %v1166
    %v2716 = vunpack.c.l.b16 %v1167
    %v2717 = vunpack.c.h.b16 %v1167
    %v2718 = vunpack.c.l.b16 %v1168
    %v2719 = vunpack.c.h.b16 %v1168
    %v2720 = vunpack.c.l.b16 %v1169
    %v2721 = vunpack.c.h.b16 %v1169
    %v2722 = vunpack.c.l.b16 %v1170
    %v2723 = vunpack.c.h.b16 %v1170
    %v2724 = vunpack.c.l.b16 %v1171
    %v2725 = vunpack.c.h.b16 %v1171
    %v2726 = vunpack.c.l.b16 %v1172
    %v2727 = vunpack.c.h.b16 %v1172
    %v2728 = vunpack.c.l.b16 %v1173
    %v2729 = vunpack.c.h.b16 %v1173
    %v2730 = vunpack.c.l.b16 %v1174
    %v2731 = vunpack.c.h.b16 %v1174
    %v2732 = vpack.c.b16 %v1712, %v1708
    %v2733 = vpack.c.b16 %v1713, %v1709
    %v2734 = vpack.c.b16 %v1714, %v1710
    %v2735 = vpack.c.b16 %v1715, %v1711
    %v2736 = vpack.c.b16 %v1720, %v1716
    %v2737 = vpack.c.b16 %v1721, %v1717
    %v2738 = vpack.c.b16 %v1722, %v1718
    %v2739 = vpack.c.b16 %v1723, %v1719
    %v2740 = vpack.c.b16 %v1728, %v1724
    %v2741 = vpack.c.b16 %v1729, %v1725
    %v2742 = vpack.c.b16 %v1730, %v1726
    %v2743 = vpack.c.b16 %v1731, %v1727
    %v2744 = vpack.c.b16 %v1736, %v1732
    %v2745 = vpack.c.b16 %v1737, %v1733
    %v2746 = vpack.c.b16 %v1738, %v1734
    %v2747 = vpack.c.b16 %v1739, %v1735
    %v2748 = vpack.c.b16 %v1744, %v1740
    %v2749 = vpack.c.b16 %v1745, %v1741
    %v2750 = vpack.c.b16 %v1746, %v1742
    %v2751 = vpack.c.b16 %v1747, %v1743
    %v2752 = vpack.c.b16 %v1752, %v1748
    %v2753 = vpack.c.b16 %v1753, %v1749
    %v2754 = vpack.c.b16 %v1754, %v1750
    %v2755 = vpack.c.b16 %v1755, %v1751
    %v2756 = vpack.c.b16 %v1760, %v1756
    %v2757 = vpack.c.b16 %v1761, %v1757
    %v2758 = vpack.c.b16 %v1762, %v1758
    %v2759 = vpack.c.b16 %v1763, %v1759
    %v2760 = vpack.c.b16 %v1768, %v1764
    %v2761 = vpack.c.b16 %v1769, %v1765
    %v2762 = vpack.c.b16 %v1770, %v1766
    %v2763 = vpack.c.b16 %v1771, %v1767
    %v2764 = vpack.c.b16 %v1776, %v1772
    %v2765 = vpack.c.b16 %v1777, %v1773
    %v2766 = vpack.c.b16 %v1778, %v1774
    %v2767 = vpack.c.b16 %v1779, %v1775
    %v2768 = vpack.c.b16 %v1784, %v1780
    %v2769 = vpack.c.b16 %v1785, %v1781
    %v2770 = vpack.c.b16 %v1786, %v1782
    %v2771 = vpack.c.b16 %v1787, %v1783
    %v2772 = vpack.c.b16 %v1792, %v1788
    %v2773 = vpack.c.b16 %v1793, %v1789
    %v2774 = vpack.c.b16 %v1794, %v1790
    %v2775 = vpack.c.b16 %v1795, %v1791
    %v2776 = vpack.c.b16 %v1800, %v1796
    %v2777 = vpack.c.b16 %v1801, %v1797
    %v2778 = vpack.c.b16 %v1802, %v1798
    %v2779 = vpack.c.b16 %v1803, %v1799
    %v2780 = vpack.c.b16 %v1808, %v1804
    %v2781 = vpack.c.b16 %v1809, %v1805
    %v2782 = vpack.c.b16 %v1810, %v1806
    %v2783 = vpack.c.b16 %v1811, %v1807
    %v2784 = vpack.c.b16 %v1816, %v1812
    %v2785 = vpack.c.b16 %v1817, %v1813
    %v2786 = vpack.c.b16 %v1818, %v1814
    %v2787 = vpack.c.b16 %v1819, %v1815
    %v2788 = vpack.c.b16 %v1824, %v1820
    %v2789 = vpack.c.b16 %v1825, %v1821
    %v2790 = vpack.c.b16 %v1826, %v1822
    %v2791 = vpack.c.b16 %v1827, %v1823
    %v2792 = vpack.c.b16 %v1832, %v1828
    %v2793 = vpack.c.b16 %v1833, %v1829
    %v2794 = vpack.c.b16 %v1834, %v1830
    %v2795 = vpack.c.b16 %v1835, %v1831
    %v2796 = vpack.c.b16 %v1840, %v1836
    %v2797 = vpack.c.b16 %v1841, %v1837
    %v2798 = vpack.c.b16 %v1842, %v1838
    %v2799 = vpack.c.b16 %v1843, %v1839
    %v2800 = vpack.c.b16 %v1848, %v1844
    %v2801 = vpack.c.b16 %v1849, %v1845
    %v2802 = vpack.c.b16 %v1850, %v1846
    %v2803 = vpack.c.b16 %v1851, %v1847
    %v2804 = vpack.c.b16 %v1856, %v1852
    %v2805 = vpack.c.b16 %v1857, %v1853
    %v2806 = vpack.c.b16 %v1858, %v1854
    %v2807 = vpack.c.b16 %v1859, %v1855
    %v2808 = vpack.c.b16 %v1864, %v1860
    %v2809 = vpack.c.b16 %v1865, %v1861
    %v2810 = vpack.c.b16 %v1866, %v1862
    %v2811 = vpack.c.b16 %v1867, %v1863
    %v2812 = vpack.c.b16 %v1872, %v1868
    %v2813 = vpack.c.b16 %v1873, %v1869
    %v2814 = vpack.c.b16 %v1874, %v1870
    %v2815 = vpack.c.b16 %v1875, %v1871
    %v2816 = vpack.c.b16 %v1880, %v1876
    %v2817 = vpack.c.b16 %v1881, %v1877
    %v2818 = vpack.c.b16 %v1882, %v1878
    %v2819 = vpack.c.b16 %v1883, %v1879
    %v2820 = vpack.c.b16 %v1888, %v1884
    %v2821 = vpack.c.b16 %v1889, %v1885
    %v2822 = vpack.c.b16 %v1890, %v1886
    %v2823 = vpack.c.b16 %v1891, %v1887
    %v2824 = vpack.c.b16 %v1896, %v1892
    %v2825 = vpack.c.b16 %v1897, %v1893
    %v2826 = vpack.c.b16 %v1898, %v1894
    %v2827 = vpack.c.b16 %v1899, %v1895
    %v2828 = vpack.c.b16 %v1904, %v1900
    %v2829 = vpack.c.b16 %v1905, %v1901
    %v2830 = vpack.c.b16 %v1906, %v1902
    %v2831 = vpack.c.b16 %v1907, %v1903
    %v2832 = vpack.c.b16 %v1912, %v1908
    %v2833 = vpack.c.b16 %v1913, %v1909
    %v2834 = vpack.c.b16 %v1914, %v1910
    %v2835 = vpack.c.b16 %v1915, %v1911
    %v2836 = vpack.c.b16 %v1920, %v1916
    %v2837 = vpack.c.b16 %v1921, %v1917
    %v2838 = vpack.c.b16 %v1922, %v1918
    %v2839 = vpack.c.b16 %v1923, %v1919
    %v2840 = vpack.c.b16 %v1928, %v1924
    %v2841 = vpack.c.b16 %v1929, %v1925
    %v2842 = vpack.c.b16 %v1930, %v1926
    %v2843 = vpack.c.b16 %v1931, %v1927
    %v2844 = vpack.c.b16 %v1936, %v1932
    %v2845 = vpack.c.b16 %v1937, %v1933
    %v2846 = vpack.c.b16 %v1938, %v1934
    %v2847 = vpack.c.b16 %v1939, %v1935
    %v2848 = vpack.c.b16 %v1944, %v1940
    %v2849 = vpack.c.b16 %v1945, %v1941
    %v2850 = vpack.c.b16 %v1946, %v1942
    %v2851 = vpack.c.b16 %v1947, %v1943
    %v2852 = vpack.c.b16 %v1952, %v1948
    %v2853 = vpack.c.b16 %v1953, %v1949
    %v2854 = vpack.c.b16 %v1954, %v1950
    %v2855 = vpack.c.b16 %v1955, %v1951
    %v2856 = vpack.c.b16 %v1960, %v1956
    %v2857 = vpack.c.b16 %v1961, %v1957
    %v2858 = vpack.c.b16 %v1962, %v1958
    %v2859 = vpack.c.b16 %v1963, %v1959
    %v2860 = vpack.c.b16 %v1968, %v1964
    %v2861 = vpack.c.b16 %v1969, %v1965
    %v2862 = vpack.c.b16 %v1970, %v1966
    %v2863 = vpack.c.b16 %v1971, %v1967
    %v2864 = vpack.c.b16 %v1976, %v1972
    %v2865 = vpack.c.b16 %v1977, %v1973
    %v2866 = vpack.c.b16 %v1978, %v1974
    %v2867 = vpack.c.b16 %v1979, %v1975
    %v2868 = vpack.c.b16 %v1984, %v1980
    %v2869 = vpack.c.b16 %v1985, %v1981
    %v2870 = vpack.c.b16 %v1986, %v1982
    %v2871 = vpack.c.b16 %v1987, %v1983
    %v2872 = vpack.c.b16 %v1992, %v1988
    %v2873 = vpack.c.b16 %v1993, %v1989
    %v2874 = vpack.c.b16 %v1994, %v1990
    %v2875 = vpack.c.b16 %v1995, %v1991
    %v2876 = vpack.c.b16 %v2000, %v1996
    %v2877 = vpack.c.b16 %v2001, %v1997
    %v2878 = vpack.c.b16 %v2002, %v1998
    %v2879 = vpack.c.b16 %v2003, %v1999
    %v2880 = vpack.c.b16 %v2008, %v2004
    %v2881 = vpack.c.b16 %v2009, %v2005
    %v2882 = vpack.c.b16 %v2010, %v2006
    %v2883 = vpack.c.b16 %v2011, %v2007
    %v2884 = vpack.c.b16 %v2016, %v2012
    %v2885 = vpack.c.b16 %v2017, %v2013
    %v2886 = vpack.c.b16 %v2018, %v2014
    %v2887 = vpack.c.b16 %v2019, %v2015
    %v2888 = vpack.c.b16 %v2024, %v2020
    %v2889 = vpack.c.b16 %v2025, %v2021
    %v2890 = vpack.c.b16 %v2026, %v2022
    %v2891 = vpack.c.b16 %v2027, %v2023
    %v2892 = vpack.c.b16 %v2032, %v2028
    %v2893 = vpack.c.b16 %v2033, %v2029
    %v2894 = vpack.c.b16 %v2034, %v2030
    %v2895 = vpack.c.b16 %v2035, %v2031
    %v2896 = vpack.c.b16 %v2040, %v2036
    %v2897 = vpack.c.b16 %v2041, %v2037
    %v2898 = vpack.c.b16 %v2042, %v2038
    %v2899 = vpack.c.b16 %v2043, %v2039
    %v2900 = vpack.c.b16 %v2048, %v2044
    %v2901 = vpack.c.b16 %v2049, %v2045
    %v2902 = vpack.c.b16 %v2050, %v2046
    %v2903 = vpack.c.b16 %v2051, %v2047
    %v2904 = vpack.c.b16 %v2056, %v2052
    %v2905 = vpack.c.b16 %v2057, %v2053
    %v2906 = vpack.c.b16 %v2058, %v2054
    %v2907 = vpack.c.b16 %v2059, %v2055
    %v2908 = vpack.c.b16 %v2064, %v2060
    %v2909 = vpack.c.b16 %v2065, %v2061
    %v2910 = vpack.c.b16 %v2066, %v2062
    %v2911 = vpack.c.b16 %v2067, %v2063
    %v2912 = vpack.c.b16 %v2072, %v2068
    %v2913 = vpack.c.b16 %v2073, %v2069
    %v2914 = vpack.c.b16 %v2074, %v2070
    %v2915 = vpack.c.b16 %v2075, %v2071
    %v2916 = vpack.c.b16 %v2080, %v2076
    %v2917 = vpack.c.b16 %v2081, %v2077
    %v2918 = vpack.c.b16 %v2082, %v2078
    %v2919 = vpack.c.b16 %v2083, %v2079
    %v2920 = vpack.c.b16 %v2088, %v2084
    %v2921 = vpack.c.b16 %v2089, %v2085
    %v2922 = vpack.c.b16 %v2090, %v2086
    %v2923 = vpack.c.b16 %v2091, %v2087
    %v2924 = vpack.c.b16 %v2096, %v2092
    %v2925 = vpack.c.b16 %v2097, %v2093
    %v2926 = vpack.c.b16 %v2098, %v2094
    %v2927 = vpack.c.b16 %v2099, %v2095
    %v2928 = vpack.c.b16 %v2104, %v2100
    %v2929 = vpack.c.b16 %v2105, %v2101
    %v2930 = vpack.c.b16 %v2106, %v2102
    %v2931 = vpack.c.b16 %v2107, %v2103
    %v2932 = vpack.c.b16 %v2112, %v2108
    %v2933 = vpack.c.b16 %v2113, %v2109
    %v2934 = vpack.c.b16 %v2114, %v2110
    %v2935 = vpack.c.b16 %v2115, %v2111
    %v2936 = vpack.c.b16 %v2120, %v2116
    %v2937 = vpack.c.b16 %v2121, %v2117
    %v2938 = vpack.c.b16 %v2122, %v2118
    %v2939 = vpack.c.b16 %v2123, %v2119
    %v2940 = vpack.c.b16 %v2128, %v2124
    %v2941 = vpack.c.b16 %v2129, %v2125
    %v2942 = vpack.c.b16 %v2130, %v2126
    %v2943 = vpack.c.b16 %v2131, %v2127
    %v2944 = vpack.c.b16 %v2136, %v2132
    %v2945 = vpack.c.b16 %v2137, %v2133
    %v2946 = vpack.c.b16 %v2138, %v2134
    %v2947 = vpack.c.b16 %v2139, %v2135
    %v2948 = vpack.c.b16 %v2144, %v2140
    %v2949 = vpack.c.b16 %v2145, %v2141
    %v2950 = vpack.c.b16 %v2146, %v2142
    %v2951 = vpack.c.b16 %v2147, %v2143
    %v2952 = vpack.c.b16 %v2152, %v2148
    %v2953 = vpack.c.b16 %v2153, %v2149
    %v2954 = vpack.c.b16 %v2154, %v2150
    %v2955 = vpack.c.b16 %v2155, %v2151
    %v2956 = vpack.c.b16 %v2160, %v2156
    %v2957 = vpack.c.b16 %v2161, %v2157
    %v2958 = vpack.c.b16 %v2162, %v2158
    %v2959 = vpack.c.b16 %v2163, %v2159
    %v2960 = vpack.c.b16 %v2168, %v2164
    %v2961 = vpack.c.b16 %v2169, %v2165
    %v2962 = vpack.c.b16 %v2170, %v2166
    %v2963 = vpack.c.b16 %v2171, %v2167
    %v2964 = vpack.c.b16 %v2176, %v2172
    %v2965 = vpack.c.b16 %v2177, %v2173
    %v2966 = vpack.c.b16 %v2178, %v2174
    %v2967 = vpack.c.b16 %v2179, %v2175
    %v2968 = vpack.c.b16 %v2184, %v2180
    %v2969 = vpack.c.b16 %v2185, %v2181
    %v2970 = vpack.c.b16 %v2186, %v2182
    %v2971 = vpack.c.b16 %v2187, %v2183
    %v2972 = vpack.c.b16 %v2192, %v2188
    %v2973 = vpack.c.b16 %v2193, %v2189
    %v2974 = vpack.c.b16 %v2194, %v2190
    %v2975 = vpack.c.b16 %v2195, %v2191
    %v2976 = vpack.c.b16 %v2200, %v2196
    %v2977 = vpack.c.b16 %v2201, %v2197
    %v2978 = vpack.c.b16 %v2202, %v2198
    %v2979 = vpack.c.b16 %v2203, %v2199
    %v2980 = vpack.c.b16 %v2208, %v2204
    %v2981 = vpack.c.b16 %v2209, %v2205
    %v2982 = vpack.c.b16 %v2210, %v2206
    %v2983 = vpack.c.b16 %v2211, %v2207
    %v2984 = vpack.c.b16 %v2216, %v2212
    %v2985 = vpack.c.b16 %v2217, %v2213
    %v2986 = vpack.c.b16 %v2218, %v2214
    %v2987 = vpack.c.b16 %v2219, %v2215
    %v2988 = vpack.c.b16 %v2224, %v2220
    %v2989 = vpack.c.b16 %v2225, %v2221
    %v2990 = vpack.c.b16 %v2226, %v2222
    %v2991 = vpack.c.b16 %v2227, %v2223
    %v2992 = vpack.c.b16 %v2232, %v2228
    %v2993 = vpack.c.b16 %v2233, %v2229
    %v2994 = vpack.c.b16 %v2234, %v2230
    %v2995 = vpack.c.b16 %v2235, %v2231
    %v2996 = vpack.c.b16 %v2240, %v2236
    %v2997 = vpack.c.b16 %v2241, %v2237
    %v2998 = vpack.c.b16 %v2242, %v2238
    %v2999 = vpack.c.b16 %v2243, %v2239
    %v3000 = vpack.c.b16 %v2248, %v2244
    %v3001 = vpack.c.b16 %v2249, %v2245
    %v3002 = vpack.c.b16 %v2250, %v2246
    %v3003 = vpack.c.b16 %v2251, %v2247
    %v3004 = vpack.c.b16 %v2256, %v2252
    %v3005 = vpack.c.b16 %v2257, %v2253
    %v3006 = vpack.c.b16 %v2258, %v2254
    %v3007 = vpack.c.b16 %v2259, %v2255
    %v3008 = vpack.c.b16 %v2264, %v2260
    %v3009 = vpack.c.b16 %v2265, %v2261
    %v3010 = vpack.c.b16 %v2266, %v2262
    %v3011 = vpack.c.b16 %v2267, %v2263
    %v3012 = vpack.c.b16 %v2272, %v2268
    %v3013 = vpack.c.b16 %v2273, %v2269
    %v3014 = vpack.c.b16 %v2274, %v2270
    %v3015 = vpack.c.b16 %v2275, %v2271
    %v3016 = vpack.c.b16 %v2280, %v2276
    %v3017 = vpack.c.b16 %v2281, %v2277
    %v3018 = vpack.c.b16 %v2282, %v2278
    %v3019 = vpack.c.b16 %v2283, %v2279
    %v3020 = vpack.c.b16 %v2288, %v2284
    %v3021 = vpack.c.b16 %v2289, %v2285
    %v3022 = vpack.c.b16 %v2290, %v2286
    %v3023 = vpack.c.b16 %v2291, %v2287
    %v3024 = vpack.c.b16 %v2296, %v2292
    %v3025 = vpack.c.b16 %v2297, %v2293
    %v3026 = vpack.c.b16 %v2298, %v2294
    %v3027 = vpack.c.b16 %v2299, %v2295
    %v3028 = vpack.c.b16 %v2304, %v2300
    %v3029 = vpack.c.b16 %v2305, %v2301
    %v3030 = vpack.c.b16 %v2306, %v2302
    %v3031 = vpack.c.b16 %v2307, %v2303
    %v3032 = vpack.c.b16 %v2312, %v2308
    %v3033 = vpack.c.b16 %v2313, %v2309
    %v3034 = vpack.c.b16 %v2314, %v2310
    %v3035 = vpack.c.b16 %v2315, %v2311
    %v3036 = vpack.c.b16 %v2320, %v2316
    %v3037 = vpack.c.b16 %v2321, %v2317
    %v3038 = vpack.c.b16 %v2322, %v2318
    %v3039 = vpack.c.b16 %v2323, %v2319
    %v3040 = vpack.c.b16 %v2328, %v2324
    %v3041 = vpack.c.b16 %v2329, %v2325
    %v3042 = vpack.c.b16 %v2330, %v2326
    %v3043 = vpack.c.b16 %v2331, %v2327
    %v3044 = vpack.c.b16 %v2336, %v2332
    %v3045 = vpack.c.b16 %v2337, %v2333
    %v3046 = vpack.c.b16 %v2338, %v2334
    %v3047 = vpack.c.b16 %v2339, %v2335
    %v3048 = vpack.c.b16 %v2344, %v2340
    %v3049 = vpack.c.b16 %v2345, %v2341
    %v3050 = vpack.c.b16 %v2346, %v2342
    %v3051 = vpack.c.b16 %v2347, %v2343
    %v3052 = vpack.c.b16 %v2352, %v2348
    %v3053 = vpack.c.b16 %v2353, %v2349
    %v3054 = vpack.c.b16 %v2354, %v2350
    %v3055 = vpack.c.b16 %v2355, %v2351
    %v3056 = vpack.c.b16 %v2360, %v2356
    %v3057 = vpack.c.b16 %v2361, %v2357
    %v3058 = vpack.c.b16 %v2362, %v2358
    %v3059 = vpack.c.b16 %v2363, %v2359
    %v3060 = vpack.c.b16 %v2368, %v2364
    %v3061 = vpack.c.b16 %v2369, %v2365
    %v3062 = vpack.c.b16 %v2370, %v2366
    %v3063 = vpack.c.b16 %v2371, %v2367
    %v3064 = vpack.c.b16 %v2376, %v2372
    %v3065 = vpack.c.b16 %v2377, %v2373
    %v3066 = vpack.c.b16 %v2378, %v2374
    %v3067 = vpack.c.b16 %v2379, %v2375
    %v3068 = vpack.c.b16 %v2384, %v2380
    %v3069 = vpack.c.b16 %v2385, %v2381
    %v3070 = vpack.c.b16 %v2386, %v2382
    %v3071 = vpack.c.b16 %v2387, %v2383
    %v3072 = vpack.c.b16 %v2392, %v2388
    %v3073 = vpack.c.b16 %v2393, %v2389
    %v3074 = vpack.c.b16 %v2394, %v2390
    %v3075 = vpack.c.b16 %v2395, %v2391
    %v3076 = vpack.c.b16 %v2400, %v2396
    %v3077 = vpack.c.b16 %v2401, %v2397
    %v3078 = vpack.c.b16 %v2402, %v2398
    %v3079 = vpack.c.b16 %v2403, %v2399
    %v3080 = vpack.c.b16 %v2408, %v2404
    %v3081 = vpack.c.b16 %v2409, %v2405
    %v3082 = vpack.c.b16 %v2410, %v2406
    %v3083 = vpack.c.b16 %v2411, %v2407
    %v3084 = vpack.c.b16 %v2416, %v2412
    %v3085 = vpack.c.b16 %v2417, %v2413
    %v3086 = vpack.c.b16 %v2418, %v2414
    %v3087 = vpack.c.b16 %v2419, %v2415
    %v3088 = vpack.c.b16 %v2424, %v2420
    %v3089 = vpack.c.b16 %v2425, %v2421
    %v3090 = vpack.c.b16 %v2426, %v2422
    %v3091 = vpack.c.b16 %v2427, %v2423
    %v3092 = vpack.c.b16 %v2432, %v2428
    %v3093 = vpack.c.b16 %v2433, %v2429
    %v3094 = vpack.c.b16 %v2434, %v2430
    %v3095 = vpack.c.b16 %v2435, %v2431
    %v3096 = vpack.c.b16 %v2440, %v2436
    %v3097 = vpack.c.b16 %v2441, %v2437
    %v3098 = vpack.c.b16 %v2442, %v2438
    %v3099 = vpack.c.b16 %v2443, %v2439
    %v3100 = vpack.c.b16 %v2448, %v2444
    %v3101 = vpack.c.b16 %v2449, %v2445
    %v3102 = vpack.c.b16 %v2450, %v2446
    %v3103 = vpack.c.b16 %v2451, %v2447
    %v3104 = vpack.c.b16 %v2456, %v2452
    %v3105 = vpack.c.b16 %v2457, %v2453
    %v3106 = vpack.c.b16 %v2458, %v2454
    %v3107 = vpack.c.b16 %v2459, %v2455
    %v3108 = vpack.c.b16 %v2464, %v2460
    %v3109 = vpack.c.b16 %v2465, %v2461
    %v3110 = vpack.c.b16 %v2466, %v2462
    %v3111 = vpack.c.b16 %v2467, %v2463
    %v3112 = vpack.c.b16 %v2472, %v2468
    %v3113 = vpack.c.b16 %v2473, %v2469
    %v3114 = vpack.c.b16 %v2474, %v2470
    %v3115 = vpack.c.b16 %v2475, %v2471
    %v3116 = vpack.c.b16 %v2480, %v2476
    %v3117 = vpack.c.b16 %v2481, %v2477
    %v3118 = vpack.c.b16 %v2482, %v2478
    %v3119 = vpack.c.b16 %v2483, %v2479
    %v3120 = vpack.c.b16 %v2488, %v2484
    %v3121 = vpack.c.b16 %v2489, %v2485
    %v3122 = vpack.c.b16 %v2490, %v2486
    %v3123 = vpack.c.b16 %v2491, %v2487
    %v3124 = vpack.c.b16 %v2496, %v2492
    %v3125 = vpack.c.b16 %v2497, %v2493
    %v3126 = vpack.c.b16 %v2498, %v2494
    %v3127 = vpack.c.b16 %v2499, %v2495
    %v3128 = vpack.c.b16 %v2504, %v2500
    %v3129 = vpack.c.b16 %v2505, %v2501
    %v3130 = vpack.c.b16 %v2506, %v2502
    %v3131 = vpack.c.b16 %v2507, %v2503
    %v3132 = vpack.c.b16 %v2512, %v2508
    %v3133 = vpack.c.b16 %v2513, %v2509
    %v3134 = vpack.c.b16 %v2514, %v2510
    %v3135 = vpack.c.b16 %v2515, %v2511
    %v3136 = vpack.c.b16 %v2520, %v2516
    %v3137 = vpack.c.b16 %v2521, %v2517
    %v3138 = vpack.c.b16 %v2522, %v2518
    %v3139 = vpack.c.b16 %v2523, %v2519
    %v3140 = vpack.c.b16 %v2528, %v2524
    %v3141 = vpack.c.b16 %v2529, %v2525
    %v3142 = vpack.c.b16 %v2530, %v2526
    %v3143 = vpack.c.b16 %v2531, %v2527
    %v3144 = vpack.c.b16 %v2536, %v2532
    %v3145 = vpack.c.b16 %v2537, %v2533
    %v3146 = vpack.c.b16 %v2538, %v2534
    %v3147 = vpack.c.b16 %v2539, %v2535
    %v3148 = vpack.c.b16 %v2544, %v2540
    %v3149 = vpack.c.b16 %v2545, %v2541
    %v3150 = vpack.c.b16 %v2546, %v2542
    %v3151 = vpack.c.b16 %v2547, %v2543
    %v3152 = vpack.c.b16 %v2552, %v2548
    %v3153 = vpack.c.b16 %v2553, %v2549
    %v3154 = vpack.c.b16 %v2554, %v2550
    %v3155 = vpack.c.b16 %v2555, %v2551
    %v3156 = vpack.c.b16 %v2560, %v2556
    %v3157 = vpack.c.b16 %v2561, %v2557
    %v3158 = vpack.c.b16 %v2562, %v2558
    %v3159 = vpack.c.b16 %v2563, %v2559
    %v3160 = vpack.c.b16 %v2568, %v2564
    %v3161 = vpack.c.b16 %v2569, %v2565
    %v3162 = vpack.c.b16 %v2570, %v2566
    %v3163 = vpack.c.b16 %v2571, %v2567
    %v3164 = vpack.c.b16 %v2576, %v2572
    %v3165 = vpack.c.b16 %v2577, %v2573
    %v3166 = vpack.c.b16 %v2578, %v2574
    %v3167 = vpack.c.b16 %v2579, %v2575
    %v3168 = vpack.c.b16 %v2584, %v2580
    %v3169 = vpack.c.b16 %v2585, %v2581
    %v3170 = vpack.c.b16 %v2586, %v2582
    %v3171 = vpack.c.b16 %v2587, %v2583
    %v3172 = vpack.c.b16 %v2592, %v2588
    %v3173 = vpack.c.b16 %v2593, %v2589
    %v3174 = vpack.c.b16 %v2594, %v2590
    %v3175 = vpack.c.b16 %v2595, %v2591
    %v3176 = vpack.c.b16 %v2600, %v2596
    %v3177 = vpack.c.b16 %v2601, %v2597
    %v3178 = vpack.c.b16 %v2602, %v2598
    %v3179 = vpack.c.b16 %v2603, %v2599
    %v3180 = vpack.c.b16 %v2608, %v2604
    %v3181 = vpack.c.b16 %v2609, %v2605
    %v3182 = vpack.c.b16 %v2610, %v2606
    %v3183 = vpack.c.b16 %v2611, %v2607
    %v3184 = vpack.c.b16 %v2616, %v2612
    %v3185 = vpack.c.b16 %v2617, %v2613
    %v3186 = vpack.c.b16 %v2618, %v2614
    %v3187 = vpack.c.b16 %v2619, %v2615
    %v3188 = vpack.c.b16 %v2624, %v2620
    %v3189 = vpack.c.b16 %v2625, %v2621
    %v3190 = vpack.c.b16 %v2626, %v2622
    %v3191 = vpack.c.b16 %v2627, %v2623
    %v3192 = vpack.c.b16 %v2632, %v2628
    %v3193 = vpack.c.b16 %v2633, %v2629
    %v3194 = vpack.c.b16 %v2634, %v2630
    %v3195 = vpack.c.b16 %v2635, %v2631
    %v3196 = vpack.c.b16 %v2640, %v2636
    %v3197 = vpack.c.b16 %v2641, %v2637
    %v3198 = vpack.c.b16 %v2642, %v2638
    %v3199 = vpack.c.b16 %v2643, %v2639
    %v3200 = vpack.c.b16 %v2648, %v2644
    %v3201 = vpack.c.b16 %v2649, %v2645
    %v3202 = vpack.c.b16 %v2650, %v2646
    %v3203 = vpack.c.b16 %v2651, %v2647
    %v3204 = vpack.c.b16 %v2656, %v2652
    %v3205 = vpack.c.b16 %v2657, %v2653
    %v3206 = vpack.c.b16 %v2658, %v2654
    %v3207 = vpack.c.b16 %v2659, %v2655
    %v3208 = vpack.c.b16 %v2664, %v2660
    %v3209 = vpack.c.b16 %v2665, %v2661
    %v3210 = vpack.c.b16 %v2666, %v2662
    %v3211 = vpack.c.b16 %v2667, %v2663
    %v3212 = vpack.c.b16 %v2672, %v2668
    %v3213 = vpack.c.b16 %v2673, %v2669
    %v3214 = vpack.c.b16 %v2674, %v2670
    %v3215 = vpack.c.b16 %v2675, %v2671
    %v3216 = vpack.c.b16 %v2680, %v2676
    %v3217 = vpack.c.b16 %v2681, %v2677
    %v3218 = vpack.c.b16 %v2682, %v2678
    %v3219 = vpack.c.b16 %v2683, %v2679
    %v3220 = vpack.c.b16 %v2688, %v2684
    %v3221 = vpack.c.b16 %v2689, %v2685
    %v3222 = vpack.c.b16 %v2690, %v2686
    %v3223 = vpack.c.b16 %v2691, %v2687
    %v3224 = vpack.c.b16 %v2696, %v2692
    %v3225 = vpack.c.b16 %v2697, %v2693
    %v3226 = vpack.c.b16 %v2698, %v2694
    %v3227 = vpack.c.b16 %v2699, %v2695
    %v3228 = vpack.c.b16 %v2704, %v2700
    %v3229 = vpack.c.b16 %v2705, %v2701
    %v3230 = vpack.c.b16 %v2706, %v2702
    %v3231 = vpack.c.b16 %v2707, %v2703
    %v3232 = vpack.c.b16 %v2712, %v2708
    %v3233 = vpack.c.b16 %v2713, %v2709
    %v3234 = vpack.c.b16 %v2714, %v2710
    %v3235 = vpack.c.b16 %v2715, %v2711
    %v3236 = vpack.c.b16 %v2720, %v2716
    %v3237 = vpack.c.b16 %v2721, %v2717
    %v3238 = vpack.c.b16 %v2722, %v2718
    %v3239 = vpack.c.b16 %v2723, %v2719
    %v3240 = vpack.c.b16 %v2728, %v2724
    %v3241 = vpack.c.b16 %v2729, %v2725
    %v3242 = vpack.c.b16 %v2730, %v2726
    %v3243 = vpack.c.b16 %v2731, %v2727
    %3756 = vmatprep.subr.bf16.mxu0 %v2733
    %3757 = vmatpush1.bf16.msra.mxu0 %v2732
    %3758 = vmatprep.subr.bf16.mxu0 %v2737
    %3759 = vmatpush1.bf16.msra.mxu0 %v2736
    %3760 = vmatprep.subr.bf16.mxu0 %v2741
    %3761 = vmatpush1.bf16.msra.mxu0 %v2740
    %3762 = vmatprep.subr.bf16.mxu0 %v2745
    %3763 = vmatpush1.bf16.msra.mxu0 %v2744
    %3764 = vmatprep.subr.bf16.mxu0 %v2749
    %3765 = vmatpush1.bf16.msra.mxu0 %v2748
    %3766 = vmatprep.subr.bf16.mxu0 %v2753
    %3767 = vmatpush1.bf16.msra.mxu0 %v2752
    %3768 = vmatprep.subr.bf16.mxu0 %v2757
    %3769 = vmatpush1.bf16.msra.mxu0 %v2756
    %3770 = vmatprep.subr.bf16.mxu0 %v2761
    %3771 = vmatpush1.bf16.msra.mxu0 %v2760
    %3772 = vmatprep.subr.bf16.mxu0 %v2765
    %3773 = vmatpush1.bf16.msra.mxu0 %v2764
    %3774 = vmatprep.subr.bf16.mxu0 %v2769
    %3775 = vmatpush1.bf16.msra.mxu0 %v2768
    %3776 = vmatprep.subr.bf16.mxu0 %v2773
    %3777 = vmatpush1.bf16.msra.mxu0 %v2772
    %3778 = vmatprep.subr.bf16.mxu0 %v2777
    %3779 = vmatpush1.bf16.msra.mxu0 %v2776
    %3780 = vmatprep.subr.bf16.mxu0 %v2781
    %3781 = vmatpush1.bf16.msra.mxu0 %v2780
    %3782 = vmatprep.subr.bf16.mxu0 %v2785
    %3783 = vmatpush1.bf16.msra.mxu0 %v2784
    %3784 = vmatprep.subr.bf16.mxu0 %v2789
    %3785 = vmatpush1.bf16.msra.mxu0 %v2788
    %3786 = vmatprep.subr.bf16.mxu0 %v2793
    %3787 = vmatpush1.bf16.msra.mxu0 %v2792
    %3788 = vmatprep.mubr.bf16.mxu0 %v648
    %3789 = vmatmul.mubr.bf16.gmra.mrb[0].mxu0 %v647
    %v3790 = vpop.f32.mrb[0].mxu0
    %v3791 = vadd.f32 %v1179, %v3790
    %v3792 = vpop.f32.mrb[0].mxu0
    %v3793 = vadd.f32 %v1183, %v3792
    %v3794 = vpop.f32.mrb[0].mxu0
    %v3795 = vadd.f32 %v1179, %v3794
    %v3796 = vpop.f32.mrb[0].mxu0
    %v3797 = vadd.f32 %v1183, %v3796
    %3798 = vdwg.mxu0
    %3799 = vmatprep.subr.bf16.mxu0 %v2797
    %3800 = vmatpush1.bf16.msra.mxu0 %v2796
    %3801 = vmatprep.subr.bf16.mxu0 %v2801
    %3802 = vmatpush1.bf16.msra.mxu0 %v2800
    %3803 = vmatprep.subr.bf16.mxu0 %v2805
    %3804 = vmatpush1.bf16.msra.mxu0 %v2804
    %3805 = vmatprep.subr.bf16.mxu0 %v2809
    %3806 = vmatpush1.bf16.msra.mxu0 %v2808
    %3807 = vmatprep.subr.bf16.mxu0 %v2813
    %3808 = vmatpush1.bf16.msra.mxu0 %v2812
    %3809 = vmatprep.subr.bf16.mxu0 %v2817
    %3810 = vmatpush1.bf16.msra.mxu0 %v2816
    %3811 = vmatprep.subr.bf16.mxu0 %v2821
    %3812 = vmatpush1.bf16.msra.mxu0 %v2820
    %3813 = vmatprep.subr.bf16.mxu0 %v2825
    %3814 = vmatpush1.bf16.msra.mxu0 %v2824
    %3815 = vmatprep.subr.bf16.mxu0 %v2829
    %3816 = vmatpush1.bf16.msra.mxu0 %v2828
    %3817 = vmatprep.subr.bf16.mxu0 %v2833
    %3818 = vmatpush1.bf16.msra.mxu0 %v2832
    %3819 = vmatprep.subr.bf16.mxu0 %v2837
    %3820 = vmatpush1.bf16.msra.mxu0 %v2836
    %3821 = vmatprep.subr.bf16.mxu0 %v2841
    %3822 = vmatpush1.bf16.msra.mxu0 %v2840
    %3823 = vmatprep.subr.bf16.mxu0 %v2845
    %3824 = vmatpush1.bf16.msra.mxu0 %v2844
    %3825 = vmatprep.subr.bf16.mxu0 %v2849
    %3826 = vmatpush1.bf16.msra.mxu0 %v2848
    %3827 = vmatprep.subr.bf16.mxu0 %v2853
    %3828 = vmatpush1.bf16.msra.mxu0 %v2852
    %3829 = vmatprep.subr.bf16.mxu0 %v2857
    %3830 = vmatpush1.bf16.msra.mxu0 %v2856
    %3831 = vmatprep.mubr.bf16.mxu0 %v650
    %3832 = vmatmul.mubr.bf16.gmra.mrb[0].mxu0 %v649
    %v3833 = vpop.f32.mrb[0].mxu0
    %v3834 = vadd.f32 %v3791, %v3833
    %v3835 = vpop.f32.mrb[0].mxu0
    %v3836 = vadd.f32 %v3793, %v3835
    %v3837 = vpop.f32.mrb[0].mxu0
    %v3838 = vadd.f32 %v3795, %v3837
    %v3839 = vpop.f32.mrb[0].mxu0
    %v3840 = vadd.f32 %v3797, %v3839
    %3841 = vdwg.mxu0
    %3842 = vmatprep.subr.bf16.mxu0 %v2861
    %3843 = vmatpush1.bf16.msra.mxu0 %v2860
    %3844 = vmatprep.subr.bf16.mxu0 %v2865
    %3845 = vmatpush1.bf16.msra.mxu0 %v2864
    %3846 = vmatprep.subr.bf16.mxu0 %v2869
    %3847 = vmatpush1.bf16.msra.mxu0 %v2868
    %3848 = vmatprep.subr.bf16.mxu0 %v2873
    %3849 = vmatpush1.bf16.msra.mxu0 %v2872
    %3850 = vmatprep.subr.bf16.mxu0 %v2877
    %3851 = vmatpush1.bf16.msra.mxu0 %v2876
    %3852 = vmatprep.subr.bf16.mxu0 %v2881
    %3853 = vmatpush1.bf16.msra.mxu0 %v2880
    %3854 = vmatprep.subr.bf16.mxu0 %v2885
    %3855 = vmatpush1.bf16.msra.mxu0 %v2884
    %3856 = vmatprep.subr.bf16.mxu0 %v2889
    %3857 = vmatpush1.bf16.msra.mxu0 %v2888
    %3858 = vmatprep.subr.bf16.mxu0 %v2893
    %3859 = vmatpush1.bf16.msra.mxu0 %v2892
    %3860 = vmatprep.subr.bf16.mxu0 %v2897
    %3861 = vmatpush1.bf16.msra.mxu0 %v2896
    %3862 = vmatprep.subr.bf16.mxu0 %v2901
    %3863 = vmatpush1.bf16.msra.mxu0 %v2900
    %3864 = vmatprep.subr.bf16.mxu0 %v2905
    %3865 = vmatpush1.bf16.msra.mxu0 %v2904
    %3866 = vmatprep.subr.bf16.mxu0 %v2909
    %3867 = vmatpush1.bf16.msra.mxu0 %v2908
    %3868 = vmatprep.subr.bf16.mxu0 %v2913
    %3869 = vmatpush1.bf16.msra.mxu0 %v2912
    %3870 = vmatprep.subr.bf16.mxu0 %v2917
    %3871 = vmatpush1.bf16.msra.mxu0 %v2916
    %3872 = vmatprep.subr.bf16.mxu0 %v2921
    %3873 = vmatpush1.bf16.msra.mxu0 %v2920
    %3874 = vmatprep.mubr.bf16.mxu0 %v652
    %3875 = vmatmul.mubr.bf16.gmra.mrb[0].mxu0 %v651
    %v3876 = vpop.f32.mrb[0].mxu0
    %v3877 = vadd.f32 %v3834, %v3876
    %v3878 = vpop.f32.mrb[0].mxu0
    %v3879 = vadd.f32 %v3836, %v3878
    %v3880 = vpop.f32.mrb[0].mxu0
    %v3881 = vadd.f32 %v3838, %v3880
    %v3882 = vpop.f32.mrb[0].mxu0
    %v3883 = vadd.f32 %v3840, %v3882
    %3884 = vdwg.mxu0
    %3885 = vmatprep.subr.bf16.mxu0 %v2925
    %3886 = vmatpush1.bf16.msra.mxu0 %v2924
    %3887 = vmatprep.subr.bf16.mxu0 %v2929
    %3888 = vmatpush1.bf16.msra.mxu0 %v2928
    %3889 = vmatprep.subr.bf16.mxu0 %v2933
    %3890 = vmatpush1.bf16.msra.mxu0 %v2932
    %3891 = vmatprep.subr.bf16.mxu0 %v2937
    %3892 = vmatpush1.bf16.msra.mxu0 %v2936
    %3893 = vmatprep.subr.bf16.mxu0 %v2941
    %3894 = vmatpush1.bf16.msra.mxu0 %v2940
    %3895 = vmatprep.subr.bf16.mxu0 %v2945
    %3896 = vmatpush1.bf16.msra.mxu0 %v2944
    %3897 = vmatprep.subr.bf16.mxu0 %v2949
    %3898 = vmatpush1.bf16.msra.mxu0 %v2948
    %3899 = vmatprep.subr.bf16.mxu0 %v2953
    %3900 = vmatpush1.bf16.msra.mxu0 %v2952
    %3901 = vmatprep.subr.bf16.mxu0 %v2957
    %3902 = vmatpush1.bf16.msra.mxu0 %v2956
    %3903 = vmatprep.subr.bf16.mxu0 %v2961
    %3904 = vmatpush1.bf16.msra.mxu0 %v2960
    %3905 = vmatprep.subr.bf16.mxu0 %v2965
    %3906 = vmatpush1.bf16.msra.mxu0 %v2964
    %3907 = vmatprep.subr.bf16.mxu0 %v2969
    %3908 = vmatpush1.bf16.msra.mxu0 %v2968
    %3909 = vmatprep.subr.bf16.mxu0 %v2973
    %3910 = vmatpush1.bf16.msra.mxu0 %v2972
    %3911 = vmatprep.subr.bf16.mxu0 %v2977
    %3912 = vmatpush1.bf16.msra.mxu0 %v2976
    %3913 = vmatprep.subr.bf16.mxu0 %v2981
    %3914 = vmatpush1.bf16.msra.mxu0 %v2980
    %3915 = vmatprep.subr.bf16.mxu0 %v2985
    %3916 = vmatpush1.bf16.msra.mxu0 %v2984
    %3917 = vmatprep.mubr.bf16.mxu0 %v654
    %3918 = vmatmul.mubr.bf16.gmra.mrb[0].mxu0 %v653
    %v3919 = vpop.f32.mrb[0].mxu0
    %v3920 = vadd.f32 %v3877, %v3919
    %v3921 = vpop.f32.mrb[0].mxu0
    %v3922 = vadd.f32 %v3879, %v3921
    %v3923 = vpop.f32.mrb[0].mxu0
    %v3924 = vadd.f32 %v3881, %v3923
    %v3925 = vpop.f32.mrb[0].mxu0
    %v3926 = vadd.f32 %v3883, %v3925
    %3927 = vdwg.mxu0
    %3928 = vmatprep.subr.bf16.mxu0 %v2989
    %3929 = vmatpush1.bf16.msra.mxu0 %v2988
    %3930 = vmatprep.subr.bf16.mxu0 %v2993
    %3931 = vmatpush1.bf16.msra.mxu0 %v2992
    %3932 = vmatprep.subr.bf16.mxu0 %v2997
    %3933 = vmatpush1.bf16.msra.mxu0 %v2996
    %3934 = vmatprep.subr.bf16.mxu0 %v3001
    %3935 = vmatpush1.bf16.msra.mxu0 %v3000
    %3936 = vmatprep.subr.bf16.mxu0 %v3005
    %3937 = vmatpush1.bf16.msra.mxu0 %v3004
    %3938 = vmatprep.subr.bf16.mxu0 %v3009
    %3939 = vmatpush1.bf16.msra.mxu0 %v3008
    %3940 = vmatprep.subr.bf16.mxu0 %v3013
    %3941 = vmatpush1.bf16.msra.mxu0 %v3012
    %3942 = vmatprep.subr.bf16.mxu0 %v3017
    %3943 = vmatpush1.bf16.msra.mxu0 %v3016
    %3944 = vmatprep.subr.bf16.mxu0 %v3021
    %3945 = vmatpush1.bf16.msra.mxu0 %v3020
    %3946 = vmatprep.subr.bf16.mxu0 %v3025
    %3947 = vmatpush1.bf16.msra.mxu0 %v3024
    %3948 = vmatprep.subr.bf16.mxu0 %v3029
    %3949 = vmatpush1.bf16.msra.mxu0 %v3028
    %3950 = vmatprep.subr.bf16.mxu0 %v3033
    %3951 = vmatpush1.bf16.msra.mxu0 %v3032
    %3952 = vmatprep.subr.bf16.mxu0 %v3037
    %3953 = vmatpush1.bf16.msra.mxu0 %v3036
    %3954 = vmatprep.subr.bf16.mxu0 %v3041
    %3955 = vmatpush1.bf16.msra.mxu0 %v3040
    %3956 = vmatprep.subr.bf16.mxu0 %v3045
    %3957 = vmatpush1.bf16.msra.mxu0 %v3044
    %3958 = vmatprep.subr.bf16.mxu0 %v3049
    %3959 = vmatpush1.bf16.msra.mxu0 %v3048
    %3960 = vmatprep.mubr.bf16.mxu0 %v656
    %3961 = vmatmul.mubr.bf16.gmra.mrb[0].mxu0 %v655
    %v3962 = vpop.f32.mrb[0].mxu0
    %v3963 = vadd.f32 %v3920, %v3962
    %v3964 = vpop.f32.mrb[0].mxu0
    %v3965 = vadd.f32 %v3922, %v3964
    %v3966 = vpop.f32.mrb[0].mxu0
    %v3967 = vadd.f32 %v3924, %v3966
    %v3968 = vpop.f32.mrb[0].mxu0
    %v3969 = vadd.f32 %v3926, %v3968
    %3970 = vdwg.mxu0
    %3971 = vmatprep.subr.bf16.mxu0 %v3053
    %3972 = vmatpush1.bf16.msra.mxu0 %v3052
    %3973 = vmatprep.subr.bf16.mxu0 %v3057
    %3974 = vmatpush1.bf16.msra.mxu0 %v3056
    %3975 = vmatprep.subr.bf16.mxu0 %v3061
    %3976 = vmatpush1.bf16.msra.mxu0 %v3060
    %3977 = vmatprep.subr.bf16.mxu0 %v3065
    %3978 = vmatpush1.bf16.msra.mxu0 %v3064
    %3979 = vmatprep.subr.bf16.mxu0 %v3069
    %3980 = vmatpush1.bf16.msra.mxu0 %v3068
    %3981 = vmatprep.subr.bf16.mxu0 %v3073
    %3982 = vmatpush1.bf16.msra.mxu0 %v3072
    %3983 = vmatprep.subr.bf16.mxu0 %v3077
    %3984 = vmatpush1.bf16.msra.mxu0 %v3076
    %3985 = vmatprep.subr.bf16.mxu0 %v3081
    %3986 = vmatpush1.bf16.msra.mxu0 %v3080
    %3987 = vmatprep.subr.bf16.mxu0 %v3085
    %3988 = vmatpush1.bf16.msra.mxu0 %v3084
    %3989 = vmatprep.subr.bf16.mxu0 %v3089
    %3990 = vmatpush1.bf16.msra.mxu0 %v3088
    %3991 = vmatprep.subr.bf16.mxu0 %v3093
    %3992 = vmatpush1.bf16.msra.mxu0 %v3092
    %3993 = vmatprep.subr.bf16.mxu0 %v3097
    %3994 = vmatpush1.bf16.msra.mxu0 %v3096
    %3995 = vmatprep.subr.bf16.mxu0 %v3101
    %3996 = vmatpush1.bf16.msra.mxu0 %v3100
    %3997 = vmatprep.subr.bf16.mxu0 %v3105
    %3998 = vmatpush1.bf16.msra.mxu0 %v3104
    %3999 = vmatprep.subr.bf16.mxu0 %v3109
    %4000 = vmatpush1.bf16.msra.mxu0 %v3108
    %4001 = vmatprep.subr.bf16.mxu0 %v3113
    %4002 = vmatpush1.bf16.msra.mxu0 %v3112
    %4003 = vmatprep.mubr.bf16.mxu0 %v658
    %4004 = vmatmul.mubr.bf16.gmra.mrb[0].mxu0 %v657
    %v4005 = vpop.f32.mrb[0].mxu0
    %v4006 = vadd.f32 %v3963, %v4005
    %v4007 = vpop.f32.mrb[0].mxu0
    %v4008 = vadd.f32 %v3965, %v4007
    %v4009 = vpop.f32.mrb[0].mxu0
    %v4010 = vadd.f32 %v3967, %v4009
    %v4011 = vpop.f32.mrb[0].mxu0
    %v4012 = vadd.f32 %v3969, %v4011
    %4013 = vdwg.mxu0
    %4014 = vmatprep.subr.bf16.mxu0 %v3117
    %4015 = vmatpush1.bf16.msra.mxu0 %v3116
    %4016 = vmatprep.subr.bf16.mxu0 %v3121
    %4017 = vmatpush1.bf16.msra.mxu0 %v3120
    %4018 = vmatprep.subr.bf16.mxu0 %v3125
    %4019 = vmatpush1.bf16.msra.mxu0 %v3124
    %4020 = vmatprep.subr.bf16.mxu0 %v3129
    %4021 = vmatpush1.bf16.msra.mxu0 %v3128
    %4022 = vmatprep.subr.bf16.mxu0 %v3133
    %4023 = vmatpush1.bf16.msra.mxu0 %v3132
    %4024 = vmatprep.subr.bf16.mxu0 %v3137
    %4025 = vmatpush1.bf16.msra.mxu0 %v3136
    %4026 = vmatprep.subr.bf16.mxu0 %v3141
    %4027 = vmatpush1.bf16.msra.mxu0 %v3140
    %4028 = vmatprep.subr.bf16.mxu0 %v3145
    %4029 = vmatpush1.bf16.msra.mxu0 %v3144
    %4030 = vmatprep.subr.bf16.mxu0 %v3149
    %4031 = vmatpush1.bf16.msra.mxu0 %v3148
    %4032 = vmatprep.subr.bf16.mxu0 %v3153
    %4033 = vmatpush1.bf16.msra.mxu0 %v3152
    %4034 = vmatprep.subr.bf16.mxu0 %v3157
    %4035 = vmatpush1.bf16.msra.mxu0 %v3156
    %4036 = vmatprep.subr.bf16.mxu0 %v3161
    %4037 = vmatpush1.bf16.msra.mxu0 %v3160
    %4038 = vmatprep.subr.bf16.mxu0 %v3165
    %4039 = vmatpush1.bf16.msra.mxu0 %v3164
    %4040 = vmatprep.subr.bf16.mxu0 %v3169
    %4041 = vmatpush1.bf16.msra.mxu0 %v3168
    %4042 = vmatprep.subr.bf16.mxu0 %v3173
    %4043 = vmatpush1.bf16.msra.mxu0 %v3172
    %4044 = vmatprep.subr.bf16.mxu0 %v3177
    %4045 = vmatpush1.bf16.msra.mxu0 %v3176
    %4046 = vmatprep.mubr.bf16.mxu0 %v660
    %4047 = vmatmul.mubr.bf16.gmra.mrb[0].mxu0 %v659
    %v4048 = vpop.f32.mrb[0].mxu0
    %v4049 = vadd.f32 %v4006, %v4048
    %v4050 = vpop.f32.mrb[0].mxu0
    %v4051 = vadd.f32 %v4008, %v4050
    %v4052 = vpop.f32.mrb[0].mxu0
    %v4053 = vadd.f32 %v4010, %v4052
    %v4054 = vpop.f32.mrb[0].mxu0
    %v4055 = vadd.f32 %v4012, %v4054
    %4056 = vdwg.mxu0
    %4057 = vmatprep.subr.bf16.mxu0 %v3181
    %4058 = vmatpush1.bf16.msra.mxu0 %v3180
    %4059 = vmatprep.subr.bf16.mxu0 %v3185
    %4060 = vmatpush1.bf16.msra.mxu0 %v3184
    %4061 = vmatprep.subr.bf16.mxu0 %v3189
    %4062 = vmatpush1.bf16.msra.mxu0 %v3188
    %4063 = vmatprep.subr.bf16.mxu0 %v3193
    %4064 = vmatpush1.bf16.msra.mxu0 %v3192
    %4065 = vmatprep.subr.bf16.mxu0 %v3197
    %4066 = vmatpush1.bf16.msra.mxu0 %v3196
    %4067 = vmatprep.subr.bf16.mxu0 %v3201
    %4068 = vmatpush1.bf16.msra.mxu0 %v3200
    %4069 = vmatprep.subr.bf16.mxu0 %v3205
    %4070 = vmatpush1.bf16.msra.mxu0 %v3204
    %4071 = vmatprep.subr.bf16.mxu0 %v3209
    %4072 = vmatpush1.bf16.msra.mxu0 %v3208
    %4073 = vmatprep.subr.bf16.mxu0 %v3213
    %4074 = vmatpush1.bf16.msra.mxu0 %v3212
    %4075 = vmatprep.subr.bf16.mxu0 %v3217
    %4076 = vmatpush1.bf16.msra.mxu0 %v3216
    %4077 = vmatprep.subr.bf16.mxu0 %v3221
    %4078 = vmatpush1.bf16.msra.mxu0 %v3220
    %4079 = vmatprep.subr.bf16.mxu0 %v3225
    %4080 = vmatpush1.bf16.msra.mxu0 %v3224
    %4081 = vmatprep.subr.bf16.mxu0 %v3229
    %4082 = vmatpush1.bf16.msra.mxu0 %v3228
    %4083 = vmatprep.subr.bf16.mxu0 %v3233
    %4084 = vmatpush1.bf16.msra.mxu0 %v3232
    %4085 = vmatprep.subr.bf16.mxu0 %v3237
    %4086 = vmatpush1.bf16.msra.mxu0 %v3236
    %4087 = vmatprep.subr.bf16.mxu0 %v3241
    %4088 = vmatpush1.bf16.msra.mxu0 %v3240
    %4089 = vmatprep.mubr.bf16.mxu0 %v662
    %4090 = vmatmul.mubr.bf16.gmra.mrb[0].mxu0 %v661
    %v4091 = vpop.f32.mrb[0].mxu0
    %v4092 = vadd.f32 %v4049, %v4091
    %v4093 = vpop.f32.mrb[0].mxu0
    %v4094 = vadd.f32 %v4051, %v4093
    %v4095 = vpop.f32.mrb[0].mxu0
    %v4096 = vadd.f32 %v4053, %v4095
    %v4097 = vpop.f32.mrb[0].mxu0
    %v4098 = vadd.f32 %v4055, %v4097
    %4099 = vdwg.mxu0
    %4100 = vmatprep.subr.bf16.mxu0 %v2735
    %4101 = vmatpush1.bf16.msra.mxu0 %v2734
    %4102 = vmatprep.subr.bf16.mxu0 %v2739
    %4103 = vmatpush1.bf16.msra.mxu0 %v2738
    %4104 = vmatprep.subr.bf16.mxu0 %v2743
    %4105 = vmatpush1.bf16.msra.mxu0 %v2742
    %4106 = vmatprep.subr.bf16.mxu0 %v2747
    %4107 = vmatpush1.bf16.msra.mxu0 %v2746
    %4108 = vmatprep.subr.bf16.mxu0 %v2751
    %4109 = vmatpush1.bf16.msra.mxu0 %v2750
    %4110 = vmatprep.subr.bf16.mxu0 %v2755
    %4111 = vmatpush1.bf16.msra.mxu0 %v2754
    %4112 = vmatprep.subr.bf16.mxu0 %v2759
    %4113 = vmatpush1.bf16.msra.mxu0 %v2758
    %4114 = vmatprep.subr.bf16.mxu0 %v2763
    %4115 = vmatpush1.bf16.msra.mxu0 %v2762
    %4116 = vmatprep.subr.bf16.mxu0 %v2767
    %4117 = vmatpush1.bf16.msra.mxu0 %v2766
    %4118 = vmatprep.subr.bf16.mxu0 %v2771
    %4119 = vmatpush1.bf16.msra.mxu0 %v2770
    %4120 = vmatprep.subr.bf16.mxu0 %v2775
    %4121 = vmatpush1.bf16.msra.mxu0 %v2774
    %4122 = vmatprep.subr.bf16.mxu0 %v2779
    %4123 = vmatpush1.bf16.msra.mxu0 %v2778
    %4124 = vmatprep.subr.bf16.mxu0 %v2783
    %4125 = vmatpush1.bf16.msra.mxu0 %v2782
    %4126 = vmatprep.subr.bf16.mxu0 %v2787
    %4127 = vmatpush1.bf16.msra.mxu0 %v2786
    %4128 = vmatprep.subr.bf16.mxu0 %v2791
    %4129 = vmatpush1.bf16.msra.mxu0 %v2790
    %4130 = vmatprep.subr.bf16.mxu0 %v2795
    %4131 = vmatpush1.bf16.msra.mxu0 %v2794
    %4132 = vmatprep.mubr.bf16.mxu0 %v648
    %4133 = vmatmul.mubr.bf16.gmra.mrb[0].mxu0 %v647
    %v4134 = vpop.f32.mrb[0].mxu0
    %v4135 = vadd.f32 %v1187, %v4134
    %v4136 = vpop.f32.mrb[0].mxu0
    %v4137 = vadd.f32 %v1191, %v4136
    %v4138 = vpop.f32.mrb[0].mxu0
    %v4139 = vadd.f32 %v1187, %v4138
    %v4140 = vpop.f32.mrb[0].mxu0
    %v4141 = vadd.f32 %v1191, %v4140
    %4142 = vdwg.mxu0
    %4143 = vmatprep.subr.bf16.mxu0 %v2799
    %4144 = vmatpush1.bf16.msra.mxu0 %v2798
    %4145 = vmatprep.subr.bf16.mxu0 %v2803
    %4146 = vmatpush1.bf16.msra.mxu0 %v2802
    %4147 = vmatprep.subr.bf16.mxu0 %v2807
    %4148 = vmatpush1.bf16.msra.mxu0 %v2806
    %4149 = vmatprep.subr.bf16.mxu0 %v2811
    %4150 = vmatpush1.bf16.msra.mxu0 %v2810
    %4151 = vmatprep.subr.bf16.mxu0 %v2815
    %4152 = vmatpush1.bf16.msra.mxu0 %v2814
    %4153 = vmatprep.subr.bf16.mxu0 %v2819
    %4154 = vmatpush1.bf16.msra.mxu0 %v2818
    %4155 = vmatprep.subr.bf16.mxu0 %v2823
    %4156 = vmatpush1.bf16.msra.mxu0 %v2822
    %4157 = vmatprep.subr.bf16.mxu0 %v2827
    %4158 = vmatpush1.bf16.msra.mxu0 %v2826
    %4159 = vmatprep.subr.bf16.mxu0 %v2831
    %4160 = vmatpush1.bf16.msra.mxu0 %v2830
    %4161 = vmatprep.subr.bf16.mxu0 %v2835
    %4162 = vmatpush1.bf16.msra.mxu0 %v2834
    %4163 = vmatprep.subr.bf16.mxu0 %v2839
    %4164 = vmatpush1.bf16.msra.mxu0 %v2838
    %4165 = vmatprep.subr.bf16.mxu0 %v2843
    %4166 = vmatpush1.bf16.msra.mxu0 %v2842
    %4167 = vmatprep.subr.bf16.mxu0 %v2847
    %4168 = vmatpush1.bf16.msra.mxu0 %v2846
    %4169 = vmatprep.subr.bf16.mxu0 %v2851
    %4170 = vmatpush1.bf16.msra.mxu0 %v2850
    %4171 = vmatprep.subr.bf16.mxu0 %v2855
    %4172 = vmatpush1.bf16.msra.mxu0 %v2854
    %4173 = vmatprep.subr.bf16.mxu0 %v2859
    %4174 = vmatpush1.bf16.msra.mxu0 %v2858
    %4175 = vmatprep.mubr.bf16.mxu0 %v650
    %4176 = vmatmul.mubr.bf16.gmra.mrb[0].mxu0 %v649
    %v4177 = vpop.f32.mrb[0].mxu0
    %v4178 = vadd.f32 %v4135, %v4177
    %v4179 = vpop.f32.mrb[0].mxu0
    %v4180 = vadd.f32 %v4137, %v4179
    %v4181 = vpop.f32.mrb[0].mxu0
    %v4182 = vadd.f32 %v4139, %v4181
    %v4183 = vpop.f32.mrb[0].mxu0
    %v4184 = vadd.f32 %v4141, %v4183
    %4185 = vdwg.mxu0
    %4186 = vmatprep.subr.bf16.mxu0 %v2863
    %4187 = vmatpush1.bf16.msra.mxu0 %v2862
    %4188 = vmatprep.subr.bf16.mxu0 %v2867
    %4189 = vmatpush1.bf16.msra.mxu0 %v2866
    %4190 = vmatprep.subr.bf16.mxu0 %v2871
    %4191 = vmatpush1.bf16.msra.mxu0 %v2870
    %4192 = vmatprep.subr.bf16.mxu0 %v2875
    %4193 = vmatpush1.bf16.msra.mxu0 %v2874
    %4194 = vmatprep.subr.bf16.mxu0 %v2879
    %4195 = vmatpush1.bf16.msra.mxu0 %v2878
    %4196 = vmatprep.subr.bf16.mxu0 %v2883
    %4197 = vmatpush1.bf16.msra.mxu0 %v2882
    %4198 = vmatprep.subr.bf16.mxu0 %v2887
    %4199 = vmatpush1.bf16.msra.mxu0 %v2886
    %4200 = vmatprep.subr.bf16.mxu0 %v2891
    %4201 = vmatpush1.bf16.msra.mxu0 %v2890
    %4202 = vmatprep.subr.bf16.mxu0 %v2895
    %4203 = vmatpush1.bf16.msra.mxu0 %v2894
    %4204 = vmatprep.subr.bf16.mxu0 %v2899
    %4205 = vmatpush1.bf16.msra.mxu0 %v2898
    %4206 = vmatprep.subr.bf16.mxu0 %v2903
    %4207 = vmatpush1.bf16.msra.mxu0 %v2902
    %4208 = vmatprep.subr.bf16.mxu0 %v2907
    %4209 = vmatpush1.bf16.msra.mxu0 %v2906
    %4210 = vmatprep.subr.bf16.mxu0 %v2911
    %4211 = vmatpush1.bf16.msra.mxu0 %v2910
    %4212 = vmatprep.subr.bf16.mxu0 %v2915
    %4213 = vmatpush1.bf16.msra.mxu0 %v2914
    %4214 = vmatprep.subr.bf16.mxu0 %v2919
    %4215 = vmatpush1.bf16.msra.mxu0 %v2918
    %4216 = vmatprep.subr.bf16.mxu0 %v2923
    %4217 = vmatpush1.bf16.msra.mxu0 %v2922
    %4218 = vmatprep.mubr.bf16.mxu0 %v652
    %4219 = vmatmul.mubr.bf16.gmra.mrb[0].mxu0 %v651
    %v4220 = vpop.f32.mrb[0].mxu0
    %v4221 = vadd.f32 %v4178, %v4220
    %v4222 = vpop.f32.mrb[0].mxu0
    %v4223 = vadd.f32 %v4180, %v4222
    %v4224 = vpop.f32.mrb[0].mxu0
    %v4225 = vadd.f32 %v4182, %v4224
    %v4226 = vpop.f32.mrb[0].mxu0
    %v4227 = vadd.f32 %v4184, %v4226
    %4228 = vdwg.mxu0
    %4229 = vmatprep.subr.bf16.mxu0 %v2927
    %4230 = vmatpush1.bf16.msra.mxu0 %v2926
    %4231 = vmatprep.subr.bf16.mxu0 %v2931
    %4232 = vmatpush1.bf16.msra.mxu0 %v2930
    %4233 = vmatprep.subr.bf16.mxu0 %v2935
    %4234 = vmatpush1.bf16.msra.mxu0 %v2934
    %4235 = vmatprep.subr.bf16.mxu0 %v2939
    %4236 = vmatpush1.bf16.msra.mxu0 %v2938
    %4237 = vmatprep.subr.bf16.mxu0 %v2943
    %4238 = vmatpush1.bf16.msra.mxu0 %v2942
    %4239 = vmatprep.subr.bf16.mxu0 %v2947
    %4240 = vmatpush1.bf16.msra.mxu0 %v2946
    %4241 = vmatprep.subr.bf16.mxu0 %v2951
    %4242 = vmatpush1.bf16.msra.mxu0 %v2950
    %4243 = vmatprep.subr.bf16.mxu0 %v2955
    %4244 = vmatpush1.bf16.msra.mxu0 %v2954
    %4245 = vmatprep.subr.bf16.mxu0 %v2959
    %4246 = vmatpush1.bf16.msra.mxu0 %v2958
    %4247 = vmatprep.subr.bf16.mxu0 %v2963
    %4248 = vmatpush1.bf16.msra.mxu0 %v2962
    %4249 = vmatprep.subr.bf16.mxu0 %v2967
    %4250 = vmatpush1.bf16.msra.mxu0 %v2966
    %4251 = vmatprep.subr.bf16.mxu0 %v2971
    %4252 = vmatpush1.bf16.msra.mxu0 %v2970
    %4253 = vmatprep.subr.bf16.mxu0 %v2975
    %4254 = vmatpush1.bf16.msra.mxu0 %v2974
    %4255 = vmatprep.subr.bf16.mxu0 %v2979
    %4256 = vmatpush1.bf16.msra.mxu0 %v2978
    %4257 = vmatprep.subr.bf16.mxu0 %v2983
    %4258 = vmatpush1.bf16.msra.mxu0 %v2982
    %4259 = vmatprep.subr.bf16.mxu0 %v2987
    %4260 = vmatpush1.bf16.msra.mxu0 %v2986
    %4261 = vmatprep.mubr.bf16.mxu0 %v654
    %4262 = vmatmul.mubr.bf16.gmra.mrb[0].mxu0 %v653
    %v4263 = vpop.f32.mrb[0].mxu0
    %v4264 = vadd.f32 %v4221, %v4263
    %v4265 = vpop.f32.mrb[0].mxu0
    %v4266 = vadd.f32 %v4223, %v4265
    %v4267 = vpop.f32.mrb[0].mxu0
    %v4268 = vadd.f32 %v4225, %v4267
    %v4269 = vpop.f32.mrb[0].mxu0
    %v4270 = vadd.f32 %v4227, %v4269
    %4271 = vdwg.mxu0
    %4272 = vmatprep.subr.bf16.mxu0 %v2991
    %4273 = vmatpush1.bf16.msra.mxu0 %v2990
    %4274 = vmatprep.subr.bf16.mxu0 %v2995
    %4275 = vmatpush1.bf16.msra.mxu0 %v2994
    %4276 = vmatprep.subr.bf16.mxu0 %v2999
    %4277 = vmatpush1.bf16.msra.mxu0 %v2998
    %4278 = vmatprep.subr.bf16.mxu0 %v3003
    %4279 = vmatpush1.bf16.msra.mxu0 %v3002
    %4280 = vmatprep.subr.bf16.mxu0 %v3007
    %4281 = vmatpush1.bf16.msra.mxu0 %v3006
    %4282 = vmatprep.subr.bf16.mxu0 %v3011
    %4283 = vmatpush1.bf16.msra.mxu0 %v3010
    %4284 = vmatprep.subr.bf16.mxu0 %v3015
    %4285 = vmatpush1.bf16.msra.mxu0 %v3014
    %4286 = vmatprep.subr.bf16.mxu0 %v3019
    %4287 = vmatpush1.bf16.msra.mxu0 %v3018
    %4288 = vmatprep.subr.bf16.mxu0 %v3023
    %4289 = vmatpush1.bf16.msra.mxu0 %v3022
    %4290 = vmatprep.subr.bf16.mxu0 %v3027
    %4291 = vmatpush1.bf16.msra.mxu0 %v3026
    %4292 = vmatprep.subr.bf16.mxu0 %v3031
    %4293 = vmatpush1.bf16.msra.mxu0 %v3030
    %4294 = vmatprep.subr.bf16.mxu0 %v3035
    %4295 = vmatpush1.bf16.msra.mxu0 %v3034
    %4296 = vmatprep.subr.bf16.mxu0 %v3039
    %4297 = vmatpush1.bf16.msra.mxu0 %v3038
    %4298 = vmatprep.subr.bf16.mxu0 %v3043
    %4299 = vmatpush1.bf16.msra.mxu0 %v3042
    %4300 = vmatprep.subr.bf16.mxu0 %v3047
    %4301 = vmatpush1.bf16.msra.mxu0 %v3046
    %4302 = vmatprep.subr.bf16.mxu0 %v3051
    %4303 = vmatpush1.bf16.msra.mxu0 %v3050
    %4304 = vmatprep.mubr.bf16.mxu0 %v656
    %4305 = vmatmul.mubr.bf16.gmra.mrb[0].mxu0 %v655
    %v4306 = vpop.f32.mrb[0].mxu0
    %v4307 = vadd.f32 %v4264, %v4306
    %v4308 = vpop.f32.mrb[0].mxu0
    %v4309 = vadd.f32 %v4266, %v4308
    %v4310 = vpop.f32.mrb[0].mxu0
    %v4311 = vadd.f32 %v4268, %v4310
    %v4312 = vpop.f32.mrb[0].mxu0
    %v4313 = vadd.f32 %v4270, %v4312
    %4314 = vdwg.mxu0
    %4315 = vmatprep.subr.bf16.mxu0 %v3055
    %4316 = vmatpush1.bf16.msra.mxu0 %v3054
    %4317 = vmatprep.subr.bf16.mxu0 %v3059
    %4318 = vmatpush1.bf16.msra.mxu0 %v3058
    %4319 = vmatprep.subr.bf16.mxu0 %v3063
    %4320 = vmatpush1.bf16.msra.mxu0 %v3062
    %4321 = vmatprep.subr.bf16.mxu0 %v3067
    %4322 = vmatpush1.bf16.msra.mxu0 %v3066
    %4323 = vmatprep.subr.bf16.mxu0 %v3071
    %4324 = vmatpush1.bf16.msra.mxu0 %v3070
    %4325 = vmatprep.subr.bf16.mxu0 %v3075
    %4326 = vmatpush1.bf16.msra.mxu0 %v3074
    %4327 = vmatprep.subr.bf16.mxu0 %v3079
    %4328 = vmatpush1.bf16.msra.mxu0 %v3078
    %4329 = vmatprep.subr.bf16.mxu0 %v3083
    %4330 = vmatpush1.bf16.msra.mxu0 %v3082
    %4331 = vmatprep.subr.bf16.mxu0 %v3087
    %4332 = vmatpush1.bf16.msra.mxu0 %v3086
    %4333 = vmatprep.subr.bf16.mxu0 %v3091
    %4334 = vmatpush1.bf16.msra.mxu0 %v3090
    %4335 = vmatprep.subr.bf16.mxu0 %v3095
    %4336 = vmatpush1.bf16.msra.mxu0 %v3094
    %4337 = vmatprep.subr.bf16.mxu0 %v3099
    %4338 = vmatpush1.bf16.msra.mxu0 %v3098
    %4339 = vmatprep.subr.bf16.mxu0 %v3103
    %4340 = vmatpush1.bf16.msra.mxu0 %v3102
    %4341 = vmatprep.subr.bf16.mxu0 %v3107
    %4342 = vmatpush1.bf16.msra.mxu0 %v3106
    %4343 = vmatprep.subr.bf16.mxu0 %v3111
    %4344 = vmatpush1.bf16.msra.mxu0 %v3110
    %4345 = vmatprep.subr.bf16.mxu0 %v3115
    %4346 = vmatpush1.bf16.msra.mxu0 %v3114
    %4347 = vmatprep.mubr.bf16.mxu0 %v658
    %4348 = vmatmul.mubr.bf16.gmra.mrb[0].mxu0 %v657
    %v4349 = vpop.f32.mrb[0].mxu0
    %v4350 = vadd.f32 %v4307, %v4349
    %v4351 = vpop.f32.mrb[0].mxu0
    %v4352 = vadd.f32 %v4309, %v4351
    %v4353 = vpop.f32.mrb[0].mxu0
    %v4354 = vadd.f32 %v4311, %v4353
    %v4355 = vpop.f32.mrb[0].mxu0
    %v4356 = vadd.f32 %v4313, %v4355
    %4357 = vdwg.mxu0
    %4358 = vmatprep.subr.bf16.mxu0 %v3119
    %4359 = vmatpush1.bf16.msra.mxu0 %v3118
    %4360 = vmatprep.subr.bf16.mxu0 %v3123
    %4361 = vmatpush1.bf16.msra.mxu0 %v3122
    %4362 = vmatprep.subr.bf16.mxu0 %v3127
    %4363 = vmatpush1.bf16.msra.mxu0 %v3126
    %4364 = vmatprep.subr.bf16.mxu0 %v3131
    %4365 = vmatpush1.bf16.msra.mxu0 %v3130
    %4366 = vmatprep.subr.bf16.mxu0 %v3135
    %4367 = vmatpush1.bf16.msra.mxu0 %v3134
    %4368 = vmatprep.subr.bf16.mxu0 %v3139
    %4369 = vmatpush1.bf16.msra.mxu0 %v3138
    %4370 = vmatprep.subr.bf16.mxu0 %v3143
    %4371 = vmatpush1.bf16.msra.mxu0 %v3142
    %4372 = vmatprep.subr.bf16.mxu0 %v3147
    %4373 = vmatpush1.bf16.msra.mxu0 %v3146
    %4374 = vmatprep.subr.bf16.mxu0 %v3151
    %4375 = vmatpush1.bf16.msra.mxu0 %v3150
    %4376 = vmatprep.subr.bf16.mxu0 %v3155
    %4377 = vmatpush1.bf16.msra.mxu0 %v3154
    %4378 = vmatprep.subr.bf16.mxu0 %v3159
    %4379 = vmatpush1.bf16.msra.mxu0 %v3158
    %4380 = vmatprep.subr.bf16.mxu0 %v3163
    %4381 = vmatpush1.bf16.msra.mxu0 %v3162
    %4382 = vmatprep.subr.bf16.mxu0 %v3167
    %4383 = vmatpush1.bf16.msra.mxu0 %v3166
    %4384 = vmatprep.subr.bf16.mxu0 %v3171
    %4385 = vmatpush1.bf16.msra.mxu0 %v3170
    %4386 = vmatprep.subr.bf16.mxu0 %v3175
    %4387 = vmatpush1.bf16.msra.mxu0 %v3174
    %4388 = vmatprep.subr.bf16.mxu0 %v3179
    %4389 = vmatpush1.bf16.msra.mxu0 %v3178
    %4390 = vmatprep.mubr.bf16.mxu0 %v660
    %4391 = vmatmul.mubr.bf16.gmra.mrb[0].mxu0 %v659
    %v4392 = vpop.f32.mrb[0].mxu0
    %v4393 = vadd.f32 %v4350, %v4392
    %v4394 = vpop.f32.mrb[0].mxu0
    %v4395 = vadd.f32 %v4352, %v4394
    %v4396 = vpop.f32.mrb[0].mxu0
    %v4397 = vadd.f32 %v4354, %v4396
    %v4398 = vpop.f32.mrb[0].mxu0
    %v4399 = vadd.f32 %v4356, %v4398
    %4400 = vdwg.mxu0
    %4401 = vmatprep.subr.bf16.mxu0 %v3183
    %4402 = vmatpush1.bf16.msra.mxu0 %v3182
    %4403 = vmatprep.subr.bf16.mxu0 %v3187
    %4404 = vmatpush1.bf16.msra.mxu0 %v3186
    %4405 = vmatprep.subr.bf16.mxu0 %v3191
    %4406 = vmatpush1.bf16.msra.mxu0 %v3190
    %4407 = vmatprep.subr.bf16.mxu0 %v3195
    %4408 = vmatpush1.bf16.msra.mxu0 %v3194
    %4409 = vmatprep.subr.bf16.mxu0 %v3199
    %4410 = vmatpush1.bf16.msra.mxu0 %v3198
    %4411 = vmatprep.subr.bf16.mxu0 %v3203
    %4412 = vmatpush1.bf16.msra.mxu0 %v3202
    %4413 = vmatprep.subr.bf16.mxu0 %v3207
    %4414 = vmatpush1.bf16.msra.mxu0 %v3206
    %4415 = vmatprep.subr.bf16.mxu0 %v3211
    %4416 = vmatpush1.bf16.msra.mxu0 %v3210
    %4417 = vmatprep.subr.bf16.mxu0 %v3215
    %4418 = vmatpush1.bf16.msra.mxu0 %v3214
    %4419 = vmatprep.subr.bf16.mxu0 %v3219
    %4420 = vmatpush1.bf16.msra.mxu0 %v3218
    %4421 = vmatprep.subr.bf16.mxu0 %v3223
    %4422 = vmatpush1.bf16.msra.mxu0 %v3222
    %4423 = vmatprep.subr.bf16.mxu0 %v3227
    %4424 = vmatpush1.bf16.msra.mxu0 %v3226
    %4425 = vmatprep.subr.bf16.mxu0 %v3231
    %4426 = vmatpush1.bf16.msra.mxu0 %v3230
    %4427 = vmatprep.subr.bf16.mxu0 %v3235
    %4428 = vmatpush1.bf16.msra.mxu0 %v3234
    %4429 = vmatprep.subr.bf16.mxu0 %v3239
    %4430 = vmatpush1.bf16.msra.mxu0 %v3238
    %4431 = vmatprep.subr.bf16.mxu0 %v3243
    %4432 = vmatpush1.bf16.msra.mxu0 %v3242
    %4433 = vmatprep.mubr.bf16.mxu0 %v662
    %4434 = vmatmul.mubr.bf16.gmra.mrb[0].mxu0 %v661
    %v4435 = vpop.f32.mrb[0].mxu0
    %v4436 = vadd.f32 %v4393, %v4435
    %v4437 = vpop.f32.mrb[0].mxu0
    %v4438 = vadd.f32 %v4395, %v4437
    %v4439 = vpop.f32.mrb[0].mxu0
    %v4440 = vadd.f32 %v4397, %v4439
    %v4441 = vpop.f32.mrb[0].mxu0
    %v4442 = vadd.f32 %v4399, %v4441
    %4443 = vdwg.mxu0
    %v4444 = vmax.f32 %v4092, 0.0
    %v4445 = vmax.f32 %v4094, 0.0
    %v4446 = vmax.f32 %v4436, 0.0
    %v4447 = vmax.f32 %v4438, 0.0
    %v4448 = vmax.f32 %v4096, 0.0
    %v4449 = vmax.f32 %v4098, 0.0
    %v4450 = vmax.f32 %v4440, 0.0
    %v4451 = vmax.f32 %v4442, 0.0
    %v4452 = vpack.c.bf16 %v4448, %v4444
    %v4453 = vpack.c.bf16 %v4449, %v4445
    %v4454 = vpack.c.bf16 %v4450, %v4446
    %v4455 = vpack.c.bf16 %v4451, %v4447
    %v4456 = vld [vmem:[#allocation6] sm:$0xff]
    %v4457 = vld [vmem:[#allocation6 + $0x8] sm:$0xff]
    %v4458 = vld [vmem:[#allocation6 + $0x10] sm:$0xff]
    %v4459 = vld [vmem:[#allocation6 + $0x18] sm:$0xff]
    %v4460 = vld [vmem:[#allocation6 + $0x20] sm:$0xff]
    %v4461 = vld [vmem:[#allocation6 + $0x28] sm:$0xff]
    %v4462 = vld [vmem:[#allocation6 + $0x30] sm:$0xff]
    %v4463 = vld [vmem:[#allocation6 + $0x38] sm:$0xff]
    %v4464 = vld [vmem:[#allocation6 + $0x40] sm:$0xff]
    %v4465 = vld [vmem:[#allocation6 + $0x48] sm:$0xff]
    %v4466 = vld [vmem:[#allocation6 + $0x50] sm:$0xff]
    %v4467 = vld [vmem:[#allocation6 + $0x58] sm:$0xff]
    %v4468 = vld [vmem:[#allocation6 + $0x60] sm:$0xff]
    %v4469 = vld [vmem:[#allocation6 + $0x68] sm:$0xff]
    %v4470 = vld [vmem:[#allocation6 + $0x70] sm:$0xff]
    %v4471 = vld [vmem:[#allocation6 + $0x78] sm:$0xff]
    %v4472 = vld [vmem:[#allocation6 + $0x80] sm:$0xff]
    %v4473 = vld [vmem:[#allocation6 + $0x88] sm:$0xff]
    %v4474 = vld [vmem:[#allocation6 + $0x90] sm:$0xff]
    %v4475 = vld [vmem:[#allocation6 + $0x98] sm:$0xff]
    %v4476 = vld [vmem:[#allocation6 + $0xa0] sm:$0xff]
    %v4477 = vld [vmem:[#allocation6 + $0xa8] sm:$0xff]
    %v4478 = vld [vmem:[#allocation6 + $0xb0] sm:$0xff]
    %v4479 = vld [vmem:[#allocation6 + $0xb8] sm:$0xff]
    %v4480 = vld [vmem:[#allocation6 + $0xc0] sm:$0xff]
    %v4481 = vld [vmem:[#allocation6 + $0xc8] sm:$0xff]
    %v4482 = vld [vmem:[#allocation6 + $0xd0] sm:$0xff]
    %v4483 = vld [vmem:[#allocation6 + $0xd8] sm:$0xff]
    %v4484 = vld [vmem:[#allocation6 + $0xe0] sm:$0xff]
    %v4485 = vld [vmem:[#allocation6 + $0xe8] sm:$0xff]
    %v4486 = vld [vmem:[#allocation6 + $0xf0] sm:$0xff]
    %v4487 = vld [vmem:[#allocation6 + $0xf8] sm:$0xff]
    %v4488 = vld [vmem:[#allocation6 + $0x100] sm:$0xff]
    %v4489 = vld [vmem:[#allocation6 + $0x108] sm:$0xff]
    %v4490 = vld [vmem:[#allocation6 + $0x110] sm:$0xff]
    %v4491 = vld [vmem:[#allocation6 + $0x118] sm:$0xff]
    %v4492 = vld [vmem:[#allocation6 + $0x120] sm:$0xff]
    %v4493 = vld [vmem:[#allocation6 + $0x128] sm:$0xff]
    %v4494 = vld [vmem:[#allocation6 + $0x130] sm:$0xff]
    %v4495 = vld [vmem:[#allocation6 + $0x138] sm:$0xff]
    %v4496 = vld [vmem:[#allocation6 + $0x140] sm:$0xff]
    %v4497 = vld [vmem:[#allocation6 + $0x148] sm:$0xff]
    %v4498 = vld [vmem:[#allocation6 + $0x150] sm:$0xff]
    %v4499 = vld [vmem:[#allocation6 + $0x158] sm:$0xff]
    %v4500 = vld [vmem:[#allocation6 + $0x160] sm:$0xff]
    %v4501 = vld [vmem:[#allocation6 + $0x168] sm:$0xff]
    %v4502 = vld [vmem:[#allocation6 + $0x170] sm:$0xff]
    %v4503 = vld [vmem:[#allocation6 + $0x178] sm:$0xff]
    %v4504 = vld [vmem:[#allocation6 + $0x180] sm:$0xff]
    %v4505 = vld [vmem:[#allocation6 + $0x188] sm:$0xff]
    %v4506 = vld [vmem:[#allocation6 + $0x190] sm:$0xff]
    %v4507 = vld [vmem:[#allocation6 + $0x198] sm:$0xff]
    %v4508 = vld [vmem:[#allocation6 + $0x1a0] sm:$0xff]
    %v4509 = vld [vmem:[#allocation6 + $0x1a8] sm:$0xff]
    %v4510 = vld [vmem:[#allocation6 + $0x1b0] sm:$0xff]
    %v4511 = vld [vmem:[#allocation6 + $0x1b8] sm:$0xff]
    %v4512 = vld [vmem:[#allocation6 + $0x1c0] sm:$0xff]
    %v4513 = vld [vmem:[#allocation6 + $0x1c8] sm:$0xff]
    %v4514 = vld [vmem:[#allocation6 + $0x1d0] sm:$0xff]
    %v4515 = vld [vmem:[#allocation6 + $0x1d8] sm:$0xff]
    %v4516 = vld [vmem:[#allocation6 + $0x1e0] sm:$0xff]
    %v4517 = vld [vmem:[#allocation6 + $0x1e8] sm:$0xff]
    %v4518 = vld [vmem:[#allocation6 + $0x1f0] sm:$0xff]
    %v4519 = vld [vmem:[#allocation6 + $0x1f8] sm:$0xff]
    %v4520 = vld [vmem:[#allocation6 + $0x200] sm:$0xff]
    %v4521 = vld [vmem:[#allocation6 + $0x208] sm:$0xff]
    %v4522 = vld [vmem:[#allocation6 + $0x210] sm:$0xff]
    %v4523 = vld [vmem:[#allocation6 + $0x218] sm:$0xff]
    %v4524 = vld [vmem:[#allocation6 + $0x220] sm:$0xff]
    %v4525 = vld [vmem:[#allocation6 + $0x228] sm:$0xff]
    %v4526 = vld [vmem:[#allocation6 + $0x230] sm:$0xff]
    %v4527 = vld [vmem:[#allocation6 + $0x238] sm:$0xff]
    %v4528 = vld [vmem:[#allocation6 + $0x240] sm:$0xff]
    %v4529 = vld [vmem:[#allocation6 + $0x248] sm:$0xff]
    %v4530 = vld [vmem:[#allocation6 + $0x250] sm:$0xff]
    %v4531 = vld [vmem:[#allocation6 + $0x258] sm:$0xff]
    %v4532 = vld [vmem:[#allocation6 + $0x260] sm:$0xff]
    %v4533 = vld [vmem:[#allocation6 + $0x268] sm:$0xff]
    %v4534 = vld [vmem:[#allocation6 + $0x270] sm:$0xff]
    %v4535 = vld [vmem:[#allocation6 + $0x278] sm:$0xff]
    %v4536 = vld [vmem:[#allocation6 + $0x280] sm:$0xff]
    %v4537 = vld [vmem:[#allocation6 + $0x288] sm:$0xff]
    %v4538 = vld [vmem:[#allocation6 + $0x290] sm:$0xff]
    %v4539 = vld [vmem:[#allocation6 + $0x298] sm:$0xff]
    %v4540 = vld [vmem:[#allocation6 + $0x2a0] sm:$0xff]
    %v4541 = vld [vmem:[#allocation6 + $0x2a8] sm:$0xff]
    %v4542 = vld [vmem:[#allocation6 + $0x2b0] sm:$0xff]
    %v4543 = vld [vmem:[#allocation6 + $0x2b8] sm:$0xff]
    %v4544 = vld [vmem:[#allocation6 + $0x2c0] sm:$0xff]
    %v4545 = vld [vmem:[#allocation6 + $0x2c8] sm:$0xff]
    %v4546 = vld [vmem:[#allocation6 + $0x2d0] sm:$0xff]
    %v4547 = vld [vmem:[#allocation6 + $0x2d8] sm:$0xff]
    %v4548 = vld [vmem:[#allocation6 + $0x2e0] sm:$0xff]
    %v4549 = vld [vmem:[#allocation6 + $0x2e8] sm:$0xff]
    %v4550 = vld [vmem:[#allocation6 + $0x2f0] sm:$0xff]
    %v4551 = vld [vmem:[#allocation6 + $0x2f8] sm:$0xff]
    %v4552 = vld [vmem:[#allocation6 + $0x300] sm:$0xff]
    %v4553 = vld [vmem:[#allocation6 + $0x308] sm:$0xff]
    %v4554 = vld [vmem:[#allocation6 + $0x310] sm:$0xff]
    %v4555 = vld [vmem:[#allocation6 + $0x318] sm:$0xff]
    %v4556 = vld [vmem:[#allocation6 + $0x320] sm:$0xff]
    %v4557 = vld [vmem:[#allocation6 + $0x328] sm:$0xff]
    %v4558 = vld [vmem:[#allocation6 + $0x330] sm:$0xff]
    %v4559 = vld [vmem:[#allocation6 + $0x338] sm:$0xff]
    %v4560 = vld [vmem:[#allocation6 + $0x340] sm:$0xff]
    %v4561 = vld [vmem:[#allocation6 + $0x348] sm:$0xff]
    %v4562 = vld [vmem:[#allocation6 + $0x350] sm:$0xff]
    %v4563 = vld [vmem:[#allocation6 + $0x358] sm:$0xff]
    %v4564 = vld [vmem:[#allocation6 + $0x360] sm:$0xff]
    %v4565 = vld [vmem:[#allocation6 + $0x368] sm:$0xff]
    %v4566 = vld [vmem:[#allocation6 + $0x370] sm:$0xff]
    %v4567 = vld [vmem:[#allocation6 + $0x378] sm:$0xff]
    %v4568 = vld [vmem:[#allocation6 + $0x380] sm:$0xff]
    %v4569 = vld [vmem:[#allocation6 + $0x388] sm:$0xff]
    %v4570 = vld [vmem:[#allocation6 + $0x390] sm:$0xff]
    %v4571 = vld [vmem:[#allocation6 + $0x398] sm:$0xff]
    %v4572 = vld [vmem:[#allocation6 + $0x3a0] sm:$0xff]
    %v4573 = vld [vmem:[#allocation6 + $0x3a8] sm:$0xff]
    %v4574 = vld [vmem:[#allocation6 + $0x3b0] sm:$0xff]
    %v4575 = vld [vmem:[#allocation6 + $0x3b8] sm:$0xff]
    %v4576 = vld [vmem:[#allocation6 + $0x3c0] sm:$0xff]
    %v4577 = vld [vmem:[#allocation6 + $0x3c8] sm:$0xff]
    %v4578 = vld [vmem:[#allocation6 + $0x3d0] sm:$0xff]
    %v4579 = vld [vmem:[#allocation6 + $0x3d8] sm:$0xff]
    %v4580 = vld [vmem:[#allocation6 + $0x3e0] sm:$0xff]
    %v4581 = vld [vmem:[#allocation6 + $0x3e8] sm:$0xff]
    %v4582 = vld [vmem:[#allocation6 + $0x3f0] sm:$0xff]
    %v4583 = vld [vmem:[#allocation6 + $0x3f8] sm:$0xff]
    %v4585 = vlaneseq
    %v4586 = vshrl.u32 %v4585, 7
    %v4587 = vsub.s32 0, %v4586
    %v4588 = vrot.slane %v80, %v4587
    %v4589 = vlaneseq
    %v4590 = vshrl.u32 %v4589, 7
    %v4591 = vsub.s32 1, %v4590
    %v4592 = vrot.slane %v80, %v4591
    %v4593 = vlaneseq
    %v4594 = vshrl.u32 %v4593, 7
    %v4595 = vsub.s32 2, %v4594
    %v4596 = vrot.slane %v80, %v4595
    %v4597 = vlaneseq
    %v4598 = vshrl.u32 %v4597, 7
    %v4599 = vsub.s32 3, %v4598
    %v4600 = vrot.slane %v80, %v4599
    %v4733 = vunpack.c.l.b16 %v4456
    %v4734 = vunpack.c.h.b16 %v4456
    %v4735 = vunpack.c.l.b16 %v4457
    %v4736 = vunpack.c.h.b16 %v4457
    %v4737 = vunpack.c.l.b16 %v4458
    %v4738 = vunpack.c.h.b16 %v4458
    %v4739 = vunpack.c.l.b16 %v4459
    %v4740 = vunpack.c.h.b16 %v4459
    %v4741 = vunpack.c.l.b16 %v4460
    %v4742 = vunpack.c.h.b16 %v4460
    %v4743 = vunpack.c.l.b16 %v4461
    %v4744 = vunpack.c.h.b16 %v4461
    %v4745 = vunpack.c.l.b16 %v4462
    %v4746 = vunpack.c.h.b16 %v4462
    %v4747 = vunpack.c.l.b16 %v4463
    %v4748 = vunpack.c.h.b16 %v4463
    %v4749 = vunpack.c.l.b16 %v4464
    %v4750 = vunpack.c.h.b16 %v4464
    %v4751 = vunpack.c.l.b16 %v4465
    %v4752 = vunpack.c.h.b16 %v4465
    %v4753 = vunpack.c.l.b16 %v4466
    %v4754 = vunpack.c.h.b16 %v4466
    %v4755 = vunpack.c.l.b16 %v4467
    %v4756 = vunpack.c.h.b16 %v4467
    %v4757 = vunpack.c.l.b16 %v4468
    %v4758 = vunpack.c.h.b16 %v4468
    %v4759 = vunpack.c.l.b16 %v4469
    %v4760 = vunpack.c.h.b16 %v4469
    %v4761 = vunpack.c.l.b16 %v4470
    %v4762 = vunpack.c.h.b16 %v4470
    %v4763 = vunpack.c.l.b16 %v4471
    %v4764 = vunpack.c.h.b16 %v4471
    %v4765 = vunpack.c.l.b16 %v4472
    %v4766 = vunpack.c.h.b16 %v4472
    %v4767 = vunpack.c.l.b16 %v4473
    %v4768 = vunpack.c.h.b16 %v4473
    %v4769 = vunpack.c.l.b16 %v4474
    %v4770 = vunpack.c.h.b16 %v4474
    %v4771 = vunpack.c.l.b16 %v4475
    %v4772 = vunpack.c.h.b16 %v4475
    %v4773 = vunpack.c.l.b16 %v4476
    %v4774 = vunpack.c.h.b16 %v4476
    %v4775 = vunpack.c.l.b16 %v4477
    %v4776 = vunpack.c.h.b16 %v4477
    %v4777 = vunpack.c.l.b16 %v4478
    %v4778 = vunpack.c.h.b16 %v4478
    %v4779 = vunpack.c.l.b16 %v4479
    %v4780 = vunpack.c.h.b16 %v4479
    %v4781 = vunpack.c.l.b16 %v4480
    %v4782 = vunpack.c.h.b16 %v4480
    %v4783 = vunpack.c.l.b16 %v4481
    %v4784 = vunpack.c.h.b16 %v4481
    %v4785 = vunpack.c.l.b16 %v4482
    %v4786 = vunpack.c.h.b16 %v4482
    %v4787 = vunpack.c.l.b16 %v4483
    %v4788 = vunpack.c.h.b16 %v4483
    %v4789 = vunpack.c.l.b16 %v4484
    %v4790 = vunpack.c.h.b16 %v4484
    %v4791 = vunpack.c.l.b16 %v4485
    %v4792 = vunpack.c.h.b16 %v4485
    %v4793 = vunpack.c.l.b16 %v4486
    %v4794 = vunpack.c.h.b16 %v4486
    %v4795 = vunpack.c.l.b16 %v4487
    %v4796 = vunpack.c.h.b16 %v4487
    %v4797 = vunpack.c.l.b16 %v4488
    %v4798 = vunpack.c.h.b16 %v4488
    %v4799 = vunpack.c.l.b16 %v4489
    %v4800 = vunpack.c.h.b16 %v4489
    %v4801 = vunpack.c.l.b16 %v4490
    %v4802 = vunpack.c.h.b16 %v4490
    %v4803 = vunpack.c.l.b16 %v4491
    %v4804 = vunpack.c.h.b16 %v4491
    %v4805 = vunpack.c.l.b16 %v4492
    %v4806 = vunpack.c.h.b16 %v4492
    %v4807 = vunpack.c.l.b16 %v4493
    %v4808 = vunpack.c.h.b16 %v4493
    %v4809 = vunpack.c.l.b16 %v4494
    %v4810 = vunpack.c.h.b16 %v4494
    %v4811 = vunpack.c.l.b16 %v4495
    %v4812 = vunpack.c.h.b16 %v4495
    %v4813 = vunpack.c.l.b16 %v4496
    %v4814 = vunpack.c.h.b16 %v4496
    %v4815 = vunpack.c.l.b16 %v4497
    %v4816 = vunpack.c.h.b16 %v4497
    %v4817 = vunpack.c.l.b16 %v4498
    %v4818 = vunpack.c.h.b16 %v4498
    %v4819 = vunpack.c.l.b16 %v4499
    %v4820 = vunpack.c.h.b16 %v4499
    %v4821 = vunpack.c.l.b16 %v4500
    %v4822 = vunpack.c.h.b16 %v4500
    %v4823 = vunpack.c.l.b16 %v4501
    %v4824 = vunpack.c.h.b16 %v4501
    %v4825 = vunpack.c.l.b16 %v4502
    %v4826 = vunpack.c.h.b16 %v4502
    %v4827 = vunpack.c.l.b16 %v4503
    %v4828 = vunpack.c.h.b16 %v4503
    %v4829 = vunpack.c.l.b16 %v4504
    %v4830 = vunpack.c.h.b16 %v4504
    %v4831 = vunpack.c.l.b16 %v4505
    %v4832 = vunpack.c.h.b16 %v4505
    %v4833 = vunpack.c.l.b16 %v4506
    %v4834 = vunpack.c.h.b16 %v4506
    %v4835 = vunpack.c.l.b16 %v4507
    %v4836 = vunpack.c.h.b16 %v4507
    %v4837 = vunpack.c.l.b16 %v4508
    %v4838 = vunpack.c.h.b16 %v4508
    %v4839 = vunpack.c.l.b16 %v4509
    %v4840 = vunpack.c.h.b16 %v4509
    %v4841 = vunpack.c.l.b16 %v4510
    %v4842 = vunpack.c.h.b16 %v4510
    %v4843 = vunpack.c.l.b16 %v4511
    %v4844 = vunpack.c.h.b16 %v4511
    %v4845 = vunpack.c.l.b16 %v4512
    %v4846 = vunpack.c.h.b16 %v4512
    %v4847 = vunpack.c.l.b16 %v4513
    %v4848 = vunpack.c.h.b16 %v4513
    %v4849 = vunpack.c.l.b16 %v4514
    %v4850 = vunpack.c.h.b16 %v4514
    %v4851 = vunpack.c.l.b16 %v4515
    %v4852 = vunpack.c.h.b16 %v4515
    %v4853 = vunpack.c.l.b16 %v4516
    %v4854 = vunpack.c.h.b16 %v4516
    %v4855 = vunpack.c.l.b16 %v4517
    %v4856 = vunpack.c.h.b16 %v4517
    %v4857 = vunpack.c.l.b16 %v4518
    %v4858 = vunpack.c.h.b16 %v4518
    %v4859 = vunpack.c.l.b16 %v4519
    %v4860 = vunpack.c.h.b16 %v4519
    %v4861 = vunpack.c.l.b16 %v4520
    %v4862 = vunpack.c.h.b16 %v4520
    %v4863 = vunpack.c.l.b16 %v4521
    %v4864 = vunpack.c.h.b16 %v4521
    %v4865 = vunpack.c.l.b16 %v4522
    %v4866 = vunpack.c.h.b16 %v4522
    %v4867 = vunpack.c.l.b16 %v4523
    %v4868 = vunpack.c.h.b16 %v4523
    %v4869 = vunpack.c.l.b16 %v4524
    %v4870 = vunpack.c.h.b16 %v4524
    %v4871 = vunpack.c.l.b16 %v4525
    %v4872 = vunpack.c.h.b16 %v4525
    %v4873 = vunpack.c.l.b16 %v4526
    %v4874 = vunpack.c.h.b16 %v4526
    %v4875 = vunpack.c.l.b16 %v4527
    %v4876 = vunpack.c.h.b16 %v4527
    %v4877 = vunpack.c.l.b16 %v4528
    %v4878 = vunpack.c.h.b16 %v4528
    %v4879 = vunpack.c.l.b16 %v4529
    %v4880 = vunpack.c.h.b16 %v4529
    %v4881 = vunpack.c.l.b16 %v4530
    %v4882 = vunpack.c.h.b16 %v4530
    %v4883 = vunpack.c.l.b16 %v4531
    %v4884 = vunpack.c.h.b16 %v4531
    %v4885 = vunpack.c.l.b16 %v4532
    %v4886 = vunpack.c.h.b16 %v4532
    %v4887 = vunpack.c.l.b16 %v4533
    %v4888 = vunpack.c.h.b16 %v4533
    %v4889 = vunpack.c.l.b16 %v4534
    %v4890 = vunpack.c.h.b16 %v4534
    %v4891 = vunpack.c.l.b16 %v4535
    %v4892 = vunpack.c.h.b16 %v4535
    %v4893 = vunpack.c.l.b16 %v4536
    %v4894 = vunpack.c.h.b16 %v4536
    %v4895 = vunpack.c.l.b16 %v4537
    %v4896 = vunpack.c.h.b16 %v4537
    %v4897 = vunpack.c.l.b16 %v4538
    %v4898 = vunpack.c.h.b16 %v4538
    %v4899 = vunpack.c.l.b16 %v4539
    %v4900 = vunpack.c.h.b16 %v4539
    %v4901 = vunpack.c.l.b16 %v4540
    %v4902 = vunpack.c.h.b16 %v4540
    %v4903 = vunpack.c.l.b16 %v4541
    %v4904 = vunpack.c.h.b16 %v4541
    %v4905 = vunpack.c.l.b16 %v4542
    %v4906 = vunpack.c.h.b16 %v4542
    %v4907 = vunpack.c.l.b16 %v4543
    %v4908 = vunpack.c.h.b16 %v4543
    %v4909 = vunpack.c.l.b16 %v4544
    %v4910 = vunpack.c.h.b16 %v4544
    %v4911 = vunpack.c.l.b16 %v4545
    %v4912 = vunpack.c.h.b16 %v4545
    %v4913 = vunpack.c.l.b16 %v4546
    %v4914 = vunpack.c.h.b16 %v4546
    %v4915 = vunpack.c.l.b16 %v4547
    %v4916 = vunpack.c.h.b16 %v4547
    %v4917 = vunpack.c.l.b16 %v4548
    %v4918 = vunpack.c.h.b16 %v4548
    %v4919 = vunpack.c.l.b16 %v4549
    %v4920 = vunpack.c.h.b16 %v4549
    %v4921 = vunpack.c.l.b16 %v4550
    %v4922 = vunpack.c.h.b16 %v4550
    %v4923 = vunpack.c.l.b16 %v4551
    %v4924 = vunpack.c.h.b16 %v4551
    %v4925 = vunpack.c.l.b16 %v4552
    %v4926 = vunpack.c.h.b16 %v4552
    %v4927 = vunpack.c.l.b16 %v4553
    %v4928 = vunpack.c.h.b16 %v4553
    %v4929 = vunpack.c.l.b16 %v4554
    %v4930 = vunpack.c.h.b16 %v4554
    %v4931 = vunpack.c.l.b16 %v4555
    %v4932 = vunpack.c.h.b16 %v4555
    %v4933 = vunpack.c.l.b16 %v4556
    %v4934 = vunpack.c.h.b16 %v4556
    %v4935 = vunpack.c.l.b16 %v4557
    %v4936 = vunpack.c.h.b16 %v4557
    %v4937 = vunpack.c.l.b16 %v4558
    %v4938 = vunpack.c.h.b16 %v4558
    %v4939 = vunpack.c.l.b16 %v4559
    %v4940 = vunpack.c.h.b16 %v4559
    %v4941 = vunpack.c.l.b16 %v4560
    %v4942 = vunpack.c.h.b16 %v4560
    %v4943 = vunpack.c.l.b16 %v4561
    %v4944 = vunpack.c.h.b16 %v4561
    %v4945 = vunpack.c.l.b16 %v4562
    %v4946 = vunpack.c.h.b16 %v4562
    %v4947 = vunpack.c.l.b16 %v4563
    %v4948 = vunpack.c.h.b16 %v4563
    %v4949 = vunpack.c.l.b16 %v4564
    %v4950 = vunpack.c.h.b16 %v4564
    %v4951 = vunpack.c.l.b16 %v4565
    %v4952 = vunpack.c.h.b16 %v4565
    %v4953 = vunpack.c.l.b16 %v4566
    %v4954 = vunpack.c.h.b16 %v4566
    %v4955 = vunpack.c.l.b16 %v4567
    %v4956 = vunpack.c.h.b16 %v4567
    %v4957 = vunpack.c.l.b16 %v4568
    %v4958 = vunpack.c.h.b16 %v4568
    %v4959 = vunpack.c.l.b16 %v4569
    %v4960 = vunpack.c.h.b16 %v4569
    %v4961 = vunpack.c.l.b16 %v4570
    %v4962 = vunpack.c.h.b16 %v4570
    %v4963 = vunpack.c.l.b16 %v4571
    %v4964 = vunpack.c.h.b16 %v4571
    %v4965 = vunpack.c.l.b16 %v4572
    %v4966 = vunpack.c.h.b16 %v4572
    %v4967 = vunpack.c.l.b16 %v4573
    %v4968 = vunpack.c.h.b16 %v4573
    %v4969 = vunpack.c.l.b16 %v4574
    %v4970 = vunpack.c.h.b16 %v4574
    %v4971 = vunpack.c.l.b16 %v4575
    %v4972 = vunpack.c.h.b16 %v4575
    %v4973 = vunpack.c.l.b16 %v4576
    %v4974 = vunpack.c.h.b16 %v4576
    %v4975 = vunpack.c.l.b16 %v4577
    %v4976 = vunpack.c.h.b16 %v4577
    %v4977 = vunpack.c.l.b16 %v4578
    %v4978 = vunpack.c.h.b16 %v4578
    %v4979 = vunpack.c.l.b16 %v4579
    %v4980 = vunpack.c.h.b16 %v4579
    %v4981 = vunpack.c.l.b16 %v4580
    %v4982 = vunpack.c.h.b16 %v4580
    %v4983 = vunpack.c.l.b16 %v4581
    %v4984 = vunpack.c.h.b16 %v4581
    %v4985 = vunpack.c.l.b16 %v4582
    %v4986 = vunpack.c.h.b16 %v4582
    %v4987 = vunpack.c.l.b16 %v4583
    %v4988 = vunpack.c.h.b16 %v4583
    %v4989 = vpack.c.b16 %v4737, %v4733
    %v4990 = vpack.c.b16 %v4738, %v4734
    %v4991 = vpack.c.b16 %v4739, %v4735
    %v4992 = vpack.c.b16 %v4740, %v4736
    %v4993 = vpack.c.b16 %v4745, %v4741
    %v4994 = vpack.c.b16 %v4746, %v4742
    %v4995 = vpack.c.b16 %v4747, %v4743
    %v4996 = vpack.c.b16 %v4748, %v4744
    %v4997 = vpack.c.b16 %v4753, %v4749
    %v4998 = vpack.c.b16 %v4754, %v4750
    %v4999 = vpack.c.b16 %v4755, %v4751
    %v5000 = vpack.c.b16 %v4756, %v4752
    %v5001 = vpack.c.b16 %v4761, %v4757
    %v5002 = vpack.c.b16 %v4762, %v4758
    %v5003 = vpack.c.b16 %v4763, %v4759
    %v5004 = vpack.c.b16 %v4764, %v4760
    %v5005 = vpack.c.b16 %v4769, %v4765
    %v5006 = vpack.c.b16 %v4770, %v4766
    %v5007 = vpack.c.b16 %v4771, %v4767
    %v5008 = vpack.c.b16 %v4772, %v4768
    %v5009 = vpack.c.b16 %v4777, %v4773
    %v5010 = vpack.c.b16 %v4778, %v4774
    %v5011 = vpack.c.b16 %v4779, %v4775
    %v5012 = vpack.c.b16 %v4780, %v4776
    %v5013 = vpack.c.b16 %v4785, %v4781
    %v5014 = vpack.c.b16 %v4786, %v4782
    %v5015 = vpack.c.b16 %v4787, %v4783
    %v5016 = vpack.c.b16 %v4788, %v4784
    %v5017 = vpack.c.b16 %v4793, %v4789
    %v5018 = vpack.c.b16 %v4794, %v4790
    %v5019 = vpack.c.b16 %v4795, %v4791
    %v5020 = vpack.c.b16 %v4796, %v4792
    %v5021 = vpack.c.b16 %v4801, %v4797
    %v5022 = vpack.c.b16 %v4802, %v4798
    %v5023 = vpack.c.b16 %v4803, %v4799
    %v5024 = vpack.c.b16 %v4804, %v4800
    %v5025 = vpack.c.b16 %v4809, %v4805
    %v5026 = vpack.c.b16 %v4810, %v4806
    %v5027 = vpack.c.b16 %v4811, %v4807
    %v5028 = vpack.c.b16 %v4812, %v4808
    %v5029 = vpack.c.b16 %v4817, %v4813
    %v5030 = vpack.c.b16 %v4818, %v4814
    %v5031 = vpack.c.b16 %v4819, %v4815
    %v5032 = vpack.c.b16 %v4820, %v4816
    %v5033 = vpack.c.b16 %v4825, %v4821
    %v5034 = vpack.c.b16 %v4826, %v4822
    %v5035 = vpack.c.b16 %v4827, %v4823
    %v5036 = vpack.c.b16 %v4828, %v4824
    %v5037 = vpack.c.b16 %v4833, %v4829
    %v5038 = vpack.c.b16 %v4834, %v4830
    %v5039 = vpack.c.b16 %v4835, %v4831
    %v5040 = vpack.c.b16 %v4836, %v4832
    %v5041 = vpack.c.b16 %v4841, %v4837
    %v5042 = vpack.c.b16 %v4842, %v4838
    %v5043 = vpack.c.b16 %v4843, %v4839
    %v5044 = vpack.c.b16 %v4844, %v4840
    %v5045 = vpack.c.b16 %v4849, %v4845
    %v5046 = vpack.c.b16 %v4850, %v4846
    %v5047 = vpack.c.b16 %v4851, %v4847
    %v5048 = vpack.c.b16 %v4852, %v4848
    %v5049 = vpack.c.b16 %v4857, %v4853
    %v5050 = vpack.c.b16 %v4858, %v4854
    %v5051 = vpack.c.b16 %v4859, %v4855
    %v5052 = vpack.c.b16 %v4860, %v4856
    %v5053 = vpack.c.b16 %v4865, %v4861
    %v5054 = vpack.c.b16 %v4866, %v4862
    %v5055 = vpack.c.b16 %v4867, %v4863
    %v5056 = vpack.c.b16 %v4868, %v4864
    %v5057 = vpack.c.b16 %v4873, %v4869
    %v5058 = vpack.c.b16 %v4874, %v4870
    %v5059 = vpack.c.b16 %v4875, %v4871
    %v5060 = vpack.c.b16 %v4876, %v4872
    %v5061 = vpack.c.b16 %v4881, %v4877
    %v5062 = vpack.c.b16 %v4882, %v4878
    %v5063 = vpack.c.b16 %v4883, %v4879
    %v5064 = vpack.c.b16 %v4884, %v4880
    %v5065 = vpack.c.b16 %v4889, %v4885
    %v5066 = vpack.c.b16 %v4890, %v4886
    %v5067 = vpack.c.b16 %v4891, %v4887
    %v5068 = vpack.c.b16 %v4892, %v4888
    %v5069 = vpack.c.b16 %v4897, %v4893
    %v5070 = vpack.c.b16 %v4898, %v4894
    %v5071 = vpack.c.b16 %v4899, %v4895
    %v5072 = vpack.c.b16 %v4900, %v4896
    %v5073 = vpack.c.b16 %v4905, %v4901
    %v5074 = vpack.c.b16 %v4906, %v4902
    %v5075 = vpack.c.b16 %v4907, %v4903
    %v5076 = vpack.c.b16 %v4908, %v4904
    %v5077 = vpack.c.b16 %v4913, %v4909
    %v5078 = vpack.c.b16 %v4914, %v4910
    %v5079 = vpack.c.b16 %v4915, %v4911
    %v5080 = vpack.c.b16 %v4916, %v4912
    %v5081 = vpack.c.b16 %v4921, %v4917
    %v5082 = vpack.c.b16 %v4922, %v4918
    %v5083 = vpack.c.b16 %v4923, %v4919
    %v5084 = vpack.c.b16 %v4924, %v4920
    %v5085 = vpack.c.b16 %v4929, %v4925
    %v5086 = vpack.c.b16 %v4930, %v4926
    %v5087 = vpack.c.b16 %v4931, %v4927
    %v5088 = vpack.c.b16 %v4932, %v4928
    %v5089 = vpack.c.b16 %v4937, %v4933
    %v5090 = vpack.c.b16 %v4938, %v4934
    %v5091 = vpack.c.b16 %v4939, %v4935
    %v5092 = vpack.c.b16 %v4940, %v4936
    %v5093 = vpack.c.b16 %v4945, %v4941
    %v5094 = vpack.c.b16 %v4946, %v4942
    %v5095 = vpack.c.b16 %v4947, %v4943
    %v5096 = vpack.c.b16 %v4948, %v4944
    %v5097 = vpack.c.b16 %v4953, %v4949
    %v5098 = vpack.c.b16 %v4954, %v4950
    %v5099 = vpack.c.b16 %v4955, %v4951
    %v5100 = vpack.c.b16 %v4956, %v4952
    %v5101 = vpack.c.b16 %v4961, %v4957
    %v5102 = vpack.c.b16 %v4962, %v4958
    %v5103 = vpack.c.b16 %v4963, %v4959
    %v5104 = vpack.c.b16 %v4964, %v4960
    %v5105 = vpack.c.b16 %v4969, %v4965
    %v5106 = vpack.c.b16 %v4970, %v4966
    %v5107 = vpack.c.b16 %v4971, %v4967
    %v5108 = vpack.c.b16 %v4972, %v4968
    %v5109 = vpack.c.b16 %v4977, %v4973
    %v5110 = vpack.c.b16 %v4978, %v4974
    %v5111 = vpack.c.b16 %v4979, %v4975
    %v5112 = vpack.c.b16 %v4980, %v4976
    %v5113 = vpack.c.b16 %v4985, %v4981
    %v5114 = vpack.c.b16 %v4986, %v4982
    %v5115 = vpack.c.b16 %v4987, %v4983
    %v5116 = vpack.c.b16 %v4988, %v4984
    %5245 = vmatprep.subr.bf16.mxu0 %v4990
    %5246 = vmatpush1.bf16.msra.mxu0 %v4989
    %5247 = vmatprep.subr.bf16.mxu0 %v4994
    %5248 = vmatpush1.bf16.msra.mxu0 %v4993
    %5249 = vmatprep.subr.bf16.mxu0 %v4998
    %5250 = vmatpush1.bf16.msra.mxu0 %v4997
    %5251 = vmatprep.subr.bf16.mxu0 %v5002
    %5252 = vmatpush1.bf16.msra.mxu0 %v5001
    %5253 = vmatprep.subr.bf16.mxu0 %v5006
    %5254 = vmatpush1.bf16.msra.mxu0 %v5005
    %5255 = vmatprep.subr.bf16.mxu0 %v5010
    %5256 = vmatpush1.bf16.msra.mxu0 %v5009
    %5257 = vmatprep.subr.bf16.mxu0 %v5014
    %5258 = vmatpush1.bf16.msra.mxu0 %v5013
    %5259 = vmatprep.subr.bf16.mxu0 %v5018
    %5260 = vmatpush1.bf16.msra.mxu0 %v5017
    %5261 = vmatprep.subr.bf16.mxu0 %v5022
    %5262 = vmatpush1.bf16.msra.mxu0 %v5021
    %5263 = vmatprep.subr.bf16.mxu0 %v5026
    %5264 = vmatpush1.bf16.msra.mxu0 %v5025
    %5265 = vmatprep.subr.bf16.mxu0 %v5030
    %5266 = vmatpush1.bf16.msra.mxu0 %v5029
    %5267 = vmatprep.subr.bf16.mxu0 %v5034
    %5268 = vmatpush1.bf16.msra.mxu0 %v5033
    %5269 = vmatprep.subr.bf16.mxu0 %v5038
    %5270 = vmatpush1.bf16.msra.mxu0 %v5037
    %5271 = vmatprep.subr.bf16.mxu0 %v5042
    %5272 = vmatpush1.bf16.msra.mxu0 %v5041
    %5273 = vmatprep.subr.bf16.mxu0 %v5046
    %5274 = vmatpush1.bf16.msra.mxu0 %v5045
    %5275 = vmatprep.subr.bf16.mxu0 %v5050
    %5276 = vmatpush1.bf16.msra.mxu0 %v5049
    %5277 = vmatprep.mubr.bf16.mxu0 %v4453
    %5278 = vmatmul.mubr.bf16.gmra.mrb[0].mxu0 %v4452
    %v5279 = vpop.f32.mrb[0].mxu0
    %v5280 = vadd.f32 %v4588, %v5279
    %v5281 = vpop.f32.mrb[0].mxu0
    %v5282 = vadd.f32 %v4592, %v5281
    %v5283 = vpop.f32.mrb[0].mxu0
    %v5284 = vadd.f32 %v4588, %v5283
    %v5285 = vpop.f32.mrb[0].mxu0
    %v5286 = vadd.f32 %v4592, %v5285
    %5287 = vdwg.mxu0
    %5288 = vmatprep.subr.bf16.mxu0 %v5054
    %5289 = vmatpush1.bf16.msra.mxu0 %v5053
    %5290 = vmatprep.subr.bf16.mxu0 %v5058
    %5291 = vmatpush1.bf16.msra.mxu0 %v5057
    %5292 = vmatprep.subr.bf16.mxu0 %v5062
    %5293 = vmatpush1.bf16.msra.mxu0 %v5061
    %5294 = vmatprep.subr.bf16.mxu0 %v5066
    %5295 = vmatpush1.bf16.msra.mxu0 %v5065
    %5296 = vmatprep.subr.bf16.mxu0 %v5070
    %5297 = vmatpush1.bf16.msra.mxu0 %v5069
    %5298 = vmatprep.subr.bf16.mxu0 %v5074
    %5299 = vmatpush1.bf16.msra.mxu0 %v5073
    %5300 = vmatprep.subr.bf16.mxu0 %v5078
    %5301 = vmatpush1.bf16.msra.mxu0 %v5077
    %5302 = vmatprep.subr.bf16.mxu0 %v5082
    %5303 = vmatpush1.bf16.msra.mxu0 %v5081
    %5304 = vmatprep.subr.bf16.mxu0 %v5086
    %5305 = vmatpush1.bf16.msra.mxu0 %v5085
    %5306 = vmatprep.subr.bf16.mxu0 %v5090
    %5307 = vmatpush1.bf16.msra.mxu0 %v5089
    %5308 = vmatprep.subr.bf16.mxu0 %v5094
    %5309 = vmatpush1.bf16.msra.mxu0 %v5093
    %5310 = vmatprep.subr.bf16.mxu0 %v5098
    %5311 = vmatpush1.bf16.msra.mxu0 %v5097
    %5312 = vmatprep.subr.bf16.mxu0 %v5102
    %5313 = vmatpush1.bf16.msra.mxu0 %v5101
    %5314 = vmatprep.subr.bf16.mxu0 %v5106
    %5315 = vmatpush1.bf16.msra.mxu0 %v5105
    %5316 = vmatprep.subr.bf16.mxu0 %v5110
    %5317 = vmatpush1.bf16.msra.mxu0 %v5109
    %5318 = vmatprep.subr.bf16.mxu0 %v5114
    %5319 = vmatpush1.bf16.msra.mxu0 %v5113
    %5320 = vmatprep.mubr.bf16.mxu0 %v4455
    %5321 = vmatmul.mubr.bf16.gmra.mrb[0].mxu0 %v4454
    %v5322 = vpop.f32.mrb[0].mxu0
    %v5323 = vadd.f32 %v5280, %v5322
    %v5324 = vpop.f32.mrb[0].mxu0
    %v5325 = vadd.f32 %v5282, %v5324
    %v5326 = vpop.f32.mrb[0].mxu0
    %v5327 = vadd.f32 %v5284, %v5326
    %v5328 = vpop.f32.mrb[0].mxu0
    %v5329 = vadd.f32 %v5286, %v5328
    %5330 = vdwg.mxu0
    %5331 = vmatprep.subr.bf16.mxu0 %v4992
    %5332 = vmatpush1.bf16.msra.mxu0 %v4991
    %5333 = vmatprep.subr.bf16.mxu0 %v4996
    %5334 = vmatpush1.bf16.msra.mxu0 %v4995
    %5335 = vmatprep.subr.bf16.mxu0 %v5000
    %5336 = vmatpush1.bf16.msra.mxu0 %v4999
    %5337 = vmatprep.subr.bf16.mxu0 %v5004
    %5338 = vmatpush1.bf16.msra.mxu0 %v5003
    %5339 = vmatprep.subr.bf16.mxu0 %v5008
    %5340 = vmatpush1.bf16.msra.mxu0 %v5007
    %5341 = vmatprep.subr.bf16.mxu0 %v5012
    %5342 = vmatpush1.bf16.msra.mxu0 %v5011
    %5343 = vmatprep.subr.bf16.mxu0 %v5016
    %5344 = vmatpush1.bf16.msra.mxu0 %v5015
    %5345 = vmatprep.subr.bf16.mxu0 %v5020
    %5346 = vmatpush1.bf16.msra.mxu0 %v5019
    %5347 = vmatprep.subr.bf16.mxu0 %v5024
    %5348 = vmatpush1.bf16.msra.mxu0 %v5023
    %5349 = vmatprep.subr.bf16.mxu0 %v5028
    %5350 = vmatpush1.bf16.msra.mxu0 %v5027
    %5351 = vmatprep.subr.bf16.mxu0 %v5032
    %5352 = vmatpush1.bf16.msra.mxu0 %v5031
    %5353 = vmatprep.subr.bf16.mxu0 %v5036
    %5354 = vmatpush1.bf16.msra.mxu0 %v5035
    %5355 = vmatprep.subr.bf16.mxu0 %v5040
    %5356 = vmatpush1.bf16.msra.mxu0 %v5039
    %5357 = vmatprep.subr.bf16.mxu0 %v5044
    %5358 = vmatpush1.bf16.msra.mxu0 %v5043
    %5359 = vmatprep.subr.bf16.mxu0 %v5048
    %5360 = vmatpush1.bf16.msra.mxu0 %v5047
    %5361 = vmatprep.subr.bf16.mxu0 %v5052
    %5362 = vmatpush1.bf16.msra.mxu0 %v5051
    %5363 = vmatprep.mubr.bf16.mxu0 %v4453
    %5364 = vmatmul.mubr.bf16.gmra.mrb[0].mxu0 %v4452
    %v5365 = vpop.f32.mrb[0].mxu0
    %v5366 = vadd.f32 %v4596, %v5365
    %v5367 = vpop.f32.mrb[0].mxu0
    %v5368 = vadd.f32 %v4600, %v5367
    %v5369 = vpop.f32.mrb[0].mxu0
    %v5370 = vadd.f32 %v4596, %v5369
    %v5371 = vpop.f32.mrb[0].mxu0
    %v5372 = vadd.f32 %v4600, %v5371
    %5373 = vdwg.mxu0
    %5374 = vmatprep.subr.bf16.mxu0 %v5056
    %5375 = vmatpush1.bf16.msra.mxu0 %v5055
    %5376 = vmatprep.subr.bf16.mxu0 %v5060
    %5377 = vmatpush1.bf16.msra.mxu0 %v5059
    %5378 = vmatprep.subr.bf16.mxu0 %v5064
    %5379 = vmatpush1.bf16.msra.mxu0 %v5063
    %5380 = vmatprep.subr.bf16.mxu0 %v5068
    %5381 = vmatpush1.bf16.msra.mxu0 %v5067
    %5382 = vmatprep.subr.bf16.mxu0 %v5072
    %5383 = vmatpush1.bf16.msra.mxu0 %v5071
    %5384 = vmatprep.subr.bf16.mxu0 %v5076
    %5385 = vmatpush1.bf16.msra.mxu0 %v5075
    %5386 = vmatprep.subr.bf16.mxu0 %v5080
    %5387 = vmatpush1.bf16.msra.mxu0 %v5079
    %5388 = vmatprep.subr.bf16.mxu0 %v5084
    %5389 = vmatpush1.bf16.msra.mxu0 %v5083
    %5390 = vmatprep.subr.bf16.mxu0 %v5088
    %5391 = vmatpush1.bf16.msra.mxu0 %v5087
    %5392 = vmatprep.subr.bf16.mxu0 %v5092
    %5393 = vmatpush1.bf16.msra.mxu0 %v5091
    %5394 = vmatprep.subr.bf16.mxu0 %v5096
    %5395 = vmatpush1.bf16.msra.mxu0 %v5095
    %5396 = vmatprep.subr.bf16.mxu0 %v5100
    %5397 = vmatpush1.bf16.msra.mxu0 %v5099
    %5398 = vmatprep.subr.bf16.mxu0 %v5104
    %5399 = vmatpush1.bf16.msra.mxu0 %v5103
    %5400 = vmatprep.subr.bf16.mxu0 %v5108
    %5401 = vmatpush1.bf16.msra.mxu0 %v5107
    %5402 = vmatprep.subr.bf16.mxu0 %v5112
    %5403 = vmatpush1.bf16.msra.mxu0 %v5111
    %5404 = vmatprep.subr.bf16.mxu0 %v5116
    %5405 = vmatpush1.bf16.msra.mxu0 %v5115
    %5406 = vmatprep.mubr.bf16.mxu0 %v4455
    %5407 = vmatmul.mubr.bf16.gmra.mrb[0].mxu0 %v4454
    %v5408 = vpop.f32.mrb[0].mxu0
    %v5409 = vadd.f32 %v5366, %v5408
    %v5410 = vpop.f32.mrb[0].mxu0
    %v5411 = vadd.f32 %v5368, %v5410
    %v5412 = vpop.f32.mrb[0].mxu0
    %v5413 = vadd.f32 %v5370, %v5412
    %v5414 = vpop.f32.mrb[0].mxu0
    %v5415 = vadd.f32 %v5372, %v5414
    %5416 = vdwg.mxu0
    %v5417 = vmax.f32 %v5323, 0.0
    %v5418 = vmax.f32 %v5325, 0.0
    %v5419 = vmax.f32 %v5409, 0.0
    %v5420 = vmax.f32 %v5411, 0.0
    %v5421 = vmax.f32 %v5327, 0.0
    %v5422 = vmax.f32 %v5329, 0.0
    %v5423 = vmax.f32 %v5413, 0.0
    %v5424 = vmax.f32 %v5415, 0.0
    %v5425 = vpack.c.bf16 %v5421, %v5417
    %v5426 = vpack.c.bf16 %v5422, %v5418
    %v5427 = vpack.c.bf16 %v5423, %v5419
    %v5428 = vpack.c.bf16 %v5424, %v5420
    %v5429 = vld [vmem:[%s4] sm:$0xf]
    %v5430 = vld [vmem:[%s4 + $0x4] sm:$0xf]
    %v5431 = vld [vmem:[%s4 + $0x8] sm:$0xf]
    %v5432 = vld [vmem:[%s4 + $0xc] sm:$0xf]
    %v5433 = vld [vmem:[%s4 + $0x10] sm:$0xf]
    %v5434 = vld [vmem:[%s4 + $0x14] sm:$0xf]
    %v5435 = vld [vmem:[%s4 + $0x18] sm:$0xf]
    %v5436 = vld [vmem:[%s4 + $0x1c] sm:$0xf]
    %v5437 = vld [vmem:[%s4 + $0x20] sm:$0xf]
    %v5438 = vld [vmem:[%s4 + $0x24] sm:$0xf]
    %v5439 = vld [vmem:[%s4 + $0x28] sm:$0xf]
    %v5440 = vld [vmem:[%s4 + $0x2c] sm:$0xf]
    %v5441 = vld [vmem:[%s4 + $0x30] sm:$0xf]
    %v5442 = vld [vmem:[%s4 + $0x34] sm:$0xf]
    %v5443 = vld [vmem:[%s4 + $0x38] sm:$0xf]
    %v5444 = vld [vmem:[%s4 + $0x3c] sm:$0xf]
    %v5445 = vld [vmem:[%s4 + $0x40] sm:$0xf]
    %v5446 = vld [vmem:[%s4 + $0x44] sm:$0xf]
    %v5447 = vld [vmem:[%s4 + $0x48] sm:$0xf]
    %v5448 = vld [vmem:[%s4 + $0x4c] sm:$0xf]
    %v5449 = vld [vmem:[%s4 + $0x50] sm:$0xf]
    %v5450 = vld [vmem:[%s4 + $0x54] sm:$0xf]
    %v5451 = vld [vmem:[%s4 + $0x58] sm:$0xf]
    %v5452 = vld [vmem:[%s4 + $0x5c] sm:$0xf]
    %v5453 = vld [vmem:[%s4 + $0x60] sm:$0xf]
    %v5454 = vld [vmem:[%s4 + $0x64] sm:$0xf]
    %v5455 = vld [vmem:[%s4 + $0x68] sm:$0xf]
    %v5456 = vld [vmem:[%s4 + $0x6c] sm:$0xf]
    %v5457 = vld [vmem:[%s4 + $0x70] sm:$0xf]
    %v5458 = vld [vmem:[%s4 + $0x74] sm:$0xf]
    %v5459 = vld [vmem:[%s4 + $0x78] sm:$0xf]
    %v5460 = vld [vmem:[%s4 + $0x7c] sm:$0xf]
    %v5461 = vld [vmem:[%s4 + $0x80] sm:$0xf]
    %v5462 = vld [vmem:[%s4 + $0x84] sm:$0xf]
    %v5463 = vld [vmem:[%s4 + $0x88] sm:$0xf]
    %v5464 = vld [vmem:[%s4 + $0x8c] sm:$0xf]
    %v5465 = vld [vmem:[%s4 + $0x90] sm:$0xf]
    %v5466 = vld [vmem:[%s4 + $0x94] sm:$0xf]
    %v5467 = vld [vmem:[%s4 + $0x98] sm:$0xf]
    %v5468 = vld [vmem:[%s4 + $0x9c] sm:$0xf]
    %v5469 = vld [vmem:[%s4 + $0xa0] sm:$0xf]
    %v5470 = vld [vmem:[%s4 + $0xa4] sm:$0xf]
    %v5471 = vld [vmem:[%s4 + $0xa8] sm:$0xf]
    %v5472 = vld [vmem:[%s4 + $0xac] sm:$0xf]
    %v5473 = vld [vmem:[%s4 + $0xb0] sm:$0xf]
    %v5474 = vld [vmem:[%s4 + $0xb4] sm:$0xf]
    %v5475 = vld [vmem:[%s4 + $0xb8] sm:$0xf]
    %v5476 = vld [vmem:[%s4 + $0xbc] sm:$0xf]
    %v5477 = vld [vmem:[%s4 + $0xc0] sm:$0xf]
    %v5478 = vld [vmem:[%s4 + $0xc4] sm:$0xf]
    %v5479 = vld [vmem:[%s4 + $0xc8] sm:$0xf]
    %v5480 = vld [vmem:[%s4 + $0xcc] sm:$0xf]
    %v5481 = vld [vmem:[%s4 + $0xd0] sm:$0xf]
    %v5482 = vld [vmem:[%s4 + $0xd4] sm:$0xf]
    %v5483 = vld [vmem:[%s4 + $0xd8] sm:$0xf]
    %v5484 = vld [vmem:[%s4 + $0xdc] sm:$0xf]
    %v5485 = vld [vmem:[%s4 + $0xe0] sm:$0xf]
    %v5486 = vld [vmem:[%s4 + $0xe4] sm:$0xf]
    %v5487 = vld [vmem:[%s4 + $0xe8] sm:$0xf]
    %v5488 = vld [vmem:[%s4 + $0xec] sm:$0xf]
    %v5489 = vld [vmem:[%s4 + $0xf0] sm:$0xf]
    %v5490 = vld [vmem:[%s4 + $0xf4] sm:$0xf]
    %v5491 = vld [vmem:[%s4 + $0xf8] sm:$0xf]
    %v5492 = vld [vmem:[%s4 + $0xfc] sm:$0xf]
    %v5494 = vlaneseq
    %v5495 = vshrl.u32 %v5494, 7
    %v5496 = vsub.s32 0, %v5495
    %v5497 = vrot.slane %v81, %v5496
    %v5563 = vunpack.c.l.b16 %v5429
    %v5564 = vunpack.c.l.b16 %v5430
    %v5565 = vunpack.c.l.b16 %v5431
    %v5566 = vunpack.c.l.b16 %v5432
    %v5567 = vunpack.c.l.b16 %v5433
    %v5568 = vunpack.c.l.b16 %v5434
    %v5569 = vunpack.c.l.b16 %v5435
    %v5570 = vunpack.c.l.b16 %v5436
    %v5571 = vunpack.c.l.b16 %v5437
    %v5572 = vunpack.c.l.b16 %v5438
    %v5573 = vunpack.c.l.b16 %v5439
    %v5574 = vunpack.c.l.b16 %v5440
    %v5575 = vunpack.c.l.b16 %v5441
    %v5576 = vunpack.c.l.b16 %v5442
    %v5577 = vunpack.c.l.b16 %v5443
    %v5578 = vunpack.c.l.b16 %v5444
    %v5579 = vunpack.c.l.b16 %v5445
    %v5580 = vunpack.c.l.b16 %v5446
    %v5581 = vunpack.c.l.b16 %v5447
    %v5582 = vunpack.c.l.b16 %v5448
    %v5583 = vunpack.c.l.b16 %v5449
    %v5584 = vunpack.c.l.b16 %v5450
    %v5585 = vunpack.c.l.b16 %v5451
    %v5586 = vunpack.c.l.b16 %v5452
    %v5587 = vunpack.c.l.b16 %v5453
    %v5588 = vunpack.c.l.b16 %v5454
    %v5589 = vunpack.c.l.b16 %v5455
    %v5590 = vunpack.c.l.b16 %v5456
    %v5591 = vunpack.c.l.b16 %v5457
    %v5592 = vunpack.c.l.b16 %v5458
    %v5593 = vunpack.c.l.b16 %v5459
    %v5594 = vunpack.c.l.b16 %v5460
    %v5595 = vunpack.c.l.b16 %v5461
    %v5596 = vunpack.c.l.b16 %v5462
    %v5597 = vunpack.c.l.b16 %v5463
    %v5598 = vunpack.c.l.b16 %v5464
    %v5599 = vunpack.c.l.b16 %v5465
    %v5600 = vunpack.c.l.b16 %v5466
    %v5601 = vunpack.c.l.b16 %v5467
    %v5602 = vunpack.c.l.b16 %v5468
    %v5603 = vunpack.c.l.b16 %v5469
    %v5604 = vunpack.c.l.b16 %v5470
    %v5605 = vunpack.c.l.b16 %v5471
    %v5606 = vunpack.c.l.b16 %v5472
    %v5607 = vunpack.c.l.b16 %v5473
    %v5608 = vunpack.c.l.b16 %v5474
    %v5609 = vunpack.c.l.b16 %v5475
    %v5610 = vunpack.c.l.b16 %v5476
    %v5611 = vunpack.c.l.b16 %v5477
    %v5612 = vunpack.c.l.b16 %v5478
    %v5613 = vunpack.c.l.b16 %v5479
    %v5614 = vunpack.c.l.b16 %v5480
    %v5615 = vunpack.c.l.b16 %v5481
    %v5616 = vunpack.c.l.b16 %v5482
    %v5617 = vunpack.c.l.b16 %v5483
    %v5618 = vunpack.c.l.b16 %v5484
    %v5619 = vunpack.c.l.b16 %v5485
    %v5620 = vunpack.c.l.b16 %v5486
    %v5621 = vunpack.c.l.b16 %v5487
    %v5622 = vunpack.c.l.b16 %v5488
    %v5623 = vunpack.c.l.b16 %v5489
    %v5624 = vunpack.c.l.b16 %v5490
    %v5625 = vunpack.c.l.b16 %v5491
    %v5626 = vunpack.c.l.b16 %v5492
    %v5627 = vpack.c.b16 %v5564, %v5563
    %v5628 = vpack.c.b16 %v5566, %v5565
    %v5629 = vpack.c.b16 %v5568, %v5567
    %v5630 = vpack.c.b16 %v5570, %v5569
    %v5631 = vpack.c.b16 %v5572, %v5571
    %v5632 = vpack.c.b16 %v5574, %v5573
    %v5633 = vpack.c.b16 %v5576, %v5575
    %v5634 = vpack.c.b16 %v5578, %v5577
    %v5635 = vpack.c.b16 %v5580, %v5579
    %v5636 = vpack.c.b16 %v5582, %v5581
    %v5637 = vpack.c.b16 %v5584, %v5583
    %v5638 = vpack.c.b16 %v5586, %v5585
    %v5639 = vpack.c.b16 %v5588, %v5587
    %v5640 = vpack.c.b16 %v5590, %v5589
    %v5641 = vpack.c.b16 %v5592, %v5591
    %v5642 = vpack.c.b16 %v5594, %v5593
    %v5643 = vpack.c.b16 %v5596, %v5595
    %v5644 = vpack.c.b16 %v5598, %v5597
    %v5645 = vpack.c.b16 %v5600, %v5599
    %v5646 = vpack.c.b16 %v5602, %v5601
    %v5647 = vpack.c.b16 %v5604, %v5603
    %v5648 = vpack.c.b16 %v5606, %v5605
    %v5649 = vpack.c.b16 %v5608, %v5607
    %v5650 = vpack.c.b16 %v5610, %v5609
    %v5651 = vpack.c.b16 %v5612, %v5611
    %v5652 = vpack.c.b16 %v5614, %v5613
    %v5653 = vpack.c.b16 %v5616, %v5615
    %v5654 = vpack.c.b16 %v5618, %v5617
    %v5655 = vpack.c.b16 %v5620, %v5619
    %v5656 = vpack.c.b16 %v5622, %v5621
    %v5657 = vpack.c.b16 %v5624, %v5623
    %v5658 = vpack.c.b16 %v5626, %v5625
    %5691 = vmatprep.subr.bf16.mxu0 0
    %5692 = vmatpush1.bf16.msra.mxu0 %v5627
    %5693 = vmatprep.subr.bf16.mxu0 0
    %5694 = vmatpush1.bf16.msra.mxu0 %v5628
    %5695 = vmatprep.subr.bf16.mxu0 0
    %5696 = vmatpush1.bf16.msra.mxu0 %v5629
    %5697 = vmatprep.subr.bf16.mxu0 0
    %5698 = vmatpush1.bf16.msra.mxu0 %v5630
    %5699 = vmatprep.subr.bf16.mxu0 0
    %5700 = vmatpush1.bf16.msra.mxu0 %v5631
    %5701 = vmatprep.subr.bf16.mxu0 0
    %5702 = vmatpush1.bf16.msra.mxu0 %v5632
    %5703 = vmatprep.subr.bf16.mxu0 0
    %5704 = vmatpush1.bf16.msra.mxu0 %v5633
    %5705 = vmatprep.subr.bf16.mxu0 0
    %5706 = vmatpush1.bf16.msra.mxu0 %v5634
    %5707 = vmatprep.subr.bf16.mxu0 0
    %5708 = vmatpush1.bf16.msra.mxu0 %v5635
    %5709 = vmatprep.subr.bf16.mxu0 0
    %5710 = vmatpush1.bf16.msra.mxu0 %v5636
    %5711 = vmatprep.subr.bf16.mxu0 0
    %5712 = vmatpush1.bf16.msra.mxu0 %v5637
    %5713 = vmatprep.subr.bf16.mxu0 0
    %5714 = vmatpush1.bf16.msra.mxu0 %v5638
    %5715 = vmatprep.subr.bf16.mxu0 0
    %5716 = vmatpush1.bf16.msra.mxu0 %v5639
    %5717 = vmatprep.subr.bf16.mxu0 0
    %5718 = vmatpush1.bf16.msra.mxu0 %v5640
    %5719 = vmatprep.subr.bf16.mxu0 0
    %5720 = vmatpush1.bf16.msra.mxu0 %v5641
    %5721 = vmatprep.subr.bf16.mxu0 0
    %5722 = vmatpush1.bf16.msra.mxu0 %v5642
    %5723 = vmatprep.mubr.bf16.mxu0 %v5426
    %5724 = vmatmul.mubr.bf16.gmra.mrb[0].mxu0 %v5425
    %v5725 = vpop.f32.mrb[0].mxu0
    %v5726 = vadd.f32 %v5497, %v5725
    %v5727 = vpop.f32.mrb[0].mxu0
    %v5728 = vpop.f32.mrb[0].mxu0
    %v5729 = vadd.f32 %v5497, %v5728
    %v5730 = vpop.f32.mrb[0].mxu0
    %5731 = vdwg.mxu0
    %5732 = vmatprep.subr.bf16.mxu0 0
    %5733 = vmatpush1.bf16.msra.mxu0 %v5643
    %5734 = vmatprep.subr.bf16.mxu0 0
    %5735 = vmatpush1.bf16.msra.mxu0 %v5644
    %5736 = vmatprep.subr.bf16.mxu0 0
    %5737 = vmatpush1.bf16.msra.mxu0 %v5645
    %5738 = vmatprep.subr.bf16.mxu0 0
    %5739 = vmatpush1.bf16.msra.mxu0 %v5646
    %5740 = vmatprep.subr.bf16.mxu0 0
    %5741 = vmatpush1.bf16.msra.mxu0 %v5647
    %5742 = vmatprep.subr.bf16.mxu0 0
    %5743 = vmatpush1.bf16.msra.mxu0 %v5648
    %5744 = vmatprep.subr.bf16.mxu0 0
    %5745 = vmatpush1.bf16.msra.mxu0 %v5649
    %5746 = vmatprep.subr.bf16.mxu0 0
    %5747 = vmatpush1.bf16.msra.mxu0 %v5650
    %5748 = vmatprep.subr.bf16.mxu0 0
    %5749 = vmatpush1.bf16.msra.mxu0 %v5651
    %5750 = vmatprep.subr.bf16.mxu0 0
    %5751 = vmatpush1.bf16.msra.mxu0 %v5652
    %5752 = vmatprep.subr.bf16.mxu0 0
    %5753 = vmatpush1.bf16.msra.mxu0 %v5653
    %5754 = vmatprep.subr.bf16.mxu0 0
    %5755 = vmatpush1.bf16.msra.mxu0 %v5654
    %5756 = vmatprep.subr.bf16.mxu0 0
    %5757 = vmatpush1.bf16.msra.mxu0 %v5655
    %5758 = vmatprep.subr.bf16.mxu0 0
    %5759 = vmatpush1.bf16.msra.mxu0 %v5656
    %5760 = vmatprep.subr.bf16.mxu0 0
    %5761 = vmatpush1.bf16.msra.mxu0 %v5657
    %5762 = vmatprep.subr.bf16.mxu0 0
    %5763 = vmatpush1.bf16.msra.mxu0 %v5658
    %5764 = vmatprep.mubr.bf16.mxu0 %v5428
    %5765 = vmatmul.mubr.bf16.gmra.mrb[0].mxu0 %v5427
    %v5766 = vpop.f32.mrb[0].mxu0
    %v5767 = vadd.f32 %v5726, %v5766
    %v5768 = vpop.f32.mrb[0].mxu0
    %v5769 = vpop.f32.mrb[0].mxu0
    %v5770 = vadd.f32 %v5729, %v5769
    %v5771 = vpop.f32.mrb[0].mxu0
    %5772 = vdwg.mxu0
    %v5773 = vxor.u32 %v5767, 2147483648
    %v5774 = vxor.u32 %v5770, 2147483648
    %v5775 = vmul.f32 %v5773, 1.442695
    %v5776 = vpow.pop %v5775
    %v5777 = vmul.f32 %v5774, 1.442695
    %v5778 = vpow.pop %v5777
    %v5779 = vadd.f32 %v5776, 1.0
    %v5780 = vadd.f32 %v5778, 1.0
    %v5781 = vrcp.pop %v5779
    %v5782 = vmul.f32 1.0, %v5781
    %v5783 = vrcp.pop %v5780
    %v5784 = vmul.f32 1.0, %v5783
    %vm5785 = vcmask 261120
    %5786 = vst.msk [vmem:[%s6] sm:$0xff] %vm5785, %v5782
    %5787 = vst.msk [vmem:[%s6 + $0x8] sm:$0xff] %vm5785, %v5784
    // Predicated region
    $region42: #{decoder_forward.1} parent=1 // pred_check
      _
    $region43: #{decoder_forward.1} parent=1 // pred_check_branch
      %5789 = sbr.rel (0) target = $region45
    $region44: #{decoder_forward.1} parent=1 // pred_region
      _
    $region45: #{decoder_forward.1} parent=1 // pred_fallthru
      _
    // Predicated region
    $region46: #{decoder_forward.1} parent=1 // pred_check
      _
    $region47: #{decoder_forward.1} parent=1 // pred_check_branch
      %5791 = sbr.rel (0) target = $region49
    $region48: #{decoder_forward.1} parent=1 // pred_region
      _
    $region49: #{decoder_forward.1} parent=1 // pred_fallthru
      _
    %5792 = vsyncpa [#allocation3], 1
    %5793 = vsyncpa [#allocation5], 1
    %5794 = vsyncpa [#allocation8], 1

</llo_original>
